<compile_context>
chip_gen: v6e
topology: v6e:2x2x1
jax: 0.10.0
libtpu: 0.0.40
codegen_flags: <defaults>
</compile_context>

<pallas_src>
import functools

import jax
import jax.numpy as jnp
import numpy as np
from jax import lax
from jax.experimental import pallas as pl
from jax.experimental.pallas import tpu as pltpu


# ---------------------------------------------------------------------------
# Fused Pallas kernel: conv_out + qkv conv + multi-head attention + 1x1 attn_out
# ---------------------------------------------------------------------------
def _augmented_conv_kernel(xs_ref, wcat_ref, bcat_ref, w1_ref, b1_ref,
                           conv_ref, attn_ref, *, co, dk, dv, Nh, K, C, H, W):
    HW = H * W
    dkh = dk // Nh
    dvh = dv // Nh
    P = HW // dvh

    # ---- fused conv_out + qkv conv: in-kernel patch gather, one MXU matmul ----
    # xs_ref block: (1, K, C, Hp*W) with xs[kw, c, i*W + j] = x_pad[c, i, kw + j].
    cols = []
    for kw in range(K):
        plane = xs_ref[0, kw, :, :]                       # (C, Hp*W)
        for kh in range(K):
            cols.append(plane[:, kh * W: kh * W + HW])    # (C, HW) shifted window
    patches_t = jnp.concatenate(cols, axis=0)             # (K*K*C, HW)
    both_t = (
        jnp.dot(wcat_ref[...], patches_t, preferred_element_type=jnp.float32)
        + bcat_ref[...]
    )                                                      # (co + 2*dk + dv, HW), lane-dense

    conv_ref[0] = both_t[:co]                              # lane-dense conv_out store

    q_t = both_t[co: co + dk]                              # (dk, HW); scale folded into weights
    k_t = both_t[co + dk: co + 2 * dk]                     # (dk, HW)
    v_t = both_t[co + 2 * dk:]                             # (dv, HW)

    # ---- attention (all heads) + fused combine_heads + 1x1 attn_out conv ----
    contract_first = (((0,), (0,)), ((), ()))              # contract head-dim axis (no .T in source)
    contract_last = (((1,), (1,)), ((), ()))               # contract key axis of both operands

    w1 = w1_ref[...]                                       # (dv, dv, 1, 1)
    acc = jnp.zeros((dv, P, dvh), jnp.float32) + b1_ref[...]   # (dv, P, dvh), bias pre-added

    for nh in range(Nh):
        q_h = q_t[nh * dkh:(nh + 1) * dkh, :]              # (dkh, HW)
        k_h = k_t[nh * dkh:(nh + 1) * dkh, :]              # (dkh, HW)
        v_h = v_t[nh * dvh:(nh + 1) * dvh, :]              # (dvh, HW)

        logits = lax.dot_general(q_h, k_h, contract_first,
                                 preferred_element_type=jnp.float32)   # (HW, HW)
        m = jnp.max(logits, axis=-1, keepdims=True)
        p = jnp.exp(logits - m)
        s = jnp.sum(p, axis=-1, keepdims=True)
        # exact reciprocal keeps comfortably within the 2e-4 tolerance
        wts = p * pl.reciprocal(s, approx=False)

        attn_h = lax.dot_general(wts, v_h, contract_last,
                                 preferred_element_type=jnp.float32)   # (HW, dvh)

        # combine_heads_2d in the reference is a pure row-major reshape: row block
        # dp (128-aligned) of this head's (HW, dvh) output becomes "channel"
        # nh*dvh + dp.  Fuse the 1x1 attn_out conv here as scalar-weighted sums.
        for dp in range(dvh):
            blk = attn_h[dp * P:(dp + 1) * P, :]           # (P, dvh), aligned sublane slice
            coef = w1[:, nh * dvh + dp]                    # (dv, 1, 1)
            acc = acc + coef * blk[None, :, :]             # broadcast FMA on the VPU

    attn_ref[0] = acc                                      # (dv, P, dvh); wrapper reshape is free


# ---------------------------------------------------------------------------
# Wrapper: layout prep (trace-time on params + one padded shift-stack of x)
# ---------------------------------------------------------------------------
def augmented_conv_forward(x, params, *, kernel_size, dk, dv, Nh):
    N, C, H, W = x.shape
    K = kernel_size
    pad = (K - 1) // 2
    Hp = H + 2 * pad
    co = params["W_co"].shape[0]              # out_channels - dv
    cq = 2 * dk + dv
    cout = co + cq
    dkh, dvh = dk // Nh, dv // Nh
    HW = H * W
    # TODO(synk): general dvh not dividing H*W needs a different epilogue blocking.
    assert HW % dvh == 0
    P = HW // dvh

    # Pad + pre-shift along W (3 copies) so every in-kernel patch read is a plain slice.
    xp = jnp.pad(x, ((0, 0), (0, 0), (pad, pad), (pad, pad)))            # (N, C, Hp, Wp)
    xs = jnp.stack([xp[:, :, :, kw:kw + W] for kw in range(K)], axis=1)  # (N, K, C, Hp, W)
    xs = xs.reshape(N, K, C, Hp * W)

    # Fused conv_out + qkv weight slab in (kw, kh, c) feature order; fold the
    # 1/sqrt(dkh) attention scale into the q rows of W_qkv / b_qkv.
    scale = float(dkh) ** (-0.5)
    w_qkv = params["W_qkv"].at[:dk].multiply(scale)
    b_qkv = params["b_qkv"].at[:dk].multiply(scale)
    w_full = jnp.concatenate([params["W_co"], w_qkv], axis=0)            # (cout, C, K, K)
    w_cat_t = w_full.transpose(3, 2, 1, 0).reshape(K * K * C, cout).T    # (cout, K*K*C)
    b_cat = jnp.concatenate([params["b_co"], b_qkv]).reshape(cout, 1)

    w1 = params["W_attn"].reshape(dv, dv, 1, 1)
    b1 = params["b_attn"].reshape(dv, 1, 1)

    kernel = functools.partial(_augmented_conv_kernel, co=co, dk=dk, dv=dv,
                               Nh=Nh, K=K, C=C, H=H, W=W)

    flops = N * (2 * HW * (K * K * C) * cout
                 + Nh * (2 * HW * HW * dkh + 2 * HW * HW * dvh)
                 + 2 * dv * dv * HW)
    transcendentals = N * Nh * HW * HW
    bytes_accessed = 4 * (xs.size + w_cat_t.size + b_cat.size + w1.size + b1.size
                          + N * co * HW + N * dv * HW)

    out_conv, out_attn = pl.pallas_call(
        kernel,
        out_shape=(
            jax.ShapeDtypeStruct((N, co, HW), jnp.float32),
            jax.ShapeDtypeStruct((N, dv, P, dvh), jnp.float32),
        ),
        grid_spec=pltpu.PrefetchScalarGridSpec(
            num_scalar_prefetch=0,
            grid=(N,),
            in_specs=[
                pl.BlockSpec((1, K, C, Hp * W), lambda n: (n, 0, 0, 0)),
                pl.BlockSpec((cout, K * K * C), lambda n: (0, 0)),
                pl.BlockSpec((cout, 1), lambda n: (0, 0)),
                pl.BlockSpec((dv, dv, 1, 1), lambda n: (0, 0, 0, 0)),
                pl.BlockSpec((dv, 1, 1), lambda n: (0, 0, 0)),
            ],
            out_specs=[
                pl.BlockSpec((1, co, HW), lambda n: (n, 0, 0)),
                pl.BlockSpec((1, dv, P, dvh), lambda n: (n, 0, 0, 0)),
            ],
        ),
        compiler_params=pltpu.CompilerParams(
            dimension_semantics=("parallel",),
            vmem_limit_bytes=32 * 1024 * 1024,
        ),
        cost_estimate=pl.CostEstimate(
            flops=flops, transcendentals=transcendentals,
            bytes_accessed=bytes_accessed),
    )(xs, w_cat_t, b_cat, w1, b1)

    conv_part = out_conv.reshape(N, co, H, W)
    # Pure row-major reshape: reproduces the reference's combine_heads element order.
    attn_part = out_attn.reshape(N, dv, H, W)
    return jnp.concatenate([conv_part, attn_part], axis=1)

    # TODO(synk): relative positional logits (relative=True) and stride=2 are not implemented.


# ---------------------------------------------------------------------------
# Pure-JAX reference mirroring the PyTorch module (for validation)
# ---------------------------------------------------------------------------
def reference_forward(x, params, *, kernel_size, dk, dv, Nh):
    N, C, H, W = x.shape
    pad = (kernel_size - 1) // 2
    dn = ("NCHW", "OIHW", "NCHW")

    def conv(x_, w_, b_, p_):
        y = lax.conv_general_dilated(x_, w_, (1, 1), [(p_, p_), (p_, p_)],
                                     dimension_numbers=dn)
        return y + b_[None, :, None, None]

    conv_out = conv(x, params["W_co"], params["b_co"], pad)
    qkv = conv(x, params["W_qkv"], params["b_qkv"], pad)
    q, k, v = qkv[:, :dk], qkv[:, dk:2 * dk], qkv[:, 2 * dk:]
    dkh, dvh = dk // Nh, dv // Nh
    HW = H * W

    q = (dkh ** -0.5) * q.reshape(N, Nh, dkh, H, W)
    flat_q = q.reshape(N, Nh, dkh, HW)
    flat_k = k.reshape(N, Nh, dkh, HW)
    flat_v = v.reshape(N, Nh, dvh, HW)

    logits = jnp.matmul(jnp.swapaxes(flat_q, 2, 3), flat_k)
    weights = jax.nn.softmax(logits, axis=-1)
    attn = jnp.matmul(weights, jnp.swapaxes(flat_v, 2, 3))         # (N, Nh, HW, dvh)
    attn = attn.reshape(N, Nh, dvh, H, W).reshape(N, dv, H, W)     # combine_heads_2d

    attn_out = conv(attn, params["W_attn"], params["b_attn"], 0)
    return jnp.concatenate([conv_out, attn_out], axis=1)


# ---------------------------------------------------------------------------
if __name__ == "__main__":
    # Module config (relative=False, stride=1)
    in_channels, out_channels, kernel_size = 4, 8, 3
    dk, dv, Nh = 4, 4, 2
    N, H, W = 2, 16, 16

    key = jax.random.PRNGKey(0)
    k0, k1, k2, k3, k4, k5, kx = jax.random.split(key, 7)
    params = {
        "W_co": 0.1 * jax.random.normal(k0, (out_channels - dv, in_channels,
                                             kernel_size, kernel_size), jnp.float32),
        "b_co": 0.1 * jax.random.normal(k1, (out_channels - dv,), jnp.float32),
        "W_qkv": 0.1 * jax.random.normal(k2, (2 * dk + dv, in_channels,
                                              kernel_size, kernel_size), jnp.float32),
        "b_qkv": 0.1 * jax.random.normal(k3, (2 * dk + dv,), jnp.float32),
        "W_attn": 0.1 * jax.random.normal(k4, (dv, dv, 1, 1), jnp.float32),
        "b_attn": 0.1 * jax.random.normal(k5, (dv,), jnp.float32),
    }
    x = jax.random.normal(kx, (N, in_channels, H, W), jnp.float32)

    fwd = jax.jit(functools.partial(augmented_conv_forward,
                                    kernel_size=kernel_size, dk=dk, dv=dv, Nh=Nh))
    out = fwd(x, params)
    out = jax.block_until_ready(out)

    ref = reference_forward(x, params, kernel_size=kernel_size, dk=dk, dv=dv, Nh=Nh)
    ref = jax.block_until_ready(ref)

    assert out.shape == (N, out_channels, H, W), out.shape
    np.testing.assert_allclose(np.asarray(out), np.asarray(ref), rtol=2e-4, atol=2e-4)
    print("KERNEL_OK")
</pallas_src>

<mosaic_0001>
module attributes {stable_mosaic.version = 11 : i64} {
  func.func @_augmented_conv_kernel(%arg0: i32, %arg1: memref<1x3x4x288xf32, #tpu.memory_space<vmem>>, %arg2: memref<16x36xf32, #tpu.memory_space<vmem>>, %arg3: memref<16x1xf32, #tpu.memory_space<vmem>>, %arg4: memref<4x4x1x1xf32, #tpu.memory_space<vmem>>, %arg5: memref<4x1x1xf32, #tpu.memory_space<vmem>>, %arg6: memref<1x4x256xf32, #tpu.memory_space<vmem>>, %arg7: memref<1x4x128x2xf32, #tpu.memory_space<vmem>>) attributes {dimension_semantics = [#tpu.dimension_semantics<parallel>], iteration_bounds = array<i64: 2>, scalar_prefetch = 0 : i64, scratch_operands = 0 : i64, tpu.core_type = #tpu.core_type<tc>, window_params = [{transform_indices = @transform_0, window_bounds = array<i64: 1, 3, 4, 288>}, {pipeline_mode = #tpu.pipeline_mode<synchronous>, transform_indices = @transform_1, window_bounds = array<i64: 16, 36>}, {pipeline_mode = #tpu.pipeline_mode<synchronous>, transform_indices = @transform_2, window_bounds = array<i64: 16, 1>}, {pipeline_mode = #tpu.pipeline_mode<synchronous>, transform_indices = @transform_3, window_bounds = array<i64: 4, 4, 1, 1>}, {pipeline_mode = #tpu.pipeline_mode<synchronous>, transform_indices = @transform_4, window_bounds = array<i64: 4, 1, 1>}, {transform_indices = @transform_5, window_bounds = array<i64: 1, 4, 256>}, {transform_indices = @transform_6, window_bounds = array<i64: 1, 4, 128, 2>}]} {
    %c0 = arith.constant 0 : index
    %c0_0 = arith.constant 0 : index
    %c0_1 = arith.constant 0 : index
    %c0_2 = arith.constant 0 : index
    %0 = vector.load %arg1[%c0, %c0_0, %c0_1, %c0_2] : memref<1x3x4x288xf32, #tpu.memory_space<vmem>>, vector<1x1x4x288xf32>
    %1 = vector.shape_cast %0 : vector<1x1x4x288xf32> to vector<4x288xf32>
    %2 = vector.extract_strided_slice %1 {offsets = [0, 0], sizes = [4, 256], strides = [1, 1]} : vector<4x288xf32> to vector<4x256xf32>
    %3 = vector.extract_strided_slice %1 {offsets = [0, 16], sizes = [4, 256], strides = [1, 1]} : vector<4x288xf32> to vector<4x256xf32>
    %4 = vector.extract_strided_slice %1 {offsets = [0, 32], sizes = [4, 256], strides = [1, 1]} : vector<4x288xf32> to vector<4x256xf32>
    %c0_3 = arith.constant 0 : index
    %c1 = arith.constant 1 : index
    %c0_4 = arith.constant 0 : index
    %c0_5 = arith.constant 0 : index
    %5 = vector.load %arg1[%c0_3, %c1, %c0_4, %c0_5] : memref<1x3x4x288xf32, #tpu.memory_space<vmem>>, vector<1x1x4x288xf32>
    %6 = vector.shape_cast %5 : vector<1x1x4x288xf32> to vector<4x288xf32>
    %7 = vector.extract_strided_slice %6 {offsets = [0, 0], sizes = [4, 256], strides = [1, 1]} : vector<4x288xf32> to vector<4x256xf32>
    %8 = vector.extract_strided_slice %6 {offsets = [0, 16], sizes = [4, 256], strides = [1, 1]} : vector<4x288xf32> to vector<4x256xf32>
    %9 = vector.extract_strided_slice %6 {offsets = [0, 32], sizes = [4, 256], strides = [1, 1]} : vector<4x288xf32> to vector<4x256xf32>
    %c0_6 = arith.constant 0 : index
    %c2 = arith.constant 2 : index
    %c0_7 = arith.constant 0 : index
    %c0_8 = arith.constant 0 : index
    %10 = vector.load %arg1[%c0_6, %c2, %c0_7, %c0_8] : memref<1x3x4x288xf32, #tpu.memory_space<vmem>>, vector<1x1x4x288xf32>
    %11 = vector.shape_cast %10 : vector<1x1x4x288xf32> to vector<4x288xf32>
    %12 = vector.extract_strided_slice %11 {offsets = [0, 0], sizes = [4, 256], strides = [1, 1]} : vector<4x288xf32> to vector<4x256xf32>
    %13 = vector.extract_strided_slice %11 {offsets = [0, 16], sizes = [4, 256], strides = [1, 1]} : vector<4x288xf32> to vector<4x256xf32>
    %14 = vector.extract_strided_slice %11 {offsets = [0, 32], sizes = [4, 256], strides = [1, 1]} : vector<4x288xf32> to vector<4x256xf32>
    %15 = tpu.concatenate %2, %3, %4, %7, %8, %9, %12, %13, %14 in 0 : vector<4x256xf32>, vector<4x256xf32>, vector<4x256xf32>, vector<4x256xf32>, vector<4x256xf32>, vector<4x256xf32>, vector<4x256xf32>, vector<4x256xf32>, vector<4x256xf32> -> vector<36x256xf32>
    %c0_9 = arith.constant 0 : index
    %c0_10 = arith.constant 0 : index
    %16 = vector.load %arg2[%c0_9, %c0_10] : memref<16x36xf32, #tpu.memory_space<vmem>>, vector<16x36xf32>
    %cst = arith.constant dense<0.000000e+00> : vector<16x256xf32>
    %17 = tpu.matmul %16, %15, %cst {dimension_numbers = #tpu.dot_dimension_numbers<[1], [0], [0], [1], [0, 0, 1, 1], [], []>} : vector<16x36xf32>, vector<36x256xf32>, vector<16x256xf32> -> vector<16x256xf32>
    %c0_11 = arith.constant 0 : index
    %c0_12 = arith.constant 0 : index
    %18 = vector.load %arg3[%c0_11, %c0_12] : memref<16x1xf32, #tpu.memory_space<vmem>>, vector<16x1xf32>
    %19 = vector.broadcast %18 : vector<16x1xf32> to vector<16x256xf32>
    %20 = arith.addf %17, %19 : vector<16x256xf32>
    %21 = vector.extract_strided_slice %20 {offsets = [0, 0], sizes = [4, 256], strides = [1, 1]} : vector<16x256xf32> to vector<4x256xf32>
    %c0_13 = arith.constant 0 : index
    %c0_14 = arith.constant 0 : index
    %c0_15 = arith.constant 0 : index
    %22 = vector.load %arg6[%c0_13, %c0_14, %c0_15] : memref<1x4x256xf32, #tpu.memory_space<vmem>>, vector<1x4x256xf32>
    %23 = vector.shape_cast %22 : vector<1x4x256xf32> to vector<4x256xf32>
    %24 = vector.shape_cast %21 : vector<4x256xf32> to vector<1x4x256xf32>
    tpu.vector_store %arg6[%c0_13, %c0_14, %c0_15], %24 {strides = array<i32>} : memref<1x4x256xf32, #tpu.memory_space<vmem>>, vector<1x4x256xf32>,
    %25 = vector.extract_strided_slice %20 {offsets = [4, 0], sizes = [4, 256], strides = [1, 1]} : vector<16x256xf32> to vector<4x256xf32>
    %26 = vector.extract_strided_slice %20 {offsets = [8, 0], sizes = [4, 256], strides = [1, 1]} : vector<16x256xf32> to vector<4x256xf32>
    %27 = vector.extract_strided_slice %20 {offsets = [12, 0], sizes = [4, 256], strides = [1, 1]} : vector<16x256xf32> to vector<4x256xf32>
    %c0_16 = arith.constant 0 : index
    %c0_17 = arith.constant 0 : index
    %c0_18 = arith.constant 0 : index
    %c0_19 = arith.constant 0 : index
    %28 = vector.load %arg4[%c0_16, %c0_17, %c0_18, %c0_19] : memref<4x4x1x1xf32, #tpu.memory_space<vmem>>, vector<4x4x1x1xf32>
    %cst_20 = arith.constant 0.000000e+00 : f32
    %29 = vector.broadcast %cst_20 : f32 to vector<4x128x2xf32>
    %c0_21 = arith.constant 0 : index
    %c0_22 = arith.constant 0 : index
    %c0_23 = arith.constant 0 : index
    %30 = vector.load %arg5[%c0_21, %c0_22, %c0_23] : memref<4x1x1xf32, #tpu.memory_space<vmem>>, vector<4x1x1xf32>
    %31 = vector.broadcast %30 : vector<4x1x1xf32> to vector<4x128x2xf32>
    %32 = arith.addf %29, %31 : vector<4x128x2xf32>
    %33 = vector.extract_strided_slice %25 {offsets = [0, 0], sizes = [2, 256], strides = [1, 1]} : vector<4x256xf32> to vector<2x256xf32>
    %34 = vector.extract_strided_slice %26 {offsets = [0, 0], sizes = [2, 256], strides = [1, 1]} : vector<4x256xf32> to vector<2x256xf32>
    %35 = vector.extract_strided_slice %27 {offsets = [0, 0], sizes = [2, 256], strides = [1, 1]} : vector<4x256xf32> to vector<2x256xf32>
    %cst_24 = arith.constant dense<0.000000e+00> : vector<256x256xf32>
    %36 = tpu.matmul %33, %34, %cst_24 {dimension_numbers = #tpu.dot_dimension_numbers<[0], [0], [1], [1], [0, 1, 1, 1], [], []>} : vector<2x256xf32>, vector<2x256xf32>, vector<256x256xf32> -> vector<256x256xf32>
    %cst_25 = arith.constant dense<0xFF800000> : vector<256xf32>
    %37 = vector.multi_reduction <maximumf>, %36, %cst_25 [1] : vector<256x256xf32> to vector<256xf32>
    %38 = vector.shape_cast %37 : vector<256xf32> to vector<256x1xf32>
    %39 = vector.broadcast %38 : vector<256x1xf32> to vector<256x256xf32>
    %40 = arith.subf %36, %39 : vector<256x256xf32>
    %41 = math.exp %40 : vector<256x256xf32>
    %cst_26 = arith.constant dense<0.000000e+00> : vector<256xf32>
    %42 = vector.multi_reduction <add>, %41, %cst_26 [1] : vector<256x256xf32> to vector<256xf32>
    %43 = vector.shape_cast %42 : vector<256xf32> to vector<256x1xf32>
    %44 = tpu.reciprocal %43 : vector<256x1xf32> -> vector<256x1xf32>
    %45 = vector.broadcast %44 : vector<256x1xf32> to vector<256x256xf32>
    %46 = arith.mulf %41, %45 : vector<256x256xf32>
    %cst_27 = arith.constant dense<0.000000e+00> : vector<256x2xf32>
    %47 = tpu.matmul %46, %35, %cst_27 {dimension_numbers = #tpu.dot_dimension_numbers<[1], [1], [0], [0], [0, 0, 1, 0], [], []>} : vector<256x256xf32>, vector<2x256xf32>, vector<256x2xf32> -> vector<256x2xf32>
    %48 = vector.extract_strided_slice %47 {offsets = [0, 0], sizes = [128, 2], strides = [1, 1]} : vector<256x2xf32> to vector<128x2xf32>
    %49 = vector.extract_strided_slice %28 {offsets = [0, 0, 0, 0], sizes = [4, 1, 1, 1], strides = [1, 1, 1, 1]} : vector<4x4x1x1xf32> to vector<4x1x1x1xf32>
    %50 = vector.shape_cast %49 : vector<4x1x1x1xf32> to vector<4x1x1xf32>
    %51 = vector.shape_cast %48 : vector<128x2xf32> to vector<1x128x2xf32>
    %52 = vector.broadcast %50 : vector<4x1x1xf32> to vector<4x128x2xf32>
    %53 = vector.broadcast %51 : vector<1x128x2xf32> to vector<4x128x2xf32>
    %54 = arith.mulf %52, %53 : vector<4x128x2xf32>
    %55 = arith.addf %32, %54 : vector<4x128x2xf32>
    %56 = vector.extract_strided_slice %47 {offsets = [128, 0], sizes = [128, 2], strides = [1, 1]} : vector<256x2xf32> to vector<128x2xf32>
    %57 = vector.extract_strided_slice %28 {offsets = [0, 1, 0, 0], sizes = [4, 1, 1, 1], strides = [1, 1, 1, 1]} : vector<4x4x1x1xf32> to vector<4x1x1x1xf32>
    %58 = vector.shape_cast %57 : vector<4x1x1x1xf32> to vector<4x1x1xf32>
    %59 = vector.shape_cast %56 : vector<128x2xf32> to vector<1x128x2xf32>
    %60 = vector.broadcast %58 : vector<4x1x1xf32> to vector<4x128x2xf32>
    %61 = vector.broadcast %59 : vector<1x128x2xf32> to vector<4x128x2xf32>
    %62 = arith.mulf %60, %61 : vector<4x128x2xf32>
    %63 = arith.addf %55, %62 : vector<4x128x2xf32>
    %64 = vector.extract_strided_slice %25 {offsets = [2, 0], sizes = [2, 256], strides = [1, 1]} : vector<4x256xf32> to vector<2x256xf32>
    %65 = vector.extract_strided_slice %26 {offsets = [2, 0], sizes = [2, 256], strides = [1, 1]} : vector<4x256xf32> to vector<2x256xf32>
    %66 = vector.extract_strided_slice %27 {offsets = [2, 0], sizes = [2, 256], strides = [1, 1]} : vector<4x256xf32> to vector<2x256xf32>
    %cst_28 = arith.constant dense<0.000000e+00> : vector<256x256xf32>
    %67 = tpu.matmul %64, %65, %cst_28 {dimension_numbers = #tpu.dot_dimension_numbers<[0], [0], [1], [1], [0, 1, 1, 1], [], []>} : vector<2x256xf32>, vector<2x256xf32>, vector<256x256xf32> -> vector<256x256xf32>
    %cst_29 = arith.constant dense<0xFF800000> : vector<256xf32>
    %68 = vector.multi_reduction <maximumf>, %67, %cst_29 [1] : vector<256x256xf32> to vector<256xf32>
    %69 = vector.shape_cast %68 : vector<256xf32> to vector<256x1xf32>
    %70 = vector.broadcast %69 : vector<256x1xf32> to vector<256x256xf32>
    %71 = arith.subf %67, %70 : vector<256x256xf32>
    %72 = math.exp %71 : vector<256x256xf32>
    %cst_30 = arith.constant dense<0.000000e+00> : vector<256xf32>
    %73 = vector.multi_reduction <add>, %72, %cst_30 [1] : vector<256x256xf32> to vector<256xf32>
    %74 = vector.shape_cast %73 : vector<256xf32> to vector<256x1xf32>
    %75 = tpu.reciprocal %74 : vector<256x1xf32> -> vector<256x1xf32>
    %76 = vector.broadcast %75 : vector<256x1xf32> to vector<256x256xf32>
    %77 = arith.mulf %72, %76 : vector<256x256xf32>
    %cst_31 = arith.constant dense<0.000000e+00> : vector<256x2xf32>
    %78 = tpu.matmul %77, %66, %cst_31 {dimension_numbers = #tpu.dot_dimension_numbers<[1], [1], [0], [0], [0, 0, 1, 0], [], []>} : vector<256x256xf32>, vector<2x256xf32>, vector<256x2xf32> -> vector<256x2xf32>
    %79 = vector.extract_strided_slice %78 {offsets = [0, 0], sizes = [128, 2], strides = [1, 1]} : vector<256x2xf32> to vector<128x2xf32>
    %80 = vector.extract_strided_slice %28 {offsets = [0, 2, 0, 0], sizes = [4, 1, 1, 1], strides = [1, 1, 1, 1]} : vector<4x4x1x1xf32> to vector<4x1x1x1xf32>
    %81 = vector.shape_cast %80 : vector<4x1x1x1xf32> to vector<4x1x1xf32>
    %82 = vector.shape_cast %79 : vector<128x2xf32> to vector<1x128x2xf32>
    %83 = vector.broadcast %81 : vector<4x1x1xf32> to vector<4x128x2xf32>
    %84 = vector.broadcast %82 : vector<1x128x2xf32> to vector<4x128x2xf32>
    %85 = arith.mulf %83, %84 : vector<4x128x2xf32>
    %86 = arith.addf %63, %85 : vector<4x128x2xf32>
    %87 = vector.extract_strided_slice %78 {offsets = [128, 0], sizes = [128, 2], strides = [1, 1]} : vector<256x2xf32> to vector<128x2xf32>
    %88 = vector.extract_strided_slice %28 {offsets = [0, 3, 0, 0], sizes = [4, 1, 1, 1], strides = [1, 1, 1, 1]} : vector<4x4x1x1xf32> to vector<4x1x1x1xf32>
    %89 = vector.shape_cast %88 : vector<4x1x1x1xf32> to vector<4x1x1xf32>
    %90 = vector.shape_cast %87 : vector<128x2xf32> to vector<1x128x2xf32>
    %91 = vector.broadcast %89 : vector<4x1x1xf32> to vector<4x128x2xf32>
    %92 = vector.broadcast %90 : vector<1x128x2xf32> to vector<4x128x2xf32>
    %93 = arith.mulf %91, %92 : vector<4x128x2xf32>
    %94 = arith.addf %86, %93 : vector<4x128x2xf32>
    %c0_32 = arith.constant 0 : index
    %c0_33 = arith.constant 0 : index
    %c0_34 = arith.constant 0 : index
    %c0_35 = arith.constant 0 : index
    %95 = vector.load %arg7[%c0_32, %c0_33, %c0_34, %c0_35] : memref<1x4x128x2xf32, #tpu.memory_space<vmem>>, vector<1x4x128x2xf32>
    %96 = vector.shape_cast %95 : vector<1x4x128x2xf32> to vector<4x128x2xf32>
    %97 = vector.shape_cast %94 : vector<4x128x2xf32> to vector<1x4x128x2xf32>
    tpu.vector_store %arg7[%c0_32, %c0_33, %c0_34, %c0_35], %97 {strides = array<i32>} : memref<1x4x128x2xf32, #tpu.memory_space<vmem>>, vector<1x4x128x2xf32>,
    return
  }
  func.func @transform_0(%arg0: i32) -> (i32, i32, i32, i32) {
    %c0_i32 = arith.constant 0 : i32
    %c0_i32_0 = arith.constant 0 : i32
    %c0_i32_1 = arith.constant 0 : i32
    %c0_i32_2 = arith.constant 0 : i32
    return %arg0, %c0_i32, %c0_i32_0, %c0_i32_1 : i32, i32, i32, i32
  }
  func.func @transform_1(%arg0: i32) -> (i32, i32) {
    %c0_i32 = arith.constant 0 : i32
    %c0_i32_0 = arith.constant 0 : i32
    %c0_i32_1 = arith.constant 0 : i32
    return %c0_i32, %c0_i32_0 : i32, i32
  }
  func.func @transform_2(%arg0: i32) -> (i32, i32) {
    %c0_i32 = arith.constant 0 : i32
    %c0_i32_0 = arith.constant 0 : i32
    %c0_i32_1 = arith.constant 0 : i32
    return %c0_i32, %c0_i32_0 : i32, i32
  }
  func.func @transform_3(%arg0: i32) -> (i32, i32, i32, i32) {
    %c0_i32 = arith.constant 0 : i32
    %c0_i32_0 = arith.constant 0 : i32
    %c0_i32_1 = arith.constant 0 : i32
    %c0_i32_2 = arith.constant 0 : i32
    %c0_i32_3 = arith.constant 0 : i32
    return %c0_i32, %c0_i32_0, %c0_i32_1, %c0_i32_2 : i32, i32, i32, i32
  }
  func.func @transform_4(%arg0: i32) -> (i32, i32, i32) {
    %c0_i32 = arith.constant 0 : i32
    %c0_i32_0 = arith.constant 0 : i32
    %c0_i32_1 = arith.constant 0 : i32
    %c0_i32_2 = arith.constant 0 : i32
    return %c0_i32, %c0_i32_0, %c0_i32_1 : i32, i32, i32
  }
  func.func @transform_5(%arg0: i32) -> (i32, i32, i32) {
    %c0_i32 = arith.constant 0 : i32
    %c0_i32_0 = arith.constant 0 : i32
    %c0_i32_1 = arith.constant 0 : i32
    return %arg0, %c0_i32, %c0_i32_0 : i32, i32, i32
  }
  func.func @transform_6(%arg0: i32) -> (i32, i32, i32, i32) {
    %c0_i32 = arith.constant 0 : i32
    %c0_i32_0 = arith.constant 0 : i32
    %c0_i32_1 = arith.constant 0 : i32
    %c0_i32_2 = arith.constant 0 : i32
    return %arg0, %c0_i32, %c0_i32_0, %c0_i32_1 : i32, i32, i32, i32
  }
}

</mosaic_0001>

<llo_original>
// kernel: augmented_conv_forward.1
$region0: #{augmented_conv_forward.1}
  #allocation0 [shape = 'u32[]', space=smem, size = 0x4, offset = 0x4, fixed_abs, tag = 'smem constant byte address 0x4 - core index']
  #allocation1 [shape = 'u32[144,128]{1,0:T(1,128)}', space=vmem, size = 0x12000, scoped, tag = 'internal scratch']
  %s0 = inlined_call_operand.vmem [shape: f32[2,3,4,288], index: 0, kind: input, shape index: {}]
  %s1 = inlined_call_operand.vmem [shape: f32[16,36], index: 1, kind: input, shape index: {}]
  %s2 = inlined_call_operand.vmem [shape: f32[16,1], index: 2, kind: input, shape index: {}]
  %s3 = inlined_call_operand.vmem [shape: f32[4,4,1,1], index: 3, kind: input, shape index: {}]
  %s4 = inlined_call_operand.vmem [shape: f32[4,1,1], index: 4, kind: input, shape index: {}]
  %s5 = inlined_call_operand.vmem [shape: f32[2,4,256], index: 5, kind: output, shape index: {0}]
  %s6 = inlined_call_operand.vmem [shape: f32[2,4,128,2], index: 6, kind: output, shape index: {1}]
  %7 = xla_tuple %s5, %s6
  %s8 = sld [smem:[#allocation0]]
  $region61: #{augmented_conv_forward.1} parent=0
    _
  %s10 = ssub.s32 1, %s8
  %s11 = scalar_select 0, %s10, %s8
  loop: start=0, step=1, limit=4
  $region2: #{augmented_conv_forward.1} parent=0 // loop_pre_header
    _
  $region3: #{augmented_conv_forward.1} parent=0 // loop_header
    %s13 = sphi 0, %s17
    %p14 = scmp.ge.s32.totalorder %s13, 4
    %s23 = sphi 0, %s25
    %s26 = sphi 0, %s23
    %s27 = sphi 0, %s26
    %s43 = sphi 0, %s27
    %s47 = sphi 0, %s47
    %s49 = sphi 0, %s47
    %s50 = sphi 0, %s49
    %s64 = sphi 0, %s50
    %s68 = sphi 0, %s68
    %s70 = sphi 0, %s68
    %s71 = sphi 0, %s70
    %s85 = sphi 0, %s71
    %s89 = sphi 0, %s89
    %s91 = sphi 0, %s89
    %s92 = sphi 0, %s91
    %s106 = sphi 0, %s92
    %s110 = sphi 0, %s110
    %s112 = sphi 0, %s110
    %s113 = sphi 0, %s112
    %s127 = sphi 0, %s113
    %s133 = sphi 0, %s135
    %s136 = sphi 0, %s133
    %s137 = sphi 0, %s136
    %s153 = sphi 0, %s137
    %s159 = sphi 0, %s161
    %s162 = sphi 0, %s159
    %s163 = sphi 0, %s162
    %s179 = sphi 0, %s163
  $region4: #{augmented_conv_forward.1} parent=0 // loop_header_branch
    %16 = sbr.rel (%p14) target = $region8
  $region5: #{augmented_conv_forward.1} parent=0 // loop_body
    %s18 = ssub.s32 %s13, 1
    %s19 = ssub.s32 %s13, 2
    %s20 = sadd.s32 %s13, 1
    %s21 = ssub.s32 %s13, %s20
    %p22 = scmp.eq.s32.totalorder %s21, 0
    %s24 = sadd.s32 %s23, 1
    %s25 = scalar_select %p22, %s23, %s24
    %p28 = pneg %p22
    %p29 = scmp.eq.s32.totalorder %s13, 1
    %p30 = por %p28, %p29
    %p31 = scmp.ne.s32.totalorder %s23, %s26
    %p32 = scmp.eq.s32.totalorder %s13, 0
    %p33 = por %p31, %p32
    %p34 = scmp.ne.s32.totalorder %s23, %s26
    %p35 = scmp.eq.s32.totalorder %s18, 1
    %p36 = por %p34, %p35
    %p37 = scmp.ne.s32.totalorder %s26, %s27
    %p38 = scmp.eq.s32.totalorder %s18, 0
    %p39 = por %p37, %p38
    %p40 = scmp.ne.s32.totalorder %s26, %s27
    %p41 = scmp.eq.s32.totalorder %s19, 1
    %p42 = por %p40, %p41
    %p44 = scmp.ne.s32.totalorder %s27, %s43
    %p45 = scmp.eq.s32.totalorder %s19, 0
    %p46 = por %p44, %p45
    %s48 = sadd.s32 %s47, 1
    %p51 = scmp.eq.s32.totalorder %s13, 1
    %p52 = scmp.ne.s32.totalorder %s47, %s49
    %p53 = scmp.eq.s32.totalorder %s13, 0
    %p54 = por %p52, %p53
    %p55 = scmp.ne.s32.totalorder %s47, %s49
    %p56 = scmp.eq.s32.totalorder %s18, 1
    %p57 = por %p55, %p56
    %p58 = scmp.ne.s32.totalorder %s49, %s50
    %p59 = scmp.eq.s32.totalorder %s18, 0
    %p60 = por %p58, %p59
    %p61 = scmp.ne.s32.totalorder %s49, %s50
    %p62 = scmp.eq.s32.totalorder %s19, 1
    %p63 = por %p61, %p62
    %p65 = scmp.ne.s32.totalorder %s50, %s64
    %p66 = scmp.eq.s32.totalorder %s19, 0
    %p67 = por %p65, %p66
    %s69 = sadd.s32 %s68, 1
    %p72 = scmp.eq.s32.totalorder %s13, 1
    %p73 = scmp.ne.s32.totalorder %s68, %s70
    %p74 = scmp.eq.s32.totalorder %s13, 0
    %p75 = por %p73, %p74
    %p76 = scmp.ne.s32.totalorder %s68, %s70
    %p77 = scmp.eq.s32.totalorder %s18, 1
    %p78 = por %p76, %p77
    %p79 = scmp.ne.s32.totalorder %s70, %s71
    %p80 = scmp.eq.s32.totalorder %s18, 0
    %p81 = por %p79, %p80
    %p82 = scmp.ne.s32.totalorder %s70, %s71
    %p83 = scmp.eq.s32.totalorder %s19, 1
    %p84 = por %p82, %p83
    %p86 = scmp.ne.s32.totalorder %s71, %s85
    %p87 = scmp.eq.s32.totalorder %s19, 0
    %p88 = por %p86, %p87
    %s90 = sadd.s32 %s89, 1
    %p93 = scmp.eq.s32.totalorder %s13, 1
    %p94 = scmp.ne.s32.totalorder %s89, %s91
    %p95 = scmp.eq.s32.totalorder %s13, 0
    %p96 = por %p94, %p95
    %p97 = scmp.ne.s32.totalorder %s89, %s91
    %p98 = scmp.eq.s32.totalorder %s18, 1
    %p99 = por %p97, %p98
    %p100 = scmp.ne.s32.totalorder %s91, %s92
    %p101 = scmp.eq.s32.totalorder %s18, 0
    %p102 = por %p100, %p101
    %p103 = scmp.ne.s32.totalorder %s91, %s92
    %p104 = scmp.eq.s32.totalorder %s19, 1
    %p105 = por %p103, %p104
    %p107 = scmp.ne.s32.totalorder %s92, %s106
    %p108 = scmp.eq.s32.totalorder %s19, 0
    %p109 = por %p107, %p108
    %s111 = sadd.s32 %s110, 1
    %p114 = scmp.eq.s32.totalorder %s13, 1
    %p115 = scmp.ne.s32.totalorder %s110, %s112
    %p116 = scmp.eq.s32.totalorder %s13, 0
    %p117 = por %p115, %p116
    %p118 = scmp.ne.s32.totalorder %s110, %s112
    %p119 = scmp.eq.s32.totalorder %s18, 1
    %p120 = por %p118, %p119
    %p121 = scmp.ne.s32.totalorder %s112, %s113
    %p122 = scmp.eq.s32.totalorder %s18, 0
    %p123 = por %p121, %p122
    %p124 = scmp.ne.s32.totalorder %s112, %s113
    %p125 = scmp.eq.s32.totalorder %s19, 1
    %p126 = por %p124, %p125
    %p128 = scmp.ne.s32.totalorder %s113, %s127
    %p129 = scmp.eq.s32.totalorder %s19, 0
    %p130 = por %p128, %p129
    %s131 = ssub.s32 %s13, %s20
    %p132 = scmp.eq.s32.totalorder %s131, 0
    %s134 = sadd.s32 %s133, 1
    %s135 = scalar_select %p132, %s133, %s134
    %p138 = pneg %p132
    %p139 = scmp.eq.s32.totalorder %s13, 1
    %p140 = por %p138, %p139
    %p141 = scmp.ne.s32.totalorder %s133, %s136
    %p142 = scmp.eq.s32.totalorder %s13, 0
    %p143 = por %p141, %p142
    %p144 = scmp.ne.s32.totalorder %s133, %s136
    %p145 = scmp.eq.s32.totalorder %s18, 1
    %p146 = por %p144, %p145
    %p147 = scmp.ne.s32.totalorder %s136, %s137
    %p148 = scmp.eq.s32.totalorder %s18, 0
    %p149 = por %p147, %p148
    %p150 = scmp.ne.s32.totalorder %s136, %s137
    %p151 = scmp.eq.s32.totalorder %s19, 1
    %p152 = por %p150, %p151
    %p154 = scmp.ne.s32.totalorder %s137, %s153
    %p155 = scmp.eq.s32.totalorder %s19, 0
    %p156 = por %p154, %p155
    %s157 = ssub.s32 %s13, %s20
    %p158 = scmp.eq.s32.totalorder %s157, 0
    %s160 = sadd.s32 %s159, 1
    %s161 = scalar_select %p158, %s159, %s160
    %p164 = pneg %p158
    %p165 = scmp.eq.s32.totalorder %s13, 1
    %p166 = por %p164, %p165
    %p167 = scmp.ne.s32.totalorder %s159, %s162
    %p168 = scmp.eq.s32.totalorder %s13, 0
    %p169 = por %p167, %p168
    %p170 = scmp.ne.s32.totalorder %s159, %s162
    %p171 = scmp.eq.s32.totalorder %s18, 1
    %p172 = por %p170, %p171
    %p173 = scmp.ne.s32.totalorder %s162, %s163
    %p174 = scmp.eq.s32.totalorder %s18, 0
    %p175 = por %p173, %p174
    %p176 = scmp.ne.s32.totalorder %s162, %s163
    %p177 = scmp.eq.s32.totalorder %s19, 1
    %p178 = por %p176, %p177
    %p180 = scmp.ne.s32.totalorder %s163, %s179
    %p181 = scmp.eq.s32.totalorder %s19, 0
    %p182 = por %p180, %p181
    %p183 = scmp.le.s32.totalorder 1, %s13
    %p184 = scmp.lt.s32.totalorder %s13, 3
    %p185 = pnand %p183, %p184
    %p186 = pneg %p185
    // Predicated region
    $region9: #{augmented_conv_forward.1} parent=5 // pred_check
      _
    $region10: #{augmented_conv_forward.1} parent=5 // pred_check_branch
      %188 = sbr.rel (%p185) target = $region12
    $region11: #{augmented_conv_forward.1} parent=5 // pred_region
      %s189 = ssub.s32 %s13, 1
      // Predicated region
      $region13: #{augmented_conv_forward.1} parent=11 // pred_check
        %p190 = pneg %p60
      $region14: #{augmented_conv_forward.1} parent=11 // pred_check_branch
        %192 = sbr.rel (%p190) target = $region16
      $region15: #{augmented_conv_forward.1} parent=11 // pred_region
        _
      $region16: #{augmented_conv_forward.1} parent=11 // pred_fallthru
        _
      // Predicated region
      $region17: #{augmented_conv_forward.1} parent=11 // pred_check
        %p193 = pneg %p81
      $region18: #{augmented_conv_forward.1} parent=11 // pred_check_branch
        %195 = sbr.rel (%p193) target = $region20
      $region19: #{augmented_conv_forward.1} parent=11 // pred_region
        _
      $region20: #{augmented_conv_forward.1} parent=11 // pred_fallthru
        _
      // Predicated region
      $region21: #{augmented_conv_forward.1} parent=11 // pred_check
        %p196 = pneg %p102
      $region22: #{augmented_conv_forward.1} parent=11 // pred_check_branch
        %198 = sbr.rel (%p196) target = $region24
      $region23: #{augmented_conv_forward.1} parent=11 // pred_region
        _
      $region24: #{augmented_conv_forward.1} parent=11 // pred_fallthru
        _
      // Predicated region
      $region25: #{augmented_conv_forward.1} parent=11 // pred_check
        %p199 = pneg %p123
      $region26: #{augmented_conv_forward.1} parent=11 // pred_check_branch
        %201 = sbr.rel (%p199) target = $region28
      $region27: #{augmented_conv_forward.1} parent=11 // pred_region
        _
      $region28: #{augmented_conv_forward.1} parent=11 // pred_fallthru
        _
    $region12: #{augmented_conv_forward.1} parent=5 // pred_fallthru
      _
    %p202 = scmp.lt.s32.totalorder %s13, 2
    // Predicated region
    $region29: #{augmented_conv_forward.1} parent=5 // pred_check
      %p203 = pneg %p202
    $region30: #{augmented_conv_forward.1} parent=5 // pred_check_branch
      %205 = sbr.rel (%p203) target = $region32
    $region31: #{augmented_conv_forward.1} parent=5 // pred_region
      // Predicated region
      $region33: #{augmented_conv_forward.1} parent=31 // pred_check
        %p206 = pneg %p33
      $region34: #{augmented_conv_forward.1} parent=31 // pred_check_branch
        %208 = sbr.rel (%p206) target = $region36
      $region35: #{augmented_conv_forward.1} parent=31 // pred_region
        %p209 = scmp.lt.s32.totalorder %s13, 1
        %s210 = scalar_select %p209, %s13, 1
        %s211 = smul.addr %s210, 9
        %s212 = smul.addr %s211, 4
        %s213 = scalar_lea.vmem %s0, %s212
      $region36: #{augmented_conv_forward.1} parent=31 // pred_fallthru
        _
    $region32: #{augmented_conv_forward.1} parent=5 // pred_fallthru
      _
    %p214 = scmp.le.s32.totalorder 1, %s13
    %p215 = scmp.lt.s32.totalorder %s13, 3
    %p216 = pnand %p214, %p215
    %p217 = pneg %p216
    // Predicated region
    $region37: #{augmented_conv_forward.1} parent=5 // pred_check
      _
    $region38: #{augmented_conv_forward.1} parent=5 // pred_check_branch
      %219 = sbr.rel (%p216) target = $region40
    $region39: #{augmented_conv_forward.1} parent=5 // pred_region
      %s220 = ssub.s32 %s13, 1
      %p221 = scmp.lt.s32.totalorder %s18, 1
      %s222 = scalar_select %p221, %s18, 1
      %s223 = smul.addr %s222, 9
      %s224 = smul.addr %s223, 4
      %s225 = scalar_lea.vmem %s0, %s224
      %p226 = pneg %p39
      %p227 = pneg %p36
      %p228 = pneg %p60
      %p229 = pneg %p57
      %p230 = pneg %p81
      %p231 = pneg %p78
      %p232 = pneg %p102
      %p233 = pneg %p99
      %p234 = pneg %p123
      %p235 = pneg %p120
      %p236 = pneg %p149
      %p237 = pneg %p146
      %p238 = scmp.lt.s32.totalorder %s18, 1
      %s239 = scalar_select %p238, %s18, 1
      %s240 = smul.addr %s239, 2
      %s241 = smul.addr %s240, 4
      %s242 = scalar_lea.vmem %s5, %s241
      %p243 = pneg %p175
      %p244 = pneg %p172
      %p245 = scmp.lt.s32.totalorder %s18, 1
      %s246 = scalar_select %p245, %s18, 1
      %s247 = smul.addr %s246, 64
      %s248 = smul.addr %s247, 8
      %s249 = scalar_lea.vmem %s6, %s248
      %p250 = scmp.lt.s32.totalorder %s18, 1
      %s251 = scalar_select %p250, %s18, 1
      %s252 = smul.addr %s251, 9
      %s253 = smul.addr %s252, 4
      %s254 = scalar_lea.vmem %s0, %s253
      %p255 = scmp.lt.s32.totalorder %s18, 1
      %s256 = scalar_select %p255, %s18, 1
      %s257 = smul.addr %s256, 2
      %s258 = smul.addr %s257, 4
      %s259 = scalar_lea.vmem %s5, %s258
      %p260 = scmp.lt.s32.totalorder %s18, 1
      %s261 = scalar_select %p260, %s18, 1
      %s262 = smul.addr %s261, 64
      %s263 = smul.addr %s262, 8
      %s264 = scalar_lea.vmem %s6, %s263
      %v265 = vld [vmem:[%s254] sm:$0xff]
      %v266 = vld [vmem:[%s254 + $0x8] sm:$0xf]
      %s267 = scalar_lea.vmem %s254, 12
      %v268 = vld [vmem:[%s267] sm:$0xff]
      %v269 = vld [vmem:[%s267 + $0x8] sm:$0xf]
      %s270 = scalar_lea.vmem %s254, 24
      %v271 = vld [vmem:[%s270] sm:$0xff]
      %v272 = vld [vmem:[%s270 + $0x8] sm:$0xf]
      %v274 = vcombine.high %v265, %v265
      %v277 = vcombine.low %v265, %v265
      %v278 = vcombine.low %v266, %v266
      %279 = vrot.lane.b32.xlu0 %v277, 112
      %v280 = vpop.permute.xlu0 %279
      %281 = vrot.lane.b32.xlu0 %v265, 112
      %v282 = vpop.permute.xlu0 %281
      %283 = vrot.lane.b32.xlu0 %v278, 112
      %v284 = vpop.permute.xlu0 %283
      %vm285 = vcmask 916480
      %v286 = vsel %vm285, %v280, %v282
      %v287 = vsel %vm285, %v282, %v284
      %290 = vrot.lane.b32.xlu0 %v265, 96
      %v291 = vpop.permute.xlu0 %290
      %292 = vrot.lane.b32.xlu0 %v274, 96
      %v293 = vpop.permute.xlu0 %292
      %294 = vrot.lane.b32.xlu0 %v266, 96
      %v295 = vpop.permute.xlu0 %294
      %vm296 = vcmask 785408
      %v297 = vsel %vm296, %v291, %v293
      %v298 = vsel %vm296, %v293, %v295
      %v302 = vcombine.low %v268, %v268
      %v305 = vcombine.high %v268, %v268
      %306 = vrot.lane.b32.xlu0 %v268, 112
      %v307 = vpop.permute.xlu0 %306
      %308 = vrot.lane.b32.xlu0 %v305, 112
      %v309 = vpop.permute.xlu0 %308
      %310 = vrot.lane.b32.xlu0 %v269, 112
      %v311 = vpop.permute.xlu0 %310
      %v312 = vsel %vm285, %v307, %v309
      %v313 = vsel %vm285, %v309, %v311
      %v316 = vcombine.low %v269, %v269
      %317 = vrot.lane.b32.xlu0 %v302, 96
      %v318 = vpop.permute.xlu0 %317
      %319 = vrot.lane.b32.xlu0 %v268, 96
      %v320 = vpop.permute.xlu0 %319
      %321 = vrot.lane.b32.xlu0 %v316, 96
      %v322 = vpop.permute.xlu0 %321
      %v323 = vsel %vm296, %v318, %v320
      %v324 = vsel %vm296, %v320, %v322
      %v328 = vcombine.high %v271, %v271
      %v331 = vcombine.low %v271, %v271
      %v332 = vcombine.low %v272, %v272
      %333 = vrot.lane.b32.xlu0 %v331, 112
      %v334 = vpop.permute.xlu0 %333
      %335 = vrot.lane.b32.xlu0 %v271, 112
      %v336 = vpop.permute.xlu0 %335
      %337 = vrot.lane.b32.xlu0 %v332, 112
      %v338 = vpop.permute.xlu0 %337
      %v339 = vsel %vm285, %v334, %v336
      %v340 = vsel %vm285, %v336, %v338
      %343 = vrot.lane.b32.xlu0 %v271, 96
      %v344 = vpop.permute.xlu0 %343
      %345 = vrot.lane.b32.xlu0 %v328, 96
      %v346 = vpop.permute.xlu0 %345
      %347 = vrot.lane.b32.xlu0 %v272, 96
      %v348 = vpop.permute.xlu0 %347
      %v349 = vsel %vm296, %v344, %v346
      %v350 = vsel %vm296, %v346, %v348
      %vm351 = vcmask 1043456
      %v352 = vsel %vm351, %v265, %v286
      %v353 = vsel %vm351, %v274, %v287
      %v354 = vsel %vm351, %v297, %v302
      %v355 = vsel %vm351, %v298, %v268
      %v356 = vsel %vm351, %v312, %v323
      %v357 = vsel %vm351, %v313, %v324
      %v358 = vsel %vm351, %v271, %v339
      %v359 = vsel %vm351, %v328, %v340
      %v360 = vld [vmem:[%s1] sm:$0xff]
      %v361 = vld [vmem:[%s1 + $0x8] sm:$0xff]
      %v362 = vld [vmem:[%s2] sm:$0xff]
      %v363 = vld [vmem:[%s2 + $0x8] sm:$0xff]
      %365 = vset.pattern.permute.xlu0 0
      %366 = vperm.xlu0 %365, %v362
      %v367 = vpop.permute.xlu0 %366
      %370 = vset.pattern.permute.xlu0 0
      %371 = vperm.xlu0 %370, %v363
      %v372 = vpop.permute.xlu0 %371
      %vm374 = vcmask 293888
      %v376 = vsel %vm374, %v360, 0
      %v379 = vsel %vm374, %v361, 0
      %v381 = vsel %vm351, %v349, 0
      %v383 = vsel %vm351, %v350, 0
      %385 = vmatprep.subr.mxu0 0.0
      %386 = vmatpush1.msra.mxu0 0.0
      %387 = vmatprep.subr.mxu0 0.0
      %388 = vmatpush1.msra.mxu0 0.0
      %389 = vmatprep.subr.mxu0 0.0
      %390 = vmatpush1.msra.mxu0 0.0
      %391 = vmatprep.subr.mxu0 0.0
      %392 = vmatpush1.msra.mxu0 0.0
      %393 = vmatprep.subr.mxu0 0.0
      %394 = vmatpush1.msra.mxu0 0.0
      %395 = vmatprep.subr.mxu0 0.0
      %396 = vmatpush1.msra.mxu0 0.0
      %397 = vmatprep.subr.mxu0 0.0
      %398 = vmatpush1.msra.mxu0 0.0
      %399 = vmatprep.subr.mxu0 0.0
      %400 = vmatpush1.msra.mxu0 0.0
      %401 = vmatprep.subr.mxu0 0.0
      %402 = vmatpush1.msra.mxu0 0.0
      %403 = vmatprep.subr.mxu0 0.0
      %404 = vmatpush1.msra.mxu0 0.0
      %405 = vmatprep.subr.mxu0 0.0
      %406 = vmatpush1.msra.mxu0 0.0
      %407 = vmatprep.subr.mxu0 %v383
      %408 = vmatpush1.msra.mxu0 %v381
      %409 = vmatprep.subr.mxu0 %v359
      %410 = vmatpush1.msra.mxu0 %v358
      %411 = vmatprep.subr.mxu0 %v357
      %412 = vmatpush1.msra.mxu0 %v356
      %413 = vmatprep.subr.mxu0 %v355
      %414 = vmatpush1.msra.mxu0 %v354
      %415 = vmatprep.subr.mxu0 %v353
      %416 = vmatpush1.msra.mxu0 %v352
      %417 = vmatprep.subr.mxu0 0.0
      %418 = vmatpush2.msra.mxu0 0.0
      %419 = vmatprep.subr.mxu0 0.0
      %420 = vmatpush2.msra.mxu0 0.0
      %421 = vmatprep.subr.mxu0 0.0
      %422 = vmatpush2.msra.mxu0 0.0
      %423 = vmatprep.subr.mxu0 0.0
      %424 = vmatpush2.msra.mxu0 0.0
      %425 = vmatprep.subr.mxu0 0.0
      %426 = vmatpush2.msra.mxu0 0.0
      %427 = vmatprep.subr.mxu0 0.0
      %428 = vmatpush2.msra.mxu0 0.0
      %429 = vmatprep.subr.mxu0 0.0
      %430 = vmatpush2.msra.mxu0 0.0
      %431 = vmatprep.subr.mxu0 0.0
      %432 = vmatpush2.msra.mxu0 0.0
      %433 = vmatprep.subr.mxu0 0.0
      %434 = vmatpush2.msra.mxu0 0.0
      %435 = vmatprep.subr.mxu0 0.0
      %436 = vmatpush2.msra.mxu0 0.0
      %437 = vmatprep.subr.mxu0 0.0
      %438 = vmatpush2.msra.mxu0 0.0
      %439 = vmatprep.subr.mxu0 0.0
      %440 = vmatpush2.msra.mxu0 0.0
      %441 = vmatprep.subr.mxu0 0.0
      %442 = vmatpush2.msra.mxu0 0.0
      %443 = vmatprep.subr.mxu0 0.0
      %444 = vmatpush2.msra.mxu0 0.0
      %445 = vmatprep.subr.mxu0 0.0
      %446 = vmatpush2.msra.mxu0 0.0
      %447 = vmatprep.subr.mxu0 0.0
      %448 = vmatpush2.msra.mxu0 0.0
      %449 = vmatprep.mubr.f32.mxu0 0.0
      %450 = vmatmul.mubr.f32.gmra.mxu0 %v376
      %v451 = vpop.f32.mrf.mxu0
      %v452 = vadd.f32 %v367, %v451
      %v453 = vpop.f32.mrf.mxu0
      %v454 = vadd.f32 %v367, %v453
      %455 = vmatprep.mubr.f32.mxu0 0.0
      %456 = vmatmul.mubr.f32.gmra.mxu0 %v379
      %v457 = vpop.f32.mrf.mxu0
      %v458 = vadd.f32 %v372, %v457
      %v459 = vpop.f32.mrf.mxu0
      %v460 = vadd.f32 %v372, %v459
      %461 = vdwg.mxu0
      %v464 = vcombine.low %v452, %v454
      %466 = vst [vmem:[%s259] sm:$0xff] %v464
      %v467 = vld [vmem:[%s3] sm:$0x1]
      %v468 = vld [vmem:[%s3 + $0x1] sm:$0x1]
      %v469 = vld [vmem:[%s3 + $0x2] sm:$0x1]
      %v470 = vld [vmem:[%s3 + $0x3] sm:$0x1]
      %v471 = vld [vmem:[%s3 + $0x4] sm:$0x1]
      %v472 = vld [vmem:[%s3 + $0x5] sm:$0x1]
      %v473 = vld [vmem:[%s3 + $0x6] sm:$0x1]
      %v474 = vld [vmem:[%s3 + $0x7] sm:$0x1]
      %v475 = vld [vmem:[%s3 + $0x8] sm:$0x1]
      %v476 = vld [vmem:[%s3 + $0x9] sm:$0x1]
      %v477 = vld [vmem:[%s3 + $0xa] sm:$0x1]
      %v478 = vld [vmem:[%s3 + $0xb] sm:$0x1]
      %v479 = vld [vmem:[%s3 + $0xc] sm:$0x1]
      %v480 = vld [vmem:[%s3 + $0xd] sm:$0x1]
      %v481 = vld [vmem:[%s3 + $0xe] sm:$0x1]
      %v482 = vld [vmem:[%s3 + $0xf] sm:$0x1]
      %v483 = vld [vmem:[%s4] sm:$0x1]
      %v484 = vld [vmem:[%s4 + $0x1] sm:$0x1]
      %v485 = vld [vmem:[%s4 + $0x2] sm:$0x1]
      %v486 = vld [vmem:[%s4 + $0x3] sm:$0x1]
      %v491 = vlaneseq
      %v492 = vshrl.u32 %v491, 7
      %v493 = vsub.s32 0, %v492
      %v494 = vrot.slane %v483, %v493
      %v495 = vlaneseq
      %v496 = vshrl.u32 %v495, 7
      %v497 = vsub.s32 0, %v496
      %v498 = vrot.slane %v484, %v497
      %v499 = vlaneseq
      %v500 = vshrl.u32 %v499, 7
      %v501 = vsub.s32 0, %v500
      %v502 = vrot.slane %v485, %v501
      %v503 = vlaneseq
      %v504 = vshrl.u32 %v503, 7
      %v505 = vsub.s32 0, %v504
      %v506 = vrot.slane %v486, %v505
      %507 = vset.pattern.permute.xlu0 0
      %508 = vperm.xlu0 %507, %v494
      %v509 = vpop.permute.xlu0 %508
      %511 = vset.pattern.permute.xlu0 0
      %512 = vperm.xlu0 %511, %v498
      %v513 = vpop.permute.xlu0 %512
      %515 = vset.pattern.permute.xlu0 0
      %516 = vperm.xlu0 %515, %v502
      %v517 = vpop.permute.xlu0 %516
      %519 = vset.pattern.permute.xlu0 0
      %520 = vperm.xlu0 %519, %v506
      %v521 = vpop.permute.xlu0 %520
      %v523 = vadd.f32 %v509, 0.0
      %v524 = vadd.f32 %v513, 0.0
      %v525 = vadd.f32 %v517, 0.0
      %v526 = vadd.f32 %v521, 0.0
      %v527 = vrot.slane %v452, 4
      %v528 = vrot.slane %v454, 4
      %531 = vxpose.xlu0.b32.start [1/16] %v527, 128
      %532 = vxpose.xlu0.b32.cont [2/16] 0.0, 128
      %533 = vxpose.xlu0.b32.cont [3/16] 0.0, 128
      %534 = vxpose.xlu0.b32.cont [4/16] 0.0, 128
      %535 = vxpose.xlu0.b32.cont [5/16] 0.0, 128
      %536 = vxpose.xlu0.b32.cont [6/16] 0.0, 128
      %537 = vxpose.xlu0.b32.cont [7/16] 0.0, 128
      %538 = vxpose.xlu0.b32.cont [8/16] 0.0, 128
      %539 = vxpose.xlu0.b32.cont [9/16] 0.0, 128
      %540 = vxpose.xlu0.b32.cont [10/16] 0.0, 128
      %541 = vxpose.xlu0.b32.cont [11/16] 0.0, 128
      %542 = vxpose.xlu0.b32.cont [12/16] 0.0, 128
      %543 = vxpose.xlu0.b32.cont [13/16] 0.0, 128
      %544 = vxpose.xlu0.b32.cont [14/16] 0.0, 128
      %545 = vxpose.xlu0.b32.cont [15/16] 0.0, 128
      %546 = vxpose.xlu0.b32.end [16/16] 0.0, 128
      %v547 = vpop.trf.xlu0
      %v548 = vpop.trf.xlu0
      %v549 = vpop.trf.xlu0
      %v550 = vpop.trf.xlu0
      %v551 = vpop.trf.xlu0
      %v552 = vpop.trf.xlu0
      %v553 = vpop.trf.xlu0
      %v554 = vpop.trf.xlu0
      %v555 = vpop.trf.xlu0
      %v556 = vpop.trf.xlu0
      %v557 = vpop.trf.xlu0
      %v558 = vpop.trf.xlu0
      %v559 = vpop.trf.xlu0
      %v560 = vpop.trf.xlu0
      %v561 = vpop.trf.xlu0
      %v562 = vpop.trf.xlu0
      %563 = vxpose.xlu0.b32.start [1/16] %v528, 128
      %564 = vxpose.xlu0.b32.cont [2/16] 0.0, 128
      %565 = vxpose.xlu0.b32.cont [3/16] 0.0, 128
      %566 = vxpose.xlu0.b32.cont [4/16] 0.0, 128
      %567 = vxpose.xlu0.b32.cont [5/16] 0.0, 128
      %568 = vxpose.xlu0.b32.cont [6/16] 0.0, 128
      %569 = vxpose.xlu0.b32.cont [7/16] 0.0, 128
      %570 = vxpose.xlu0.b32.cont [8/16] 0.0, 128
      %571 = vxpose.xlu0.b32.cont [9/16] 0.0, 128
      %572 = vxpose.xlu0.b32.cont [10/16] 0.0, 128
      %573 = vxpose.xlu0.b32.cont [11/16] 0.0, 128
      %574 = vxpose.xlu0.b32.cont [12/16] 0.0, 128
      %575 = vxpose.xlu0.b32.cont [13/16] 0.0, 128
      %576 = vxpose.xlu0.b32.cont [14/16] 0.0, 128
      %577 = vxpose.xlu0.b32.cont [15/16] 0.0, 128
      %578 = vxpose.xlu0.b32.end [16/16] 0.0, 128
      %v579 = vpop.trf.xlu0
      %v580 = vpop.trf.xlu0
      %v581 = vpop.trf.xlu0
      %v582 = vpop.trf.xlu0
      %v583 = vpop.trf.xlu0
      %v584 = vpop.trf.xlu0
      %v585 = vpop.trf.xlu0
      %v586 = vpop.trf.xlu0
      %v587 = vpop.trf.xlu0
      %v588 = vpop.trf.xlu0
      %v589 = vpop.trf.xlu0
      %v590 = vpop.trf.xlu0
      %v591 = vpop.trf.xlu0
      %v592 = vpop.trf.xlu0
      %v593 = vpop.trf.xlu0
      %v594 = vpop.trf.xlu0
      %vm595 = vcmask 15360
      %v597 = vsel %vm595, %v547, 0
      %v600 = vsel %vm595, %v548, 0
      %v603 = vsel %vm595, %v549, 0
      %v606 = vsel %vm595, %v550, 0
      %v609 = vsel %vm595, %v551, 0
      %v612 = vsel %vm595, %v552, 0
      %v615 = vsel %vm595, %v553, 0
      %v618 = vsel %vm595, %v554, 0
      %v621 = vsel %vm595, %v555, 0
      %v624 = vsel %vm595, %v556, 0
      %v627 = vsel %vm595, %v557, 0
      %v630 = vsel %vm595, %v558, 0
      %v633 = vsel %vm595, %v559, 0
      %v636 = vsel %vm595, %v560, 0
      %v639 = vsel %vm595, %v561, 0
      %v642 = vsel %vm595, %v562, 0
      %v645 = vsel %vm595, %v579, 0
      %v648 = vsel %vm595, %v580, 0
      %v651 = vsel %vm595, %v581, 0
      %v654 = vsel %vm595, %v582, 0
      %v657 = vsel %vm595, %v583, 0
      %v660 = vsel %vm595, %v584, 0
      %v663 = vsel %vm595, %v585, 0
      %v666 = vsel %vm595, %v586, 0
      %v669 = vsel %vm595, %v587, 0
      %v672 = vsel %vm595, %v588, 0
      %v675 = vsel %vm595, %v589, 0
      %v678 = vsel %vm595, %v590, 0
      %v681 = vsel %vm595, %v591, 0
      %v684 = vsel %vm595, %v592, 0
      %v687 = vsel %vm595, %v593, 0
      %v690 = vsel %vm595, %v594, 0
      %vm692 = vcmask 1041408
      %v694 = vsel %vm692, %v458, 0
      %v697 = vsel %vm692, %v460, 0
      %699 = vmatprep.subr.mxu0 0.0
      %700 = vmatpush1.msra.mxu0 0.0
      %701 = vmatprep.subr.mxu0 0.0
      %702 = vmatpush1.msra.mxu0 0.0
      %703 = vmatprep.subr.mxu0 0.0
      %704 = vmatpush1.msra.mxu0 0.0
      %705 = vmatprep.subr.mxu0 0.0
      %706 = vmatpush1.msra.mxu0 0.0
      %707 = vmatprep.subr.mxu0 0.0
      %708 = vmatpush1.msra.mxu0 0.0
      %709 = vmatprep.subr.mxu0 0.0
      %710 = vmatpush1.msra.mxu0 0.0
      %711 = vmatprep.subr.mxu0 0.0
      %712 = vmatpush1.msra.mxu0 0.0
      %713 = vmatprep.subr.mxu0 0.0
      %714 = vmatpush1.msra.mxu0 0.0
      %715 = vmatprep.subr.mxu0 0.0
      %716 = vmatpush1.msra.mxu0 0.0
      %717 = vmatprep.subr.mxu0 0.0
      %718 = vmatpush1.msra.mxu0 0.0
      %719 = vmatprep.subr.mxu0 0.0
      %720 = vmatpush1.msra.mxu0 0.0
      %721 = vmatprep.subr.mxu0 0.0
      %722 = vmatpush1.msra.mxu0 0.0
      %723 = vmatprep.subr.mxu0 0.0
      %724 = vmatpush1.msra.mxu0 0.0
      %725 = vmatprep.subr.mxu0 0.0
      %726 = vmatpush1.msra.mxu0 0.0
      %727 = vmatprep.subr.mxu0 0.0
      %728 = vmatpush1.msra.mxu0 0.0
      %729 = vmatprep.subr.mxu0 %v697
      %730 = vmatpush1.msra.mxu0 %v694
      %731 = vmatprep.subr.mxu0 0.0
      %732 = vmatpush2.msra.mxu0 0.0
      %733 = vmatprep.subr.mxu0 0.0
      %734 = vmatpush2.msra.mxu0 0.0
      %735 = vmatprep.subr.mxu0 0.0
      %736 = vmatpush2.msra.mxu0 0.0
      %737 = vmatprep.subr.mxu0 0.0
      %738 = vmatpush2.msra.mxu0 0.0
      %739 = vmatprep.subr.mxu0 0.0
      %740 = vmatpush2.msra.mxu0 0.0
      %741 = vmatprep.subr.mxu0 0.0
      %742 = vmatpush2.msra.mxu0 0.0
      %743 = vmatprep.subr.mxu0 0.0
      %744 = vmatpush2.msra.mxu0 0.0
      %745 = vmatprep.subr.mxu0 0.0
      %746 = vmatpush2.msra.mxu0 0.0
      %747 = vmatprep.subr.mxu0 0.0
      %748 = vmatpush2.msra.mxu0 0.0
      %749 = vmatprep.subr.mxu0 0.0
      %750 = vmatpush2.msra.mxu0 0.0
      %751 = vmatprep.subr.mxu0 0.0
      %752 = vmatpush2.msra.mxu0 0.0
      %753 = vmatprep.subr.mxu0 0.0
      %754 = vmatpush2.msra.mxu0 0.0
      %755 = vmatprep.subr.mxu0 0.0
      %756 = vmatpush2.msra.mxu0 0.0
      %757 = vmatprep.subr.mxu0 0.0
      %758 = vmatpush2.msra.mxu0 0.0
      %759 = vmatprep.subr.mxu0 0.0
      %760 = vmatpush2.msra.mxu0 0.0
      %761 = vmatprep.subr.mxu0 0.0
      %762 = vmatpush2.msra.mxu0 0.0
      %763 = vmatprep.mubr.f32.mxu0 0.0
      %764 = vmatmul.mubr.f32.gmra.mxu0 %v597
      %v765 = vpop.f32.mrf.mxu0
      %v766 = vadd.f32 0.0, %v765
      %v767 = vpop.f32.mrf.mxu0
      %v768 = vadd.f32 0.0, %v767
      %769 = vmatprep.mubr.f32.mxu0 0.0
      %770 = vmatmul.mubr.f32.gmra.mxu0 %v600
      %v771 = vpop.f32.mrf.mxu0
      %v772 = vadd.f32 0.0, %v771
      %v773 = vpop.f32.mrf.mxu0
      %v774 = vadd.f32 0.0, %v773
      %775 = vmatprep.mubr.f32.mxu0 0.0
      %776 = vmatmul.mubr.f32.gmra.mxu0 %v603
      %v777 = vpop.f32.mrf.mxu0
      %v778 = vadd.f32 0.0, %v777
      %v779 = vpop.f32.mrf.mxu0
      %v780 = vadd.f32 0.0, %v779
      %781 = vmatprep.mubr.f32.mxu0 0.0
      %782 = vmatmul.mubr.f32.gmra.mxu0 %v606
      %v783 = vpop.f32.mrf.mxu0
      %v784 = vadd.f32 0.0, %v783
      %v785 = vpop.f32.mrf.mxu0
      %v786 = vadd.f32 0.0, %v785
      %787 = vmatprep.mubr.f32.mxu0 0.0
      %788 = vmatmul.mubr.f32.gmra.mxu0 %v609
      %v789 = vpop.f32.mrf.mxu0
      %v790 = vadd.f32 0.0, %v789
      %v791 = vpop.f32.mrf.mxu0
      %v792 = vadd.f32 0.0, %v791
      %793 = vmatprep.mubr.f32.mxu0 0.0
      %794 = vmatmul.mubr.f32.gmra.mxu0 %v612
      %v795 = vpop.f32.mrf.mxu0
      %v796 = vadd.f32 0.0, %v795
      %v797 = vpop.f32.mrf.mxu0
      %v798 = vadd.f32 0.0, %v797
      %799 = vmatprep.mubr.f32.mxu0 0.0
      %800 = vmatmul.mubr.f32.gmra.mxu0 %v615
      %v801 = vpop.f32.mrf.mxu0
      %v802 = vadd.f32 0.0, %v801
      %v803 = vpop.f32.mrf.mxu0
      %v804 = vadd.f32 0.0, %v803
      %805 = vmatprep.mubr.f32.mxu0 0.0
      %806 = vmatmul.mubr.f32.gmra.mxu0 %v618
      %v807 = vpop.f32.mrf.mxu0
      %v808 = vadd.f32 0.0, %v807
      %v809 = vpop.f32.mrf.mxu0
      %v810 = vadd.f32 0.0, %v809
      %811 = vmatprep.mubr.f32.mxu0 0.0
      %812 = vmatmul.mubr.f32.gmra.mxu0 %v621
      %v813 = vpop.f32.mrf.mxu0
      %v814 = vadd.f32 0.0, %v813
      %v815 = vpop.f32.mrf.mxu0
      %v816 = vadd.f32 0.0, %v815
      %817 = vmatprep.mubr.f32.mxu0 0.0
      %818 = vmatmul.mubr.f32.gmra.mxu0 %v624
      %v819 = vpop.f32.mrf.mxu0
      %v820 = vadd.f32 0.0, %v819
      %v821 = vpop.f32.mrf.mxu0
      %v822 = vadd.f32 0.0, %v821
      %823 = vmatprep.mubr.f32.mxu0 0.0
      %824 = vmatmul.mubr.f32.gmra.mxu0 %v627
      %v825 = vpop.f32.mrf.mxu0
      %v826 = vadd.f32 0.0, %v825
      %v827 = vpop.f32.mrf.mxu0
      %v828 = vadd.f32 0.0, %v827
      %829 = vmatprep.mubr.f32.mxu0 0.0
      %830 = vmatmul.mubr.f32.gmra.mxu0 %v630
      %v831 = vpop.f32.mrf.mxu0
      %v832 = vadd.f32 0.0, %v831
      %v833 = vpop.f32.mrf.mxu0
      %v834 = vadd.f32 0.0, %v833
      %835 = vmatprep.mubr.f32.mxu0 0.0
      %836 = vmatmul.mubr.f32.gmra.mxu0 %v633
      %v837 = vpop.f32.mrf.mxu0
      %v838 = vadd.f32 0.0, %v837
      %v839 = vpop.f32.mrf.mxu0
      %v840 = vadd.f32 0.0, %v839
      %841 = vmatprep.mubr.f32.mxu0 0.0
      %842 = vmatmul.mubr.f32.gmra.mxu0 %v636
      %v843 = vpop.f32.mrf.mxu0
      %v844 = vadd.f32 0.0, %v843
      %v845 = vpop.f32.mrf.mxu0
      %v846 = vadd.f32 0.0, %v845
      %847 = vmatprep.mubr.f32.mxu0 0.0
      %848 = vmatmul.mubr.f32.gmra.mxu0 %v639
      %v849 = vpop.f32.mrf.mxu0
      %v850 = vadd.f32 0.0, %v849
      %v851 = vpop.f32.mrf.mxu0
      %v852 = vadd.f32 0.0, %v851
      %853 = vmatprep.mubr.f32.mxu0 0.0
      %854 = vmatmul.mubr.f32.gmra.mxu0 %v642
      %v855 = vpop.f32.mrf.mxu0
      %v856 = vadd.f32 0.0, %v855
      %v857 = vpop.f32.mrf.mxu0
      %v858 = vadd.f32 0.0, %v857
      %859 = vmatprep.mubr.f32.mxu0 0.0
      %860 = vmatmul.mubr.f32.gmra.mxu0 %v645
      %v861 = vpop.f32.mrf.mxu0
      %v862 = vadd.f32 0.0, %v861
      %v863 = vpop.f32.mrf.mxu0
      %v864 = vadd.f32 0.0, %v863
      %865 = vmatprep.mubr.f32.mxu0 0.0
      %866 = vmatmul.mubr.f32.gmra.mxu0 %v648
      %v867 = vpop.f32.mrf.mxu0
      %v868 = vadd.f32 0.0, %v867
      %v869 = vpop.f32.mrf.mxu0
      %v870 = vadd.f32 0.0, %v869
      %871 = vmatprep.mubr.f32.mxu0 0.0
      %872 = vmatmul.mubr.f32.gmra.mxu0 %v651
      %v873 = vpop.f32.mrf.mxu0
      %v874 = vadd.f32 0.0, %v873
      %v875 = vpop.f32.mrf.mxu0
      %v876 = vadd.f32 0.0, %v875
      %877 = vmatprep.mubr.f32.mxu0 0.0
      %878 = vmatmul.mubr.f32.gmra.mxu0 %v654
      %v879 = vpop.f32.mrf.mxu0
      %v880 = vadd.f32 0.0, %v879
      %v881 = vpop.f32.mrf.mxu0
      %v882 = vadd.f32 0.0, %v881
      %883 = vmatprep.mubr.f32.mxu0 0.0
      %884 = vmatmul.mubr.f32.gmra.mxu0 %v657
      %v885 = vpop.f32.mrf.mxu0
      %v886 = vadd.f32 0.0, %v885
      %v887 = vpop.f32.mrf.mxu0
      %v888 = vadd.f32 0.0, %v887
      %889 = vmatprep.mubr.f32.mxu0 0.0
      %890 = vmatmul.mubr.f32.gmra.mxu0 %v660
      %v891 = vpop.f32.mrf.mxu0
      %v892 = vadd.f32 0.0, %v891
      %v893 = vpop.f32.mrf.mxu0
      %v894 = vadd.f32 0.0, %v893
      %895 = vmatprep.mubr.f32.mxu0 0.0
      %896 = vmatmul.mubr.f32.gmra.mxu0 %v663
      %v897 = vpop.f32.mrf.mxu0
      %v898 = vadd.f32 0.0, %v897
      %v899 = vpop.f32.mrf.mxu0
      %v900 = vadd.f32 0.0, %v899
      %901 = vmatprep.mubr.f32.mxu0 0.0
      %902 = vmatmul.mubr.f32.gmra.mxu0 %v666
      %v903 = vpop.f32.mrf.mxu0
      %v904 = vadd.f32 0.0, %v903
      %v905 = vpop.f32.mrf.mxu0
      %v906 = vadd.f32 0.0, %v905
      %907 = vmatprep.mubr.f32.mxu0 0.0
      %908 = vmatmul.mubr.f32.gmra.mxu0 %v669
      %v909 = vpop.f32.mrf.mxu0
      %v910 = vadd.f32 0.0, %v909
      %v911 = vpop.f32.mrf.mxu0
      %v912 = vadd.f32 0.0, %v911
      %913 = vmatprep.mubr.f32.mxu0 0.0
      %914 = vmatmul.mubr.f32.gmra.mxu0 %v672
      %v915 = vpop.f32.mrf.mxu0
      %v916 = vadd.f32 0.0, %v915
      %v917 = vpop.f32.mrf.mxu0
      %v918 = vadd.f32 0.0, %v917
      %919 = vmatprep.mubr.f32.mxu0 0.0
      %920 = vmatmul.mubr.f32.gmra.mxu0 %v675
      %v921 = vpop.f32.mrf.mxu0
      %v922 = vadd.f32 0.0, %v921
      %v923 = vpop.f32.mrf.mxu0
      %v924 = vadd.f32 0.0, %v923
      %925 = vmatprep.mubr.f32.mxu0 0.0
      %926 = vmatmul.mubr.f32.gmra.mxu0 %v678
      %v927 = vpop.f32.mrf.mxu0
      %v928 = vadd.f32 0.0, %v927
      %v929 = vpop.f32.mrf.mxu0
      %v930 = vadd.f32 0.0, %v929
      %931 = vmatprep.mubr.f32.mxu0 0.0
      %932 = vmatmul.mubr.f32.gmra.mxu0 %v681
      %v933 = vpop.f32.mrf.mxu0
      %v934 = vadd.f32 0.0, %v933
      %v935 = vpop.f32.mrf.mxu0
      %v936 = vadd.f32 0.0, %v935
      %937 = vmatprep.mubr.f32.mxu0 0.0
      %938 = vmatmul.mubr.f32.gmra.mxu0 %v684
      %v939 = vpop.f32.mrf.mxu0
      %v940 = vadd.f32 0.0, %v939
      %v941 = vpop.f32.mrf.mxu0
      %v942 = vadd.f32 0.0, %v941
      %943 = vmatprep.mubr.f32.mxu0 0.0
      %944 = vmatmul.mubr.f32.gmra.mxu0 %v687
      %v945 = vpop.f32.mrf.mxu0
      %v946 = vadd.f32 0.0, %v945
      %v947 = vpop.f32.mrf.mxu0
      %v948 = vadd.f32 0.0, %v947
      %949 = vmatprep.mubr.f32.mxu0 0.0
      %950 = vmatmul.mubr.f32.gmra.mxu0 %v690
      %v951 = vpop.f32.mrf.mxu0
      %v952 = vadd.f32 0.0, %v951
      %v953 = vpop.f32.mrf.mxu0
      %v954 = vadd.f32 0.0, %v953
      %955 = vdwg.mxu0
      %v956 = vmax.f32 %v766, %v768
      %957 = vmax.xlane.f32.xlu0 %v956
      %v958 = vpop.xlane.xlu0 %957
      %v959 = vmax.f32 %v772, %v774
      %960 = vmax.xlane.f32.xlu0 %v959
      %v961 = vpop.xlane.xlu0 %960
      %v962 = vmax.f32 %v778, %v780
      %963 = vmax.xlane.f32.xlu0 %v962
      %v964 = vpop.xlane.xlu0 %963
      %v965 = vmax.f32 %v784, %v786
      %966 = vmax.xlane.f32.xlu0 %v965
      %v967 = vpop.xlane.xlu0 %966
      %v968 = vmax.f32 %v790, %v792
      %969 = vmax.xlane.f32.xlu0 %v968
      %v970 = vpop.xlane.xlu0 %969
      %v971 = vmax.f32 %v796, %v798
      %972 = vmax.xlane.f32.xlu0 %v971
      %v973 = vpop.xlane.xlu0 %972
      %v974 = vmax.f32 %v802, %v804
      %975 = vmax.xlane.f32.xlu0 %v974
      %v976 = vpop.xlane.xlu0 %975
      %v977 = vmax.f32 %v808, %v810
      %978 = vmax.xlane.f32.xlu0 %v977
      %v979 = vpop.xlane.xlu0 %978
      %v980 = vmax.f32 %v814, %v816
      %981 = vmax.xlane.f32.xlu0 %v980
      %v982 = vpop.xlane.xlu0 %981
      %v983 = vmax.f32 %v820, %v822
      %984 = vmax.xlane.f32.xlu0 %v983
      %v985 = vpop.xlane.xlu0 %984
      %v986 = vmax.f32 %v826, %v828
      %987 = vmax.xlane.f32.xlu0 %v986
      %v988 = vpop.xlane.xlu0 %987
      %v989 = vmax.f32 %v832, %v834
      %990 = vmax.xlane.f32.xlu0 %v989
      %v991 = vpop.xlane.xlu0 %990
      %v992 = vmax.f32 %v838, %v840
      %993 = vmax.xlane.f32.xlu0 %v992
      %v994 = vpop.xlane.xlu0 %993
      %v995 = vmax.f32 %v844, %v846
      %996 = vmax.xlane.f32.xlu0 %v995
      %v997 = vpop.xlane.xlu0 %996
      %v998 = vmax.f32 %v850, %v852
      %999 = vmax.xlane.f32.xlu0 %v998
      %v1000 = vpop.xlane.xlu0 %999
      %v1001 = vmax.f32 %v856, %v858
      %1002 = vmax.xlane.f32.xlu0 %v1001
      %v1003 = vpop.xlane.xlu0 %1002
      %v1004 = vmax.f32 %v862, %v864
      %1005 = vmax.xlane.f32.xlu0 %v1004
      %v1006 = vpop.xlane.xlu0 %1005
      %v1007 = vmax.f32 %v868, %v870
      %1008 = vmax.xlane.f32.xlu0 %v1007
      %v1009 = vpop.xlane.xlu0 %1008
      %v1010 = vmax.f32 %v874, %v876
      %1011 = vmax.xlane.f32.xlu0 %v1010
      %v1012 = vpop.xlane.xlu0 %1011
      %v1013 = vmax.f32 %v880, %v882
      %1014 = vmax.xlane.f32.xlu0 %v1013
      %v1015 = vpop.xlane.xlu0 %1014
      %v1016 = vmax.f32 %v886, %v888
      %1017 = vmax.xlane.f32.xlu0 %v1016
      %v1018 = vpop.xlane.xlu0 %1017
      %v1019 = vmax.f32 %v892, %v894
      %1020 = vmax.xlane.f32.xlu0 %v1019
      %v1021 = vpop.xlane.xlu0 %1020
      %v1022 = vmax.f32 %v898, %v900
      %1023 = vmax.xlane.f32.xlu0 %v1022
      %v1024 = vpop.xlane.xlu0 %1023
      %v1025 = vmax.f32 %v904, %v906
      %1026 = vmax.xlane.f32.xlu0 %v1025
      %v1027 = vpop.xlane.xlu0 %1026
      %v1028 = vmax.f32 %v910, %v912
      %1029 = vmax.xlane.f32.xlu0 %v1028
      %v1030 = vpop.xlane.xlu0 %1029
      %v1031 = vmax.f32 %v916, %v918
      %1032 = vmax.xlane.f32.xlu0 %v1031
      %v1033 = vpop.xlane.xlu0 %1032
      %v1034 = vmax.f32 %v922, %v924
      %1035 = vmax.xlane.f32.xlu0 %v1034
      %v1036 = vpop.xlane.xlu0 %1035
      %v1037 = vmax.f32 %v928, %v930
      %1038 = vmax.xlane.f32.xlu0 %v1037
      %v1039 = vpop.xlane.xlu0 %1038
      %v1040 = vmax.f32 %v934, %v936
      %1041 = vmax.xlane.f32.xlu0 %v1040
      %v1042 = vpop.xlane.xlu0 %1041
      %v1043 = vmax.f32 %v940, %v942
      %1044 = vmax.xlane.f32.xlu0 %v1043
      %v1045 = vpop.xlane.xlu0 %1044
      %v1046 = vmax.f32 %v946, %v948
      %1047 = vmax.xlane.f32.xlu0 %v1046
      %v1048 = vpop.xlane.xlu0 %1047
      %v1049 = vmax.f32 %v952, %v954
      %1050 = vmax.xlane.f32.xlu0 %v1049
      %v1051 = vpop.xlane.xlu0 %1050
      %v1052 = vsub.f32 %v766, %v958
      %v1053 = vsub.f32 %v768, %v958
      %v1054 = vsub.f32 %v772, %v961
      %v1055 = vsub.f32 %v774, %v961
      %v1056 = vsub.f32 %v778, %v964
      %v1057 = vsub.f32 %v780, %v964
      %v1058 = vsub.f32 %v784, %v967
      %v1059 = vsub.f32 %v786, %v967
      %v1060 = vsub.f32 %v790, %v970
      %v1061 = vsub.f32 %v792, %v970
      %v1062 = vsub.f32 %v796, %v973
      %v1063 = vsub.f32 %v798, %v973
      %v1064 = vsub.f32 %v802, %v976
      %v1065 = vsub.f32 %v804, %v976
      %v1066 = vsub.f32 %v808, %v979
      %v1067 = vsub.f32 %v810, %v979
      %v1068 = vsub.f32 %v814, %v982
      %v1069 = vsub.f32 %v816, %v982
      %v1070 = vsub.f32 %v820, %v985
      %v1071 = vsub.f32 %v822, %v985
      %v1072 = vsub.f32 %v826, %v988
      %v1073 = vsub.f32 %v828, %v988
      %v1074 = vsub.f32 %v832, %v991
      %v1075 = vsub.f32 %v834, %v991
      %v1076 = vsub.f32 %v838, %v994
      %v1077 = vsub.f32 %v840, %v994
      %v1078 = vsub.f32 %v844, %v997
      %v1079 = vsub.f32 %v846, %v997
      %v1080 = vsub.f32 %v850, %v1000
      %v1081 = vsub.f32 %v852, %v1000
      %v1082 = vsub.f32 %v856, %v1003
      %v1083 = vsub.f32 %v858, %v1003
      %v1084 = vsub.f32 %v862, %v1006
      %v1085 = vsub.f32 %v864, %v1006
      %v1086 = vsub.f32 %v868, %v1009
      %v1087 = vsub.f32 %v870, %v1009
      %v1088 = vsub.f32 %v874, %v1012
      %v1089 = vsub.f32 %v876, %v1012
      %v1090 = vsub.f32 %v880, %v1015
      %v1091 = vsub.f32 %v882, %v1015
      %v1092 = vsub.f32 %v886, %v1018
      %v1093 = vsub.f32 %v888, %v1018
      %v1094 = vsub.f32 %v892, %v1021
      %v1095 = vsub.f32 %v894, %v1021
      %v1096 = vsub.f32 %v898, %v1024
      %v1097 = vsub.f32 %v900, %v1024
      %v1098 = vsub.f32 %v904, %v1027
      %v1099 = vsub.f32 %v906, %v1027
      %v1100 = vsub.f32 %v910, %v1030
      %v1101 = vsub.f32 %v912, %v1030
      %v1102 = vsub.f32 %v916, %v1033
      %v1103 = vsub.f32 %v918, %v1033
      %v1104 = vsub.f32 %v922, %v1036
      %v1105 = vsub.f32 %v924, %v1036
      %v1106 = vsub.f32 %v928, %v1039
      %v1107 = vsub.f32 %v930, %v1039
      %v1108 = vsub.f32 %v934, %v1042
      %v1109 = vsub.f32 %v936, %v1042
      %v1110 = vsub.f32 %v940, %v1045
      %v1111 = vsub.f32 %v942, %v1045
      %v1112 = vsub.f32 %v946, %v1048
      %v1113 = vsub.f32 %v948, %v1048
      %v1114 = vsub.f32 %v952, %v1051
      %v1115 = vsub.f32 %v954, %v1051
      %v1116 = vmul.f32 %v1052, 1.442695
      %v1117 = vpow.pop %v1116
      %v1118 = vmul.f32 %v1053, 1.442695
      %v1119 = vpow.pop %v1118
      %v1120 = vmul.f32 %v1054, 1.442695
      %v1121 = vpow.pop %v1120
      %v1122 = vmul.f32 %v1055, 1.442695
      %v1123 = vpow.pop %v1122
      %v1124 = vmul.f32 %v1056, 1.442695
      %v1125 = vpow.pop %v1124
      %v1126 = vmul.f32 %v1057, 1.442695
      %v1127 = vpow.pop %v1126
      %v1128 = vmul.f32 %v1058, 1.442695
      %v1129 = vpow.pop %v1128
      %v1130 = vmul.f32 %v1059, 1.442695
      %v1131 = vpow.pop %v1130
      %v1132 = vmul.f32 %v1060, 1.442695
      %v1133 = vpow.pop %v1132
      %v1134 = vmul.f32 %v1061, 1.442695
      %v1135 = vpow.pop %v1134
      %v1136 = vmul.f32 %v1062, 1.442695
      %v1137 = vpow.pop %v1136
      %v1138 = vmul.f32 %v1063, 1.442695
      %v1139 = vpow.pop %v1138
      %v1140 = vmul.f32 %v1064, 1.442695
      %v1141 = vpow.pop %v1140
      %v1142 = vmul.f32 %v1065, 1.442695
      %v1143 = vpow.pop %v1142
      %v1144 = vmul.f32 %v1066, 1.442695
      %v1145 = vpow.pop %v1144
      %v1146 = vmul.f32 %v1067, 1.442695
      %v1147 = vpow.pop %v1146
      %v1148 = vmul.f32 %v1068, 1.442695
      %v1149 = vpow.pop %v1148
      %v1150 = vmul.f32 %v1069, 1.442695
      %v1151 = vpow.pop %v1150
      %v1152 = vmul.f32 %v1070, 1.442695
      %v1153 = vpow.pop %v1152
      %v1154 = vmul.f32 %v1071, 1.442695
      %v1155 = vpow.pop %v1154
      %v1156 = vmul.f32 %v1072, 1.442695
      %v1157 = vpow.pop %v1156
      %v1158 = vmul.f32 %v1073, 1.442695
      %v1159 = vpow.pop %v1158
      %v1160 = vmul.f32 %v1074, 1.442695
      %v1161 = vpow.pop %v1160
      %v1162 = vmul.f32 %v1075, 1.442695
      %v1163 = vpow.pop %v1162
      %v1164 = vmul.f32 %v1076, 1.442695
      %v1165 = vpow.pop %v1164
      %v1166 = vmul.f32 %v1077, 1.442695
      %v1167 = vpow.pop %v1166
      %v1168 = vmul.f32 %v1078, 1.442695
      %v1169 = vpow.pop %v1168
      %v1170 = vmul.f32 %v1079, 1.442695
      %v1171 = vpow.pop %v1170
      %v1172 = vmul.f32 %v1080, 1.442695
      %v1173 = vpow.pop %v1172
      %v1174 = vmul.f32 %v1081, 1.442695
      %v1175 = vpow.pop %v1174
      %v1176 = vmul.f32 %v1082, 1.442695
      %v1177 = vpow.pop %v1176
      %v1178 = vmul.f32 %v1083, 1.442695
      %v1179 = vpow.pop %v1178
      %v1180 = vmul.f32 %v1084, 1.442695
      %v1181 = vpow.pop %v1180
      %v1182 = vmul.f32 %v1085, 1.442695
      %v1183 = vpow.pop %v1182
      %v1184 = vmul.f32 %v1086, 1.442695
      %v1185 = vpow.pop %v1184
      %v1186 = vmul.f32 %v1087, 1.442695
      %v1187 = vpow.pop %v1186
      %v1188 = vmul.f32 %v1088, 1.442695
      %v1189 = vpow.pop %v1188
      %v1190 = vmul.f32 %v1089, 1.442695
      %v1191 = vpow.pop %v1190
      %v1192 = vmul.f32 %v1090, 1.442695
      %v1193 = vpow.pop %v1192
      %v1194 = vmul.f32 %v1091, 1.442695
      %v1195 = vpow.pop %v1194
      %v1196 = vmul.f32 %v1092, 1.442695
      %v1197 = vpow.pop %v1196
      %v1198 = vmul.f32 %v1093, 1.442695
      %v1199 = vpow.pop %v1198
      %v1200 = vmul.f32 %v1094, 1.442695
      %v1201 = vpow.pop %v1200
      %v1202 = vmul.f32 %v1095, 1.442695
      %v1203 = vpow.pop %v1202
      %v1204 = vmul.f32 %v1096, 1.442695
      %v1205 = vpow.pop %v1204
      %v1206 = vmul.f32 %v1097, 1.442695
      %v1207 = vpow.pop %v1206
      %v1208 = vmul.f32 %v1098, 1.442695
      %v1209 = vpow.pop %v1208
      %v1210 = vmul.f32 %v1099, 1.442695
      %v1211 = vpow.pop %v1210
      %v1212 = vmul.f32 %v1100, 1.442695
      %v1213 = vpow.pop %v1212
      %v1214 = vmul.f32 %v1101, 1.442695
      %v1215 = vpow.pop %v1214
      %v1216 = vmul.f32 %v1102, 1.442695
      %v1217 = vpow.pop %v1216
      %v1218 = vmul.f32 %v1103, 1.442695
      %v1219 = vpow.pop %v1218
      %v1220 = vmul.f32 %v1104, 1.442695
      %v1221 = vpow.pop %v1220
      %v1222 = vmul.f32 %v1105, 1.442695
      %v1223 = vpow.pop %v1222
      %v1224 = vmul.f32 %v1106, 1.442695
      %v1225 = vpow.pop %v1224
      %v1226 = vmul.f32 %v1107, 1.442695
      %v1227 = vpow.pop %v1226
      %v1228 = vmul.f32 %v1108, 1.442695
      %v1229 = vpow.pop %v1228
      %v1230 = vmul.f32 %v1109, 1.442695
      %v1231 = vpow.pop %v1230
      %v1232 = vmul.f32 %v1110, 1.442695
      %v1233 = vpow.pop %v1232
      %v1234 = vmul.f32 %v1111, 1.442695
      %v1235 = vpow.pop %v1234
      %v1236 = vmul.f32 %v1112, 1.442695
      %v1237 = vpow.pop %v1236
      %v1238 = vmul.f32 %v1113, 1.442695
      %v1239 = vpow.pop %v1238
      %v1240 = vmul.f32 %v1114, 1.442695
      %v1241 = vpow.pop %v1240
      %v1242 = vmul.f32 %v1115, 1.442695
      %v1243 = vpow.pop %v1242
      %v1244 = vadd.f32 %v1117, %v1119
      %1245 = vadd.xlane.f32.xlu0 %v1244
      %v1246 = vpop.xlane.xlu0 %1245
      %v1247 = vadd.f32 %v1121, %v1123
      %1248 = vadd.xlane.f32.xlu0 %v1247
      %v1249 = vpop.xlane.xlu0 %1248
      %v1250 = vadd.f32 %v1125, %v1127
      %1251 = vadd.xlane.f32.xlu0 %v1250
      %v1252 = vpop.xlane.xlu0 %1251
      %v1253 = vadd.f32 %v1129, %v1131
      %1254 = vadd.xlane.f32.xlu0 %v1253
      %v1255 = vpop.xlane.xlu0 %1254
      %v1256 = vadd.f32 %v1133, %v1135
      %1257 = vadd.xlane.f32.xlu0 %v1256
      %v1258 = vpop.xlane.xlu0 %1257
      %v1259 = vadd.f32 %v1137, %v1139
      %1260 = vadd.xlane.f32.xlu0 %v1259
      %v1261 = vpop.xlane.xlu0 %1260
      %v1262 = vadd.f32 %v1141, %v1143
      %1263 = vadd.xlane.f32.xlu0 %v1262
      %v1264 = vpop.xlane.xlu0 %1263
      %v1265 = vadd.f32 %v1145, %v1147
      %1266 = vadd.xlane.f32.xlu0 %v1265
      %v1267 = vpop.xlane.xlu0 %1266
      %v1268 = vadd.f32 %v1149, %v1151
      %1269 = vadd.xlane.f32.xlu0 %v1268
      %v1270 = vpop.xlane.xlu0 %1269
      %v1271 = vadd.f32 %v1153, %v1155
      %1272 = vadd.xlane.f32.xlu0 %v1271
      %v1273 = vpop.xlane.xlu0 %1272
      %v1274 = vadd.f32 %v1157, %v1159
      %1275 = vadd.xlane.f32.xlu0 %v1274
      %v1276 = vpop.xlane.xlu0 %1275
      %v1277 = vadd.f32 %v1161, %v1163
      %1278 = vadd.xlane.f32.xlu0 %v1277
      %v1279 = vpop.xlane.xlu0 %1278
      %v1280 = vadd.f32 %v1165, %v1167
      %1281 = vadd.xlane.f32.xlu0 %v1280
      %v1282 = vpop.xlane.xlu0 %1281
      %v1283 = vadd.f32 %v1169, %v1171
      %1284 = vadd.xlane.f32.xlu0 %v1283
      %v1285 = vpop.xlane.xlu0 %1284
      %v1286 = vadd.f32 %v1173, %v1175
      %1287 = vadd.xlane.f32.xlu0 %v1286
      %v1288 = vpop.xlane.xlu0 %1287
      %v1289 = vadd.f32 %v1177, %v1179
      %1290 = vadd.xlane.f32.xlu0 %v1289
      %v1291 = vpop.xlane.xlu0 %1290
      %v1292 = vadd.f32 %v1181, %v1183
      %1293 = vadd.xlane.f32.xlu0 %v1292
      %v1294 = vpop.xlane.xlu0 %1293
      %v1295 = vadd.f32 %v1185, %v1187
      %1296 = vadd.xlane.f32.xlu0 %v1295
      %v1297 = vpop.xlane.xlu0 %1296
      %v1298 = vadd.f32 %v1189, %v1191
      %1299 = vadd.xlane.f32.xlu0 %v1298
      %v1300 = vpop.xlane.xlu0 %1299
      %v1301 = vadd.f32 %v1193, %v1195
      %1302 = vadd.xlane.f32.xlu0 %v1301
      %v1303 = vpop.xlane.xlu0 %1302
      %v1304 = vadd.f32 %v1197, %v1199
      %1305 = vadd.xlane.f32.xlu0 %v1304
      %v1306 = vpop.xlane.xlu0 %1305
      %v1307 = vadd.f32 %v1201, %v1203
      %1308 = vadd.xlane.f32.xlu0 %v1307
      %v1309 = vpop.xlane.xlu0 %1308
      %v1310 = vadd.f32 %v1205, %v1207
      %1311 = vadd.xlane.f32.xlu0 %v1310
      %v1312 = vpop.xlane.xlu0 %1311
      %v1313 = vadd.f32 %v1209, %v1211
      %1314 = vadd.xlane.f32.xlu0 %v1313
      %v1315 = vpop.xlane.xlu0 %1314
      %v1316 = vadd.f32 %v1213, %v1215
      %1317 = vadd.xlane.f32.xlu0 %v1316
      %v1318 = vpop.xlane.xlu0 %1317
      %v1319 = vadd.f32 %v1217, %v1219
      %1320 = vadd.xlane.f32.xlu0 %v1319
      %v1321 = vpop.xlane.xlu0 %1320
      %v1322 = vadd.f32 %v1221, %v1223
      %1323 = vadd.xlane.f32.xlu0 %v1322
      %v1324 = vpop.xlane.xlu0 %1323
      %v1325 = vadd.f32 %v1225, %v1227
      %1326 = vadd.xlane.f32.xlu0 %v1325
      %v1327 = vpop.xlane.xlu0 %1326
      %v1328 = vadd.f32 %v1229, %v1231
      %1329 = vadd.xlane.f32.xlu0 %v1328
      %v1330 = vpop.xlane.xlu0 %1329
      %v1331 = vadd.f32 %v1233, %v1235
      %1332 = vadd.xlane.f32.xlu0 %v1331
      %v1333 = vpop.xlane.xlu0 %1332
      %v1334 = vadd.f32 %v1237, %v1239
      %1335 = vadd.xlane.f32.xlu0 %v1334
      %v1336 = vpop.xlane.xlu0 %1335
      %v1337 = vadd.f32 %v1241, %v1243
      %1338 = vadd.xlane.f32.xlu0 %v1337
      %v1339 = vpop.xlane.xlu0 %1338
      %v1340 = vrcp.pop %v1246
      %v1341 = vrcp.pop %v1249
      %v1342 = vrcp.pop %v1252
      %v1343 = vrcp.pop %v1255
      %v1344 = vrcp.pop %v1258
      %v1345 = vrcp.pop %v1261
      %v1346 = vrcp.pop %v1264
      %v1347 = vrcp.pop %v1267
      %v1348 = vrcp.pop %v1270
      %v1349 = vrcp.pop %v1273
      %v1350 = vrcp.pop %v1276
      %v1351 = vrcp.pop %v1279
      %v1352 = vrcp.pop %v1282
      %v1353 = vrcp.pop %v1285
      %v1354 = vrcp.pop %v1288
      %v1355 = vrcp.pop %v1291
      %v1356 = vrcp.pop %v1294
      %v1357 = vrcp.pop %v1297
      %v1358 = vrcp.pop %v1300
      %v1359 = vrcp.pop %v1303
      %v1360 = vrcp.pop %v1306
      %v1361 = vrcp.pop %v1309
      %v1362 = vrcp.pop %v1312
      %v1363 = vrcp.pop %v1315
      %v1364 = vrcp.pop %v1318
      %v1365 = vrcp.pop %v1321
      %v1366 = vrcp.pop %v1324
      %v1367 = vrcp.pop %v1327
      %v1368 = vrcp.pop %v1330
      %v1369 = vrcp.pop %v1333
      %v1370 = vrcp.pop %v1336
      %v1371 = vrcp.pop %v1339
      %v1372 = vmul.f32 %v1117, %v1340
      %v1373 = vmul.f32 %v1119, %v1340
      %v1374 = vmul.f32 %v1121, %v1341
      %v1375 = vmul.f32 %v1123, %v1341
      %v1376 = vmul.f32 %v1125, %v1342
      %v1377 = vmul.f32 %v1127, %v1342
      %v1378 = vmul.f32 %v1129, %v1343
      %v1379 = vmul.f32 %v1131, %v1343
      %v1380 = vmul.f32 %v1133, %v1344
      %v1381 = vmul.f32 %v1135, %v1344
      %v1382 = vmul.f32 %v1137, %v1345
      %v1383 = vmul.f32 %v1139, %v1345
      %v1384 = vmul.f32 %v1141, %v1346
      %v1385 = vmul.f32 %v1143, %v1346
      %v1386 = vmul.f32 %v1145, %v1347
      %v1387 = vmul.f32 %v1147, %v1347
      %v1388 = vmul.f32 %v1149, %v1348
      %v1389 = vmul.f32 %v1151, %v1348
      %v1390 = vmul.f32 %v1153, %v1349
      %v1391 = vmul.f32 %v1155, %v1349
      %v1392 = vmul.f32 %v1157, %v1350
      %v1393 = vmul.f32 %v1159, %v1350
      %v1394 = vmul.f32 %v1161, %v1351
      %v1395 = vmul.f32 %v1163, %v1351
      %v1396 = vmul.f32 %v1165, %v1352
      %v1397 = vmul.f32 %v1167, %v1352
      %v1398 = vmul.f32 %v1169, %v1353
      %v1399 = vmul.f32 %v1171, %v1353
      %v1400 = vmul.f32 %v1173, %v1354
      %v1401 = vmul.f32 %v1175, %v1354
      %v1402 = vmul.f32 %v1177, %v1355
      %v1403 = vmul.f32 %v1179, %v1355
      %v1404 = vmul.f32 %v1181, %v1356
      %v1405 = vmul.f32 %v1183, %v1356
      %v1406 = vmul.f32 %v1185, %v1357
      %v1407 = vmul.f32 %v1187, %v1357
      %v1408 = vmul.f32 %v1189, %v1358
      %v1409 = vmul.f32 %v1191, %v1358
      %v1410 = vmul.f32 %v1193, %v1359
      %v1411 = vmul.f32 %v1195, %v1359
      %v1412 = vmul.f32 %v1197, %v1360
      %v1413 = vmul.f32 %v1199, %v1360
      %v1414 = vmul.f32 %v1201, %v1361
      %v1415 = vmul.f32 %v1203, %v1361
      %v1416 = vmul.f32 %v1205, %v1362
      %v1417 = vmul.f32 %v1207, %v1362
      %v1418 = vmul.f32 %v1209, %v1363
      %v1419 = vmul.f32 %v1211, %v1363
      %v1420 = vmul.f32 %v1213, %v1364
      %v1421 = vmul.f32 %v1215, %v1364
      %v1422 = vmul.f32 %v1217, %v1365
      %v1423 = vmul.f32 %v1219, %v1365
      %v1424 = vmul.f32 %v1221, %v1366
      %v1425 = vmul.f32 %v1223, %v1366
      %v1426 = vmul.f32 %v1225, %v1367
      %v1427 = vmul.f32 %v1227, %v1367
      %v1428 = vmul.f32 %v1229, %v1368
      %v1429 = vmul.f32 %v1231, %v1368
      %v1430 = vmul.f32 %v1233, %v1369
      %v1431 = vmul.f32 %v1235, %v1369
      %v1432 = vmul.f32 %v1237, %v1370
      %v1433 = vmul.f32 %v1239, %v1370
      %v1434 = vmul.f32 %v1241, %v1371
      %v1435 = vmul.f32 %v1243, %v1371
      %v1436 = vrot.slane %v458, 4
      %v1437 = vrot.slane %v460, 4
      %1440 = vmatprep.subr.mxu0 0.0
      %1441 = vmatpush1.xpose.msra.mxu0 0.0
      %1442 = vmatprep.subr.mxu0 0.0
      %1443 = vmatpush1.xpose.msra.mxu0 0.0
      %1444 = vmatprep.subr.mxu0 0.0
      %1445 = vmatpush1.xpose.msra.mxu0 0.0
      %1446 = vmatprep.subr.mxu0 0.0
      %1447 = vmatpush1.xpose.msra.mxu0 0.0
      %1448 = vmatprep.subr.mxu0 0.0
      %1449 = vmatpush1.xpose.msra.mxu0 0.0
      %1450 = vmatprep.subr.mxu0 0.0
      %1451 = vmatpush1.xpose.msra.mxu0 0.0
      %1452 = vmatprep.subr.mxu0 0.0
      %1453 = vmatpush1.xpose.msra.mxu0 0.0
      %1454 = vmatprep.subr.mxu0 0.0
      %1455 = vmatpush1.xpose.msra.mxu0 0.0
      %1456 = vmatprep.subr.mxu0 0.0
      %1457 = vmatpush1.xpose.msra.mxu0 0.0
      %1458 = vmatprep.subr.mxu0 0.0
      %1459 = vmatpush1.xpose.msra.mxu0 0.0
      %1460 = vmatprep.subr.mxu0 0.0
      %1461 = vmatpush1.xpose.msra.mxu0 0.0
      %1462 = vmatprep.subr.mxu0 0.0
      %1463 = vmatpush1.xpose.msra.mxu0 0.0
      %1464 = vmatprep.subr.mxu0 0.0
      %1465 = vmatpush1.xpose.msra.mxu0 0.0
      %1466 = vmatprep.subr.mxu0 0.0
      %1467 = vmatpush1.xpose.msra.mxu0 0.0
      %1468 = vmatprep.subr.mxu0 0.0
      %1469 = vmatpush1.xpose.msra.mxu0 0.0
      %1470 = vmatprep.subr.mxu0 %v1437
      %1471 = vmatpush1.xpose.msra.mxu0 %v1436
      %1472 = vmatprep.subr.mxu0 0.0
      %1473 = vmatpush2.xpose.msra.mxu0 0.0
      %1474 = vmatprep.subr.mxu0 0.0
      %1475 = vmatpush2.xpose.msra.mxu0 0.0
      %1476 = vmatprep.subr.mxu0 0.0
      %1477 = vmatpush2.xpose.msra.mxu0 0.0
      %1478 = vmatprep.subr.mxu0 0.0
      %1479 = vmatpush2.xpose.msra.mxu0 0.0
      %1480 = vmatprep.subr.mxu0 0.0
      %1481 = vmatpush2.xpose.msra.mxu0 0.0
      %1482 = vmatprep.subr.mxu0 0.0
      %1483 = vmatpush2.xpose.msra.mxu0 0.0
      %1484 = vmatprep.subr.mxu0 0.0
      %1485 = vmatpush2.xpose.msra.mxu0 0.0
      %1486 = vmatprep.subr.mxu0 0.0
      %1487 = vmatpush2.xpose.msra.mxu0 0.0
      %1488 = vmatprep.subr.mxu0 0.0
      %1489 = vmatpush2.xpose.msra.mxu0 0.0
      %1490 = vmatprep.subr.mxu0 0.0
      %1491 = vmatpush2.xpose.msra.mxu0 0.0
      %1492 = vmatprep.subr.mxu0 0.0
      %1493 = vmatpush2.xpose.msra.mxu0 0.0
      %1494 = vmatprep.subr.mxu0 0.0
      %1495 = vmatpush2.xpose.msra.mxu0 0.0
      %1496 = vmatprep.subr.mxu0 0.0
      %1497 = vmatpush2.xpose.msra.mxu0 0.0
      %1498 = vmatprep.subr.mxu0 0.0
      %1499 = vmatpush2.xpose.msra.mxu0 0.0
      %1500 = vmatprep.subr.mxu0 0.0
      %1501 = vmatpush2.xpose.msra.mxu0 0.0
      %1502 = vmatprep.subr.mxu0 0.0
      %1503 = vmatpush2.xpose.msra.mxu0 0.0
      %1504 = vmatprep.mubr.f32.mxu0 %v1373
      %1505 = vmatmul.mubr.f32.gmra.mxu0 %v1372
      %v1506 = vpop.f32.mrf.mxu0
      %v1507 = vadd.f32 0.0, %v1506
      %v1508 = vpop.f32.mrf.mxu0
      %1509 = vmatprep.mubr.f32.mxu0 %v1375
      %1510 = vmatmul.mubr.f32.gmra.mxu0 %v1374
      %v1511 = vpop.f32.mrf.mxu0
      %v1512 = vadd.f32 0.0, %v1511
      %v1513 = vpop.f32.mrf.mxu0
      %1514 = vmatprep.mubr.f32.mxu0 %v1377
      %1515 = vmatmul.mubr.f32.gmra.mxu0 %v1376
      %v1516 = vpop.f32.mrf.mxu0
      %v1517 = vadd.f32 0.0, %v1516
      %v1518 = vpop.f32.mrf.mxu0
      %1519 = vmatprep.mubr.f32.mxu0 %v1379
      %1520 = vmatmul.mubr.f32.gmra.mxu0 %v1378
      %v1521 = vpop.f32.mrf.mxu0
      %v1522 = vadd.f32 0.0, %v1521
      %v1523 = vpop.f32.mrf.mxu0
      %1524 = vmatprep.mubr.f32.mxu0 %v1381
      %1525 = vmatmul.mubr.f32.gmra.mxu0 %v1380
      %v1526 = vpop.f32.mrf.mxu0
      %v1527 = vadd.f32 0.0, %v1526
      %v1528 = vpop.f32.mrf.mxu0
      %1529 = vmatprep.mubr.f32.mxu0 %v1383
      %1530 = vmatmul.mubr.f32.gmra.mxu0 %v1382
      %v1531 = vpop.f32.mrf.mxu0
      %v1532 = vadd.f32 0.0, %v1531
      %v1533 = vpop.f32.mrf.mxu0
      %1534 = vmatprep.mubr.f32.mxu0 %v1385
      %1535 = vmatmul.mubr.f32.gmra.mxu0 %v1384
      %v1536 = vpop.f32.mrf.mxu0
      %v1537 = vadd.f32 0.0, %v1536
      %v1538 = vpop.f32.mrf.mxu0
      %1539 = vmatprep.mubr.f32.mxu0 %v1387
      %1540 = vmatmul.mubr.f32.gmra.mxu0 %v1386
      %v1541 = vpop.f32.mrf.mxu0
      %v1542 = vadd.f32 0.0, %v1541
      %v1543 = vpop.f32.mrf.mxu0
      %1544 = vmatprep.mubr.f32.mxu0 %v1389
      %1545 = vmatmul.mubr.f32.gmra.mxu0 %v1388
      %v1546 = vpop.f32.mrf.mxu0
      %v1547 = vadd.f32 0.0, %v1546
      %v1548 = vpop.f32.mrf.mxu0
      %1549 = vmatprep.mubr.f32.mxu0 %v1391
      %1550 = vmatmul.mubr.f32.gmra.mxu0 %v1390
      %v1551 = vpop.f32.mrf.mxu0
      %v1552 = vadd.f32 0.0, %v1551
      %v1553 = vpop.f32.mrf.mxu0
      %1554 = vmatprep.mubr.f32.mxu0 %v1393
      %1555 = vmatmul.mubr.f32.gmra.mxu0 %v1392
      %v1556 = vpop.f32.mrf.mxu0
      %v1557 = vadd.f32 0.0, %v1556
      %v1558 = vpop.f32.mrf.mxu0
      %1559 = vmatprep.mubr.f32.mxu0 %v1395
      %1560 = vmatmul.mubr.f32.gmra.mxu0 %v1394
      %v1561 = vpop.f32.mrf.mxu0
      %v1562 = vadd.f32 0.0, %v1561
      %v1563 = vpop.f32.mrf.mxu0
      %1564 = vmatprep.mubr.f32.mxu0 %v1397
      %1565 = vmatmul.mubr.f32.gmra.mxu0 %v1396
      %v1566 = vpop.f32.mrf.mxu0
      %v1567 = vadd.f32 0.0, %v1566
      %v1568 = vpop.f32.mrf.mxu0
      %1569 = vmatprep.mubr.f32.mxu0 %v1399
      %1570 = vmatmul.mubr.f32.gmra.mxu0 %v1398
      %v1571 = vpop.f32.mrf.mxu0
      %v1572 = vadd.f32 0.0, %v1571
      %v1573 = vpop.f32.mrf.mxu0
      %1574 = vmatprep.mubr.f32.mxu0 %v1401
      %1575 = vmatmul.mubr.f32.gmra.mxu0 %v1400
      %v1576 = vpop.f32.mrf.mxu0
      %v1577 = vadd.f32 0.0, %v1576
      %v1578 = vpop.f32.mrf.mxu0
      %1579 = vmatprep.mubr.f32.mxu0 %v1403
      %1580 = vmatmul.mubr.f32.gmra.mxu0 %v1402
      %v1581 = vpop.f32.mrf.mxu0
      %v1582 = vadd.f32 0.0, %v1581
      %v1583 = vpop.f32.mrf.mxu0
      %1584 = vmatprep.mubr.f32.mxu0 %v1405
      %1585 = vmatmul.mubr.f32.gmra.mxu0 %v1404
      %v1586 = vpop.f32.mrf.mxu0
      %v1587 = vadd.f32 0.0, %v1586
      %v1588 = vpop.f32.mrf.mxu0
      %1589 = vmatprep.mubr.f32.mxu0 %v1407
      %1590 = vmatmul.mubr.f32.gmra.mxu0 %v1406
      %v1591 = vpop.f32.mrf.mxu0
      %v1592 = vadd.f32 0.0, %v1591
      %v1593 = vpop.f32.mrf.mxu0
      %1594 = vmatprep.mubr.f32.mxu0 %v1409
      %1595 = vmatmul.mubr.f32.gmra.mxu0 %v1408
      %v1596 = vpop.f32.mrf.mxu0
      %v1597 = vadd.f32 0.0, %v1596
      %v1598 = vpop.f32.mrf.mxu0
      %1599 = vmatprep.mubr.f32.mxu0 %v1411
      %1600 = vmatmul.mubr.f32.gmra.mxu0 %v1410
      %v1601 = vpop.f32.mrf.mxu0
      %v1602 = vadd.f32 0.0, %v1601
      %v1603 = vpop.f32.mrf.mxu0
      %1604 = vmatprep.mubr.f32.mxu0 %v1413
      %1605 = vmatmul.mubr.f32.gmra.mxu0 %v1412
      %v1606 = vpop.f32.mrf.mxu0
      %v1607 = vadd.f32 0.0, %v1606
      %v1608 = vpop.f32.mrf.mxu0
      %1609 = vmatprep.mubr.f32.mxu0 %v1415
      %1610 = vmatmul.mubr.f32.gmra.mxu0 %v1414
      %v1611 = vpop.f32.mrf.mxu0
      %v1612 = vadd.f32 0.0, %v1611
      %v1613 = vpop.f32.mrf.mxu0
      %1614 = vmatprep.mubr.f32.mxu0 %v1417
      %1615 = vmatmul.mubr.f32.gmra.mxu0 %v1416
      %v1616 = vpop.f32.mrf.mxu0
      %v1617 = vadd.f32 0.0, %v1616
      %v1618 = vpop.f32.mrf.mxu0
      %1619 = vmatprep.mubr.f32.mxu0 %v1419
      %1620 = vmatmul.mubr.f32.gmra.mxu0 %v1418
      %v1621 = vpop.f32.mrf.mxu0
      %v1622 = vadd.f32 0.0, %v1621
      %v1623 = vpop.f32.mrf.mxu0
      %1624 = vmatprep.mubr.f32.mxu0 %v1421
      %1625 = vmatmul.mubr.f32.gmra.mxu0 %v1420
      %v1626 = vpop.f32.mrf.mxu0
      %v1627 = vadd.f32 0.0, %v1626
      %v1628 = vpop.f32.mrf.mxu0
      %1629 = vmatprep.mubr.f32.mxu0 %v1423
      %1630 = vmatmul.mubr.f32.gmra.mxu0 %v1422
      %v1631 = vpop.f32.mrf.mxu0
      %v1632 = vadd.f32 0.0, %v1631
      %v1633 = vpop.f32.mrf.mxu0
      %1634 = vmatprep.mubr.f32.mxu0 %v1425
      %1635 = vmatmul.mubr.f32.gmra.mxu0 %v1424
      %v1636 = vpop.f32.mrf.mxu0
      %v1637 = vadd.f32 0.0, %v1636
      %v1638 = vpop.f32.mrf.mxu0
      %1639 = vmatprep.mubr.f32.mxu0 %v1427
      %1640 = vmatmul.mubr.f32.gmra.mxu0 %v1426
      %v1641 = vpop.f32.mrf.mxu0
      %v1642 = vadd.f32 0.0, %v1641
      %v1643 = vpop.f32.mrf.mxu0
      %1644 = vmatprep.mubr.f32.mxu0 %v1429
      %1645 = vmatmul.mubr.f32.gmra.mxu0 %v1428
      %v1646 = vpop.f32.mrf.mxu0
      %v1647 = vadd.f32 0.0, %v1646
      %v1648 = vpop.f32.mrf.mxu0
      %1649 = vmatprep.mubr.f32.mxu0 %v1431
      %1650 = vmatmul.mubr.f32.gmra.mxu0 %v1430
      %v1651 = vpop.f32.mrf.mxu0
      %v1652 = vadd.f32 0.0, %v1651
      %v1653 = vpop.f32.mrf.mxu0
      %1654 = vmatprep.mubr.f32.mxu0 %v1433
      %1655 = vmatmul.mubr.f32.gmra.mxu0 %v1432
      %v1656 = vpop.f32.mrf.mxu0
      %v1657 = vadd.f32 0.0, %v1656
      %v1658 = vpop.f32.mrf.mxu0
      %1659 = vmatprep.mubr.f32.mxu0 %v1435
      %1660 = vmatmul.mubr.f32.gmra.mxu0 %v1434
      %v1661 = vpop.f32.mrf.mxu0
      %v1662 = vadd.f32 0.0, %v1661
      %v1663 = vpop.f32.mrf.mxu0
      %1664 = vdwg.mxu0
      %v1669 = vlaneseq
      %v1670 = vshrl.u32 %v1669, 7
      %v1671 = vsub.s32 0, %v1670
      %v1672 = vrot.slane %v467, %v1671
      %v1673 = vlaneseq
      %v1674 = vshrl.u32 %v1673, 7
      %v1675 = vsub.s32 0, %v1674
      %v1676 = vrot.slane %v471, %v1675
      %v1677 = vlaneseq
      %v1678 = vshrl.u32 %v1677, 7
      %v1679 = vsub.s32 0, %v1678
      %v1680 = vrot.slane %v475, %v1679
      %v1681 = vlaneseq
      %v1682 = vshrl.u32 %v1681, 7
      %v1683 = vsub.s32 0, %v1682
      %v1684 = vrot.slane %v479, %v1683
      %1685 = vset.pattern.permute.xlu0 0
      %1686 = vperm.xlu0 %1685, %v1672
      %v1687 = vpop.permute.xlu0 %1686
      %1689 = vset.pattern.permute.xlu0 0
      %1690 = vperm.xlu0 %1689, %v1676
      %v1691 = vpop.permute.xlu0 %1690
      %1693 = vset.pattern.permute.xlu0 0
      %1694 = vperm.xlu0 %1693, %v1680
      %v1695 = vpop.permute.xlu0 %1694
      %1697 = vset.pattern.permute.xlu0 0
      %1698 = vperm.xlu0 %1697, %v1684
      %v1699 = vpop.permute.xlu0 %1698
      %v1701 = vmul.f32 %v1687, %v1507
      %v1702 = vmul.f32 %v1687, %v1512
      %v1703 = vmul.f32 %v1687, %v1517
      %v1704 = vmul.f32 %v1687, %v1522
      %v1705 = vmul.f32 %v1687, %v1527
      %v1706 = vmul.f32 %v1687, %v1532
      %v1707 = vmul.f32 %v1687, %v1537
      %v1708 = vmul.f32 %v1687, %v1542
      %v1709 = vmul.f32 %v1687, %v1547
      %v1710 = vmul.f32 %v1687, %v1552
      %v1711 = vmul.f32 %v1687, %v1557
      %v1712 = vmul.f32 %v1687, %v1562
      %v1713 = vmul.f32 %v1687, %v1567
      %v1714 = vmul.f32 %v1687, %v1572
      %v1715 = vmul.f32 %v1687, %v1577
      %v1716 = vmul.f32 %v1687, %v1582
      %v1717 = vmul.f32 %v1691, %v1507
      %v1718 = vmul.f32 %v1691, %v1512
      %v1719 = vmul.f32 %v1691, %v1517
      %v1720 = vmul.f32 %v1691, %v1522
      %v1721 = vmul.f32 %v1691, %v1527
      %v1722 = vmul.f32 %v1691, %v1532
      %v1723 = vmul.f32 %v1691, %v1537
      %v1724 = vmul.f32 %v1691, %v1542
      %v1725 = vmul.f32 %v1691, %v1547
      %v1726 = vmul.f32 %v1691, %v1552
      %v1727 = vmul.f32 %v1691, %v1557
      %v1728 = vmul.f32 %v1691, %v1562
      %v1729 = vmul.f32 %v1691, %v1567
      %v1730 = vmul.f32 %v1691, %v1572
      %v1731 = vmul.f32 %v1691, %v1577
      %v1732 = vmul.f32 %v1691, %v1582
      %v1733 = vmul.f32 %v1695, %v1507
      %v1734 = vmul.f32 %v1695, %v1512
      %v1735 = vmul.f32 %v1695, %v1517
      %v1736 = vmul.f32 %v1695, %v1522
      %v1737 = vmul.f32 %v1695, %v1527
      %v1738 = vmul.f32 %v1695, %v1532
      %v1739 = vmul.f32 %v1695, %v1537
      %v1740 = vmul.f32 %v1695, %v1542
      %v1741 = vmul.f32 %v1695, %v1547
      %v1742 = vmul.f32 %v1695, %v1552
      %v1743 = vmul.f32 %v1695, %v1557
      %v1744 = vmul.f32 %v1695, %v1562
      %v1745 = vmul.f32 %v1695, %v1567
      %v1746 = vmul.f32 %v1695, %v1572
      %v1747 = vmul.f32 %v1695, %v1577
      %v1748 = vmul.f32 %v1695, %v1582
      %v1749 = vmul.f32 %v1699, %v1507
      %v1750 = vmul.f32 %v1699, %v1512
      %v1751 = vmul.f32 %v1699, %v1517
      %v1752 = vmul.f32 %v1699, %v1522
      %v1753 = vmul.f32 %v1699, %v1527
      %v1754 = vmul.f32 %v1699, %v1532
      %v1755 = vmul.f32 %v1699, %v1537
      %v1756 = vmul.f32 %v1699, %v1542
      %v1757 = vmul.f32 %v1699, %v1547
      %v1758 = vmul.f32 %v1699, %v1552
      %v1759 = vmul.f32 %v1699, %v1557
      %v1760 = vmul.f32 %v1699, %v1562
      %v1761 = vmul.f32 %v1699, %v1567
      %v1762 = vmul.f32 %v1699, %v1572
      %v1763 = vmul.f32 %v1699, %v1577
      %v1764 = vmul.f32 %v1699, %v1582
      %v1765 = vadd.f32 %v523, %v1701
      %v1766 = vadd.f32 %v523, %v1702
      %v1767 = vadd.f32 %v523, %v1703
      %v1768 = vadd.f32 %v523, %v1704
      %v1769 = vadd.f32 %v523, %v1705
      %v1770 = vadd.f32 %v523, %v1706
      %v1771 = vadd.f32 %v523, %v1707
      %v1772 = vadd.f32 %v523, %v1708
      %v1773 = vadd.f32 %v523, %v1709
      %v1774 = vadd.f32 %v523, %v1710
      %v1775 = vadd.f32 %v523, %v1711
      %v1776 = vadd.f32 %v523, %v1712
      %v1777 = vadd.f32 %v523, %v1713
      %v1778 = vadd.f32 %v523, %v1714
      %v1779 = vadd.f32 %v523, %v1715
      %v1780 = vadd.f32 %v523, %v1716
      %v1781 = vadd.f32 %v524, %v1717
      %v1782 = vadd.f32 %v524, %v1718
      %v1783 = vadd.f32 %v524, %v1719
      %v1784 = vadd.f32 %v524, %v1720
      %v1785 = vadd.f32 %v524, %v1721
      %v1786 = vadd.f32 %v524, %v1722
      %v1787 = vadd.f32 %v524, %v1723
      %v1788 = vadd.f32 %v524, %v1724
      %v1789 = vadd.f32 %v524, %v1725
      %v1790 = vadd.f32 %v524, %v1726
      %v1791 = vadd.f32 %v524, %v1727
      %v1792 = vadd.f32 %v524, %v1728
      %v1793 = vadd.f32 %v524, %v1729
      %v1794 = vadd.f32 %v524, %v1730
      %v1795 = vadd.f32 %v524, %v1731
      %v1796 = vadd.f32 %v524, %v1732
      %v1797 = vadd.f32 %v525, %v1733
      %v1798 = vadd.f32 %v525, %v1734
      %v1799 = vadd.f32 %v525, %v1735
      %v1800 = vadd.f32 %v525, %v1736
      %v1801 = vadd.f32 %v525, %v1737
      %v1802 = vadd.f32 %v525, %v1738
      %v1803 = vadd.f32 %v525, %v1739
      %v1804 = vadd.f32 %v525, %v1740
      %v1805 = vadd.f32 %v525, %v1741
      %v1806 = vadd.f32 %v525, %v1742
      %v1807 = vadd.f32 %v525, %v1743
      %v1808 = vadd.f32 %v525, %v1744
      %v1809 = vadd.f32 %v525, %v1745
      %v1810 = vadd.f32 %v525, %v1746
      %v1811 = vadd.f32 %v525, %v1747
      %v1812 = vadd.f32 %v525, %v1748
      %v1813 = vadd.f32 %v526, %v1749
      %v1814 = vadd.f32 %v526, %v1750
      %v1815 = vadd.f32 %v526, %v1751
      %v1816 = vadd.f32 %v526, %v1752
      %v1817 = vadd.f32 %v526, %v1753
      %v1818 = vadd.f32 %v526, %v1754
      %v1819 = vadd.f32 %v526, %v1755
      %v1820 = vadd.f32 %v526, %v1756
      %v1821 = vadd.f32 %v526, %v1757
      %v1822 = vadd.f32 %v526, %v1758
      %v1823 = vadd.f32 %v526, %v1759
      %v1824 = vadd.f32 %v526, %v1760
      %v1825 = vadd.f32 %v526, %v1761
      %v1826 = vadd.f32 %v526, %v1762
      %v1827 = vadd.f32 %v526, %v1763
      %v1828 = vadd.f32 %v526, %v1764
      %v1833 = vlaneseq
      %v1834 = vshrl.u32 %v1833, 7
      %v1835 = vsub.s32 0, %v1834
      %v1836 = vrot.slane %v468, %v1835
      %v1837 = vlaneseq
      %v1838 = vshrl.u32 %v1837, 7
      %v1839 = vsub.s32 0, %v1838
      %v1840 = vrot.slane %v472, %v1839
      %v1841 = vlaneseq
      %v1842 = vshrl.u32 %v1841, 7
      %v1843 = vsub.s32 0, %v1842
      %v1844 = vrot.slane %v476, %v1843
      %v1845 = vlaneseq
      %v1846 = vshrl.u32 %v1845, 7
      %v1847 = vsub.s32 0, %v1846
      %v1848 = vrot.slane %v480, %v1847
      %1849 = vset.pattern.permute.xlu0 0
      %1850 = vperm.xlu0 %1849, %v1836
      %v1851 = vpop.permute.xlu0 %1850
      %1853 = vset.pattern.permute.xlu0 0
      %1854 = vperm.xlu0 %1853, %v1840
      %v1855 = vpop.permute.xlu0 %1854
      %1857 = vset.pattern.permute.xlu0 0
      %1858 = vperm.xlu0 %1857, %v1844
      %v1859 = vpop.permute.xlu0 %1858
      %1861 = vset.pattern.permute.xlu0 0
      %1862 = vperm.xlu0 %1861, %v1848
      %v1863 = vpop.permute.xlu0 %1862
      %v1865 = vmul.f32 %v1851, %v1587
      %v1866 = vmul.f32 %v1851, %v1592
      %v1867 = vmul.f32 %v1851, %v1597
      %v1868 = vmul.f32 %v1851, %v1602
      %v1869 = vmul.f32 %v1851, %v1607
      %v1870 = vmul.f32 %v1851, %v1612
      %v1871 = vmul.f32 %v1851, %v1617
      %v1872 = vmul.f32 %v1851, %v1622
      %v1873 = vmul.f32 %v1851, %v1627
      %v1874 = vmul.f32 %v1851, %v1632
      %v1875 = vmul.f32 %v1851, %v1637
      %v1876 = vmul.f32 %v1851, %v1642
      %v1877 = vmul.f32 %v1851, %v1647
      %v1878 = vmul.f32 %v1851, %v1652
      %v1879 = vmul.f32 %v1851, %v1657
      %v1880 = vmul.f32 %v1851, %v1662
      %v1881 = vmul.f32 %v1855, %v1587
      %v1882 = vmul.f32 %v1855, %v1592
      %v1883 = vmul.f32 %v1855, %v1597
      %v1884 = vmul.f32 %v1855, %v1602
      %v1885 = vmul.f32 %v1855, %v1607
      %v1886 = vmul.f32 %v1855, %v1612
      %v1887 = vmul.f32 %v1855, %v1617
      %v1888 = vmul.f32 %v1855, %v1622
      %v1889 = vmul.f32 %v1855, %v1627
      %v1890 = vmul.f32 %v1855, %v1632
      %v1891 = vmul.f32 %v1855, %v1637
      %v1892 = vmul.f32 %v1855, %v1642
      %v1893 = vmul.f32 %v1855, %v1647
      %v1894 = vmul.f32 %v1855, %v1652
      %v1895 = vmul.f32 %v1855, %v1657
      %v1896 = vmul.f32 %v1855, %v1662
      %v1897 = vmul.f32 %v1859, %v1587
      %v1898 = vmul.f32 %v1859, %v1592
      %v1899 = vmul.f32 %v1859, %v1597
      %v1900 = vmul.f32 %v1859, %v1602
      %v1901 = vmul.f32 %v1859, %v1607
      %v1902 = vmul.f32 %v1859, %v1612
      %v1903 = vmul.f32 %v1859, %v1617
      %v1904 = vmul.f32 %v1859, %v1622
      %v1905 = vmul.f32 %v1859, %v1627
      %v1906 = vmul.f32 %v1859, %v1632
      %v1907 = vmul.f32 %v1859, %v1637
      %v1908 = vmul.f32 %v1859, %v1642
      %v1909 = vmul.f32 %v1859, %v1647
      %v1910 = vmul.f32 %v1859, %v1652
      %v1911 = vmul.f32 %v1859, %v1657
      %v1912 = vmul.f32 %v1859, %v1662
      %v1913 = vmul.f32 %v1863, %v1587
      %v1914 = vmul.f32 %v1863, %v1592
      %v1915 = vmul.f32 %v1863, %v1597
      %v1916 = vmul.f32 %v1863, %v1602
      %v1917 = vmul.f32 %v1863, %v1607
      %v1918 = vmul.f32 %v1863, %v1612
      %v1919 = vmul.f32 %v1863, %v1617
      %v1920 = vmul.f32 %v1863, %v1622
      %v1921 = vmul.f32 %v1863, %v1627
      %v1922 = vmul.f32 %v1863, %v1632
      %v1923 = vmul.f32 %v1863, %v1637
      %v1924 = vmul.f32 %v1863, %v1642
      %v1925 = vmul.f32 %v1863, %v1647
      %v1926 = vmul.f32 %v1863, %v1652
      %v1927 = vmul.f32 %v1863, %v1657
      %v1928 = vmul.f32 %v1863, %v1662
      %v1929 = vadd.f32 %v1765, %v1865
      %v1930 = vadd.f32 %v1766, %v1866
      %v1931 = vadd.f32 %v1767, %v1867
      %v1932 = vadd.f32 %v1768, %v1868
      %v1933 = vadd.f32 %v1769, %v1869
      %v1934 = vadd.f32 %v1770, %v1870
      %v1935 = vadd.f32 %v1771, %v1871
      %v1936 = vadd.f32 %v1772, %v1872
      %v1937 = vadd.f32 %v1773, %v1873
      %v1938 = vadd.f32 %v1774, %v1874
      %v1939 = vadd.f32 %v1775, %v1875
      %v1940 = vadd.f32 %v1776, %v1876
      %v1941 = vadd.f32 %v1777, %v1877
      %v1942 = vadd.f32 %v1778, %v1878
      %v1943 = vadd.f32 %v1779, %v1879
      %v1944 = vadd.f32 %v1780, %v1880
      %v1945 = vadd.f32 %v1781, %v1881
      %v1946 = vadd.f32 %v1782, %v1882
      %v1947 = vadd.f32 %v1783, %v1883
      %v1948 = vadd.f32 %v1784, %v1884
      %v1949 = vadd.f32 %v1785, %v1885
      %v1950 = vadd.f32 %v1786, %v1886
      %v1951 = vadd.f32 %v1787, %v1887
      %v1952 = vadd.f32 %v1788, %v1888
      %v1953 = vadd.f32 %v1789, %v1889
      %v1954 = vadd.f32 %v1790, %v1890
      %v1955 = vadd.f32 %v1791, %v1891
      %v1956 = vadd.f32 %v1792, %v1892
      %v1957 = vadd.f32 %v1793, %v1893
      %v1958 = vadd.f32 %v1794, %v1894
      %v1959 = vadd.f32 %v1795, %v1895
      %v1960 = vadd.f32 %v1796, %v1896
      %v1961 = vadd.f32 %v1797, %v1897
      %v1962 = vadd.f32 %v1798, %v1898
      %v1963 = vadd.f32 %v1799, %v1899
      %v1964 = vadd.f32 %v1800, %v1900
      %v1965 = vadd.f32 %v1801, %v1901
      %v1966 = vadd.f32 %v1802, %v1902
      %v1967 = vadd.f32 %v1803, %v1903
      %v1968 = vadd.f32 %v1804, %v1904
      %v1969 = vadd.f32 %v1805, %v1905
      %v1970 = vadd.f32 %v1806, %v1906
      %v1971 = vadd.f32 %v1807, %v1907
      %v1972 = vadd.f32 %v1808, %v1908
      %v1973 = vadd.f32 %v1809, %v1909
      %v1974 = vadd.f32 %v1810, %v1910
      %v1975 = vadd.f32 %v1811, %v1911
      %v1976 = vadd.f32 %v1812, %v1912
      %v1977 = vadd.f32 %v1813, %v1913
      %v1978 = vadd.f32 %v1814, %v1914
      %v1979 = vadd.f32 %v1815, %v1915
      %v1980 = vadd.f32 %v1816, %v1916
      %v1981 = vadd.f32 %v1817, %v1917
      %v1982 = vadd.f32 %v1818, %v1918
      %v1983 = vadd.f32 %v1819, %v1919
      %v1984 = vadd.f32 %v1820, %v1920
      %v1985 = vadd.f32 %v1821, %v1921
      %v1986 = vadd.f32 %v1822, %v1922
      %v1987 = vadd.f32 %v1823, %v1923
      %v1988 = vadd.f32 %v1824, %v1924
      %v1989 = vadd.f32 %v1825, %v1925
      %v1990 = vadd.f32 %v1826, %v1926
      %v1991 = vadd.f32 %v1827, %v1927
      %v1992 = vadd.f32 %v1828, %v1928
      %v1993 = vrot.slane %v452, 6
      %v1994 = vrot.slane %v454, 6
      %1997 = vxpose.xlu0.b32.start [1/16] %v1993, 128
      %1998 = vxpose.xlu0.b32.cont [2/16] 0.0, 128
      %1999 = vxpose.xlu0.b32.cont [3/16] 0.0, 128
      %2000 = vxpose.xlu0.b32.cont [4/16] 0.0, 128
      %2001 = vxpose.xlu0.b32.cont [5/16] 0.0, 128
      %2002 = vxpose.xlu0.b32.cont [6/16] 0.0, 128
      %2003 = vxpose.xlu0.b32.cont [7/16] 0.0, 128
      %2004 = vxpose.xlu0.b32.cont [8/16] 0.0, 128
      %2005 = vxpose.xlu0.b32.cont [9/16] 0.0, 128
      %2006 = vxpose.xlu0.b32.cont [10/16] 0.0, 128
      %2007 = vxpose.xlu0.b32.cont [11/16] 0.0, 128
      %2008 = vxpose.xlu0.b32.cont [12/16] 0.0, 128
      %2009 = vxpose.xlu0.b32.cont [13/16] 0.0, 128
      %2010 = vxpose.xlu0.b32.cont [14/16] 0.0, 128
      %2011 = vxpose.xlu0.b32.cont [15/16] 0.0, 128
      %2012 = vxpose.xlu0.b32.end [16/16] 0.0, 128
      %v2013 = vpop.trf.xlu0
      %v2014 = vpop.trf.xlu0
      %v2015 = vpop.trf.xlu0
      %v2016 = vpop.trf.xlu0
      %v2017 = vpop.trf.xlu0
      %v2018 = vpop.trf.xlu0
      %v2019 = vpop.trf.xlu0
      %v2020 = vpop.trf.xlu0
      %v2021 = vpop.trf.xlu0
      %v2022 = vpop.trf.xlu0
      %v2023 = vpop.trf.xlu0
      %v2024 = vpop.trf.xlu0
      %v2025 = vpop.trf.xlu0
      %v2026 = vpop.trf.xlu0
      %v2027 = vpop.trf.xlu0
      %v2028 = vpop.trf.xlu0
      %2029 = vxpose.xlu0.b32.start [1/16] %v1994, 128
      %2030 = vxpose.xlu0.b32.cont [2/16] 0.0, 128
      %2031 = vxpose.xlu0.b32.cont [3/16] 0.0, 128
      %2032 = vxpose.xlu0.b32.cont [4/16] 0.0, 128
      %2033 = vxpose.xlu0.b32.cont [5/16] 0.0, 128
      %2034 = vxpose.xlu0.b32.cont [6/16] 0.0, 128
      %2035 = vxpose.xlu0.b32.cont [7/16] 0.0, 128
      %2036 = vxpose.xlu0.b32.cont [8/16] 0.0, 128
      %2037 = vxpose.xlu0.b32.cont [9/16] 0.0, 128
      %2038 = vxpose.xlu0.b32.cont [10/16] 0.0, 128
      %2039 = vxpose.xlu0.b32.cont [11/16] 0.0, 128
      %2040 = vxpose.xlu0.b32.cont [12/16] 0.0, 128
      %2041 = vxpose.xlu0.b32.cont [13/16] 0.0, 128
      %2042 = vxpose.xlu0.b32.cont [14/16] 0.0, 128
      %2043 = vxpose.xlu0.b32.cont [15/16] 0.0, 128
      %2044 = vxpose.xlu0.b32.end [16/16] 0.0, 128
      %v2045 = vpop.trf.xlu0
      %v2046 = vpop.trf.xlu0
      %v2047 = vpop.trf.xlu0
      %v2048 = vpop.trf.xlu0
      %v2049 = vpop.trf.xlu0
      %v2050 = vpop.trf.xlu0
      %v2051 = vpop.trf.xlu0
      %v2052 = vpop.trf.xlu0
      %v2053 = vpop.trf.xlu0
      %v2054 = vpop.trf.xlu0
      %v2055 = vpop.trf.xlu0
      %v2056 = vpop.trf.xlu0
      %v2057 = vpop.trf.xlu0
      %v2058 = vpop.trf.xlu0
      %v2059 = vpop.trf.xlu0
      %v2060 = vpop.trf.xlu0
      %v2061 = vrot.slane %v458, 2
      %v2062 = vrot.slane %v460, 2
      %v2064 = vsel %vm595, %v2013, 0
      %v2067 = vsel %vm595, %v2014, 0
      %v2070 = vsel %vm595, %v2015, 0
      %v2073 = vsel %vm595, %v2016, 0
      %v2076 = vsel %vm595, %v2017, 0
      %v2079 = vsel %vm595, %v2018, 0
      %v2082 = vsel %vm595, %v2019, 0
      %v2085 = vsel %vm595, %v2020, 0
      %v2088 = vsel %vm595, %v2021, 0
      %v2091 = vsel %vm595, %v2022, 0
      %v2094 = vsel %vm595, %v2023, 0
      %v2097 = vsel %vm595, %v2024, 0
      %v2100 = vsel %vm595, %v2025, 0
      %v2103 = vsel %vm595, %v2026, 0
      %v2106 = vsel %vm595, %v2027, 0
      %v2109 = vsel %vm595, %v2028, 0
      %v2112 = vsel %vm595, %v2045, 0
      %v2115 = vsel %vm595, %v2046, 0
      %v2118 = vsel %vm595, %v2047, 0
      %v2121 = vsel %vm595, %v2048, 0
      %v2124 = vsel %vm595, %v2049, 0
      %v2127 = vsel %vm595, %v2050, 0
      %v2130 = vsel %vm595, %v2051, 0
      %v2133 = vsel %vm595, %v2052, 0
      %v2136 = vsel %vm595, %v2053, 0
      %v2139 = vsel %vm595, %v2054, 0
      %v2142 = vsel %vm595, %v2055, 0
      %v2145 = vsel %vm595, %v2056, 0
      %v2148 = vsel %vm595, %v2057, 0
      %v2151 = vsel %vm595, %v2058, 0
      %v2154 = vsel %vm595, %v2059, 0
      %v2157 = vsel %vm595, %v2060, 0
      %v2159 = vsel %vm692, %v2061, 0
      %v2161 = vsel %vm692, %v2062, 0
      %2163 = vmatprep.subr.mxu0 0.0
      %2164 = vmatpush1.msra.mxu0 0.0
      %2165 = vmatprep.subr.mxu0 0.0
      %2166 = vmatpush1.msra.mxu0 0.0
      %2167 = vmatprep.subr.mxu0 0.0
      %2168 = vmatpush1.msra.mxu0 0.0
      %2169 = vmatprep.subr.mxu0 0.0
      %2170 = vmatpush1.msra.mxu0 0.0
      %2171 = vmatprep.subr.mxu0 0.0
      %2172 = vmatpush1.msra.mxu0 0.0
      %2173 = vmatprep.subr.mxu0 0.0
      %2174 = vmatpush1.msra.mxu0 0.0
      %2175 = vmatprep.subr.mxu0 0.0
      %2176 = vmatpush1.msra.mxu0 0.0
      %2177 = vmatprep.subr.mxu0 0.0
      %2178 = vmatpush1.msra.mxu0 0.0
      %2179 = vmatprep.subr.mxu0 0.0
      %2180 = vmatpush1.msra.mxu0 0.0
      %2181 = vmatprep.subr.mxu0 0.0
      %2182 = vmatpush1.msra.mxu0 0.0
      %2183 = vmatprep.subr.mxu0 0.0
      %2184 = vmatpush1.msra.mxu0 0.0
      %2185 = vmatprep.subr.mxu0 0.0
      %2186 = vmatpush1.msra.mxu0 0.0
      %2187 = vmatprep.subr.mxu0 0.0
      %2188 = vmatpush1.msra.mxu0 0.0
      %2189 = vmatprep.subr.mxu0 0.0
      %2190 = vmatpush1.msra.mxu0 0.0
      %2191 = vmatprep.subr.mxu0 0.0
      %2192 = vmatpush1.msra.mxu0 0.0
      %2193 = vmatprep.subr.mxu0 %v2161
      %2194 = vmatpush1.msra.mxu0 %v2159
      %2195 = vmatprep.subr.mxu0 0.0
      %2196 = vmatpush2.msra.mxu0 0.0
      %2197 = vmatprep.subr.mxu0 0.0
      %2198 = vmatpush2.msra.mxu0 0.0
      %2199 = vmatprep.subr.mxu0 0.0
      %2200 = vmatpush2.msra.mxu0 0.0
      %2201 = vmatprep.subr.mxu0 0.0
      %2202 = vmatpush2.msra.mxu0 0.0
      %2203 = vmatprep.subr.mxu0 0.0
      %2204 = vmatpush2.msra.mxu0 0.0
      %2205 = vmatprep.subr.mxu0 0.0
      %2206 = vmatpush2.msra.mxu0 0.0
      %2207 = vmatprep.subr.mxu0 0.0
      %2208 = vmatpush2.msra.mxu0 0.0
      %2209 = vmatprep.subr.mxu0 0.0
      %2210 = vmatpush2.msra.mxu0 0.0
      %2211 = vmatprep.subr.mxu0 0.0
      %2212 = vmatpush2.msra.mxu0 0.0
      %2213 = vmatprep.subr.mxu0 0.0
      %2214 = vmatpush2.msra.mxu0 0.0
      %2215 = vmatprep.subr.mxu0 0.0
      %2216 = vmatpush2.msra.mxu0 0.0
      %2217 = vmatprep.subr.mxu0 0.0
      %2218 = vmatpush2.msra.mxu0 0.0
      %2219 = vmatprep.subr.mxu0 0.0
      %2220 = vmatpush2.msra.mxu0 0.0
      %2221 = vmatprep.subr.mxu0 0.0
      %2222 = vmatpush2.msra.mxu0 0.0
      %2223 = vmatprep.subr.mxu0 0.0
      %2224 = vmatpush2.msra.mxu0 0.0
      %2225 = vmatprep.subr.mxu0 0.0
      %2226 = vmatpush2.msra.mxu0 0.0
      %2227 = vmatprep.mubr.f32.mxu0 0.0
      %2228 = vmatmul.mubr.f32.gmra.mxu0 %v2064
      %v2229 = vpop.f32.mrf.mxu0
      %v2230 = vadd.f32 0.0, %v2229
      %v2231 = vpop.f32.mrf.mxu0
      %v2232 = vadd.f32 0.0, %v2231
      %2233 = vmatprep.mubr.f32.mxu0 0.0
      %2234 = vmatmul.mubr.f32.gmra.mxu0 %v2067
      %v2235 = vpop.f32.mrf.mxu0
      %v2236 = vadd.f32 0.0, %v2235
      %v2237 = vpop.f32.mrf.mxu0
      %v2238 = vadd.f32 0.0, %v2237
      %2239 = vmatprep.mubr.f32.mxu0 0.0
      %2240 = vmatmul.mubr.f32.gmra.mxu0 %v2070
      %v2241 = vpop.f32.mrf.mxu0
      %v2242 = vadd.f32 0.0, %v2241
      %v2243 = vpop.f32.mrf.mxu0
      %v2244 = vadd.f32 0.0, %v2243
      %2245 = vmatprep.mubr.f32.mxu0 0.0
      %2246 = vmatmul.mubr.f32.gmra.mxu0 %v2073
      %v2247 = vpop.f32.mrf.mxu0
      %v2248 = vadd.f32 0.0, %v2247
      %v2249 = vpop.f32.mrf.mxu0
      %v2250 = vadd.f32 0.0, %v2249
      %2251 = vmatprep.mubr.f32.mxu0 0.0
      %2252 = vmatmul.mubr.f32.gmra.mxu0 %v2076
      %v2253 = vpop.f32.mrf.mxu0
      %v2254 = vadd.f32 0.0, %v2253
      %v2255 = vpop.f32.mrf.mxu0
      %v2256 = vadd.f32 0.0, %v2255
      %2257 = vmatprep.mubr.f32.mxu0 0.0
      %2258 = vmatmul.mubr.f32.gmra.mxu0 %v2079
      %v2259 = vpop.f32.mrf.mxu0
      %v2260 = vadd.f32 0.0, %v2259
      %v2261 = vpop.f32.mrf.mxu0
      %v2262 = vadd.f32 0.0, %v2261
      %2263 = vmatprep.mubr.f32.mxu0 0.0
      %2264 = vmatmul.mubr.f32.gmra.mxu0 %v2082
      %v2265 = vpop.f32.mrf.mxu0
      %v2266 = vadd.f32 0.0, %v2265
      %v2267 = vpop.f32.mrf.mxu0
      %v2268 = vadd.f32 0.0, %v2267
      %2269 = vmatprep.mubr.f32.mxu0 0.0
      %2270 = vmatmul.mubr.f32.gmra.mxu0 %v2085
      %v2271 = vpop.f32.mrf.mxu0
      %v2272 = vadd.f32 0.0, %v2271
      %v2273 = vpop.f32.mrf.mxu0
      %v2274 = vadd.f32 0.0, %v2273
      %2275 = vmatprep.mubr.f32.mxu0 0.0
      %2276 = vmatmul.mubr.f32.gmra.mxu0 %v2088
      %v2277 = vpop.f32.mrf.mxu0
      %v2278 = vadd.f32 0.0, %v2277
      %v2279 = vpop.f32.mrf.mxu0
      %v2280 = vadd.f32 0.0, %v2279
      %2281 = vmatprep.mubr.f32.mxu0 0.0
      %2282 = vmatmul.mubr.f32.gmra.mxu0 %v2091
      %v2283 = vpop.f32.mrf.mxu0
      %v2284 = vadd.f32 0.0, %v2283
      %v2285 = vpop.f32.mrf.mxu0
      %v2286 = vadd.f32 0.0, %v2285
      %2287 = vmatprep.mubr.f32.mxu0 0.0
      %2288 = vmatmul.mubr.f32.gmra.mxu0 %v2094
      %v2289 = vpop.f32.mrf.mxu0
      %v2290 = vadd.f32 0.0, %v2289
      %v2291 = vpop.f32.mrf.mxu0
      %v2292 = vadd.f32 0.0, %v2291
      %2293 = vmatprep.mubr.f32.mxu0 0.0
      %2294 = vmatmul.mubr.f32.gmra.mxu0 %v2097
      %v2295 = vpop.f32.mrf.mxu0
      %v2296 = vadd.f32 0.0, %v2295
      %v2297 = vpop.f32.mrf.mxu0
      %v2298 = vadd.f32 0.0, %v2297
      %2299 = vmatprep.mubr.f32.mxu0 0.0
      %2300 = vmatmul.mubr.f32.gmra.mxu0 %v2100
      %v2301 = vpop.f32.mrf.mxu0
      %v2302 = vadd.f32 0.0, %v2301
      %v2303 = vpop.f32.mrf.mxu0
      %v2304 = vadd.f32 0.0, %v2303
      %2305 = vmatprep.mubr.f32.mxu0 0.0
      %2306 = vmatmul.mubr.f32.gmra.mxu0 %v2103
      %v2307 = vpop.f32.mrf.mxu0
      %v2308 = vadd.f32 0.0, %v2307
      %v2309 = vpop.f32.mrf.mxu0
      %v2310 = vadd.f32 0.0, %v2309
      %2311 = vmatprep.mubr.f32.mxu0 0.0
      %2312 = vmatmul.mubr.f32.gmra.mxu0 %v2106
      %v2313 = vpop.f32.mrf.mxu0
      %v2314 = vadd.f32 0.0, %v2313
      %v2315 = vpop.f32.mrf.mxu0
      %v2316 = vadd.f32 0.0, %v2315
      %2317 = vmatprep.mubr.f32.mxu0 0.0
      %2318 = vmatmul.mubr.f32.gmra.mxu0 %v2109
      %v2319 = vpop.f32.mrf.mxu0
      %v2320 = vadd.f32 0.0, %v2319
      %v2321 = vpop.f32.mrf.mxu0
      %v2322 = vadd.f32 0.0, %v2321
      %2323 = vmatprep.mubr.f32.mxu0 0.0
      %2324 = vmatmul.mubr.f32.gmra.mxu0 %v2112
      %v2325 = vpop.f32.mrf.mxu0
      %v2326 = vadd.f32 0.0, %v2325
      %v2327 = vpop.f32.mrf.mxu0
      %v2328 = vadd.f32 0.0, %v2327
      %2329 = vmatprep.mubr.f32.mxu0 0.0
      %2330 = vmatmul.mubr.f32.gmra.mxu0 %v2115
      %v2331 = vpop.f32.mrf.mxu0
      %v2332 = vadd.f32 0.0, %v2331
      %v2333 = vpop.f32.mrf.mxu0
      %v2334 = vadd.f32 0.0, %v2333
      %2335 = vmatprep.mubr.f32.mxu0 0.0
      %2336 = vmatmul.mubr.f32.gmra.mxu0 %v2118
      %v2337 = vpop.f32.mrf.mxu0
      %v2338 = vadd.f32 0.0, %v2337
      %v2339 = vpop.f32.mrf.mxu0
      %v2340 = vadd.f32 0.0, %v2339
      %2341 = vmatprep.mubr.f32.mxu0 0.0
      %2342 = vmatmul.mubr.f32.gmra.mxu0 %v2121
      %v2343 = vpop.f32.mrf.mxu0
      %v2344 = vadd.f32 0.0, %v2343
      %v2345 = vpop.f32.mrf.mxu0
      %v2346 = vadd.f32 0.0, %v2345
      %2347 = vmatprep.mubr.f32.mxu0 0.0
      %2348 = vmatmul.mubr.f32.gmra.mxu0 %v2124
      %v2349 = vpop.f32.mrf.mxu0
      %v2350 = vadd.f32 0.0, %v2349
      %v2351 = vpop.f32.mrf.mxu0
      %v2352 = vadd.f32 0.0, %v2351
      %2353 = vmatprep.mubr.f32.mxu0 0.0
      %2354 = vmatmul.mubr.f32.gmra.mxu0 %v2127
      %v2355 = vpop.f32.mrf.mxu0
      %v2356 = vadd.f32 0.0, %v2355
      %v2357 = vpop.f32.mrf.mxu0
      %v2358 = vadd.f32 0.0, %v2357
      %2359 = vmatprep.mubr.f32.mxu0 0.0
      %2360 = vmatmul.mubr.f32.gmra.mxu0 %v2130
      %v2361 = vpop.f32.mrf.mxu0
      %v2362 = vadd.f32 0.0, %v2361
      %v2363 = vpop.f32.mrf.mxu0
      %v2364 = vadd.f32 0.0, %v2363
      %2365 = vmatprep.mubr.f32.mxu0 0.0
      %2366 = vmatmul.mubr.f32.gmra.mxu0 %v2133
      %v2367 = vpop.f32.mrf.mxu0
      %v2368 = vadd.f32 0.0, %v2367
      %v2369 = vpop.f32.mrf.mxu0
      %v2370 = vadd.f32 0.0, %v2369
      %2371 = vmatprep.mubr.f32.mxu0 0.0
      %2372 = vmatmul.mubr.f32.gmra.mxu0 %v2136
      %v2373 = vpop.f32.mrf.mxu0
      %v2374 = vadd.f32 0.0, %v2373
      %v2375 = vpop.f32.mrf.mxu0
      %v2376 = vadd.f32 0.0, %v2375
      %2377 = vmatprep.mubr.f32.mxu0 0.0
      %2378 = vmatmul.mubr.f32.gmra.mxu0 %v2139
      %v2379 = vpop.f32.mrf.mxu0
      %v2380 = vadd.f32 0.0, %v2379
      %v2381 = vpop.f32.mrf.mxu0
      %v2382 = vadd.f32 0.0, %v2381
      %2383 = vmatprep.mubr.f32.mxu0 0.0
      %2384 = vmatmul.mubr.f32.gmra.mxu0 %v2142
      %v2385 = vpop.f32.mrf.mxu0
      %v2386 = vadd.f32 0.0, %v2385
      %v2387 = vpop.f32.mrf.mxu0
      %v2388 = vadd.f32 0.0, %v2387
      %2389 = vmatprep.mubr.f32.mxu0 0.0
      %2390 = vmatmul.mubr.f32.gmra.mxu0 %v2145
      %v2391 = vpop.f32.mrf.mxu0
      %v2392 = vadd.f32 0.0, %v2391
      %v2393 = vpop.f32.mrf.mxu0
      %v2394 = vadd.f32 0.0, %v2393
      %2395 = vmatprep.mubr.f32.mxu0 0.0
      %2396 = vmatmul.mubr.f32.gmra.mxu0 %v2148
      %v2397 = vpop.f32.mrf.mxu0
      %v2398 = vadd.f32 0.0, %v2397
      %v2399 = vpop.f32.mrf.mxu0
      %v2400 = vadd.f32 0.0, %v2399
      %2401 = vmatprep.mubr.f32.mxu0 0.0
      %2402 = vmatmul.mubr.f32.gmra.mxu0 %v2151
      %v2403 = vpop.f32.mrf.mxu0
      %v2404 = vadd.f32 0.0, %v2403
      %v2405 = vpop.f32.mrf.mxu0
      %v2406 = vadd.f32 0.0, %v2405
      %2407 = vmatprep.mubr.f32.mxu0 0.0
      %2408 = vmatmul.mubr.f32.gmra.mxu0 %v2154
      %v2409 = vpop.f32.mrf.mxu0
      %v2410 = vadd.f32 0.0, %v2409
      %v2411 = vpop.f32.mrf.mxu0
      %v2412 = vadd.f32 0.0, %v2411
      %2413 = vmatprep.mubr.f32.mxu0 0.0
      %2414 = vmatmul.mubr.f32.gmra.mxu0 %v2157
      %v2415 = vpop.f32.mrf.mxu0
      %v2416 = vadd.f32 0.0, %v2415
      %v2417 = vpop.f32.mrf.mxu0
      %v2418 = vadd.f32 0.0, %v2417
      %2419 = vdwg.mxu0
      %v2420 = vmax.f32 %v2230, %v2232
      %2421 = vmax.xlane.f32.xlu0 %v2420
      %v2422 = vpop.xlane.xlu0 %2421
      %v2423 = vmax.f32 %v2236, %v2238
      %2424 = vmax.xlane.f32.xlu0 %v2423
      %v2425 = vpop.xlane.xlu0 %2424
      %v2426 = vmax.f32 %v2242, %v2244
      %2427 = vmax.xlane.f32.xlu0 %v2426
      %v2428 = vpop.xlane.xlu0 %2427
      %v2429 = vmax.f32 %v2248, %v2250
      %2430 = vmax.xlane.f32.xlu0 %v2429
      %v2431 = vpop.xlane.xlu0 %2430
      %v2432 = vmax.f32 %v2254, %v2256
      %2433 = vmax.xlane.f32.xlu0 %v2432
      %v2434 = vpop.xlane.xlu0 %2433
      %v2435 = vmax.f32 %v2260, %v2262
      %2436 = vmax.xlane.f32.xlu0 %v2435
      %v2437 = vpop.xlane.xlu0 %2436
      %v2438 = vmax.f32 %v2266, %v2268
      %2439 = vmax.xlane.f32.xlu0 %v2438
      %v2440 = vpop.xlane.xlu0 %2439
      %v2441 = vmax.f32 %v2272, %v2274
      %2442 = vmax.xlane.f32.xlu0 %v2441
      %v2443 = vpop.xlane.xlu0 %2442
      %v2444 = vmax.f32 %v2278, %v2280
      %2445 = vmax.xlane.f32.xlu0 %v2444
      %v2446 = vpop.xlane.xlu0 %2445
      %v2447 = vmax.f32 %v2284, %v2286
      %2448 = vmax.xlane.f32.xlu0 %v2447
      %v2449 = vpop.xlane.xlu0 %2448
      %v2450 = vmax.f32 %v2290, %v2292
      %2451 = vmax.xlane.f32.xlu0 %v2450
      %v2452 = vpop.xlane.xlu0 %2451
      %v2453 = vmax.f32 %v2296, %v2298
      %2454 = vmax.xlane.f32.xlu0 %v2453
      %v2455 = vpop.xlane.xlu0 %2454
      %v2456 = vmax.f32 %v2302, %v2304
      %2457 = vmax.xlane.f32.xlu0 %v2456
      %v2458 = vpop.xlane.xlu0 %2457
      %v2459 = vmax.f32 %v2308, %v2310
      %2460 = vmax.xlane.f32.xlu0 %v2459
      %v2461 = vpop.xlane.xlu0 %2460
      %v2462 = vmax.f32 %v2314, %v2316
      %2463 = vmax.xlane.f32.xlu0 %v2462
      %v2464 = vpop.xlane.xlu0 %2463
      %v2465 = vmax.f32 %v2320, %v2322
      %2466 = vmax.xlane.f32.xlu0 %v2465
      %v2467 = vpop.xlane.xlu0 %2466
      %v2468 = vmax.f32 %v2326, %v2328
      %2469 = vmax.xlane.f32.xlu0 %v2468
      %v2470 = vpop.xlane.xlu0 %2469
      %v2471 = vmax.f32 %v2332, %v2334
      %2472 = vmax.xlane.f32.xlu0 %v2471
      %v2473 = vpop.xlane.xlu0 %2472
      %v2474 = vmax.f32 %v2338, %v2340
      %2475 = vmax.xlane.f32.xlu0 %v2474
      %v2476 = vpop.xlane.xlu0 %2475
      %v2477 = vmax.f32 %v2344, %v2346
      %2478 = vmax.xlane.f32.xlu0 %v2477
      %v2479 = vpop.xlane.xlu0 %2478
      %v2480 = vmax.f32 %v2350, %v2352
      %2481 = vmax.xlane.f32.xlu0 %v2480
      %v2482 = vpop.xlane.xlu0 %2481
      %v2483 = vmax.f32 %v2356, %v2358
      %2484 = vmax.xlane.f32.xlu0 %v2483
      %v2485 = vpop.xlane.xlu0 %2484
      %v2486 = vmax.f32 %v2362, %v2364
      %2487 = vmax.xlane.f32.xlu0 %v2486
      %v2488 = vpop.xlane.xlu0 %2487
      %v2489 = vmax.f32 %v2368, %v2370
      %2490 = vmax.xlane.f32.xlu0 %v2489
      %v2491 = vpop.xlane.xlu0 %2490
      %v2492 = vmax.f32 %v2374, %v2376
      %2493 = vmax.xlane.f32.xlu0 %v2492
      %v2494 = vpop.xlane.xlu0 %2493
      %v2495 = vmax.f32 %v2380, %v2382
      %2496 = vmax.xlane.f32.xlu0 %v2495
      %v2497 = vpop.xlane.xlu0 %2496
      %v2498 = vmax.f32 %v2386, %v2388
      %2499 = vmax.xlane.f32.xlu0 %v2498
      %v2500 = vpop.xlane.xlu0 %2499
      %v2501 = vmax.f32 %v2392, %v2394
      %2502 = vmax.xlane.f32.xlu0 %v2501
      %v2503 = vpop.xlane.xlu0 %2502
      %v2504 = vmax.f32 %v2398, %v2400
      %2505 = vmax.xlane.f32.xlu0 %v2504
      %v2506 = vpop.xlane.xlu0 %2505
      %v2507 = vmax.f32 %v2404, %v2406
      %2508 = vmax.xlane.f32.xlu0 %v2507
      %v2509 = vpop.xlane.xlu0 %2508
      %v2510 = vmax.f32 %v2410, %v2412
      %2511 = vmax.xlane.f32.xlu0 %v2510
      %v2512 = vpop.xlane.xlu0 %2511
      %v2513 = vmax.f32 %v2416, %v2418
      %2514 = vmax.xlane.f32.xlu0 %v2513
      %v2515 = vpop.xlane.xlu0 %2514
      %v2516 = vsub.f32 %v2230, %v2422
      %v2517 = vsub.f32 %v2232, %v2422
      %v2518 = vsub.f32 %v2236, %v2425
      %v2519 = vsub.f32 %v2238, %v2425
      %v2520 = vsub.f32 %v2242, %v2428
      %v2521 = vsub.f32 %v2244, %v2428
      %v2522 = vsub.f32 %v2248, %v2431
      %v2523 = vsub.f32 %v2250, %v2431
      %v2524 = vsub.f32 %v2254, %v2434
      %v2525 = vsub.f32 %v2256, %v2434
      %v2526 = vsub.f32 %v2260, %v2437
      %v2527 = vsub.f32 %v2262, %v2437
      %v2528 = vsub.f32 %v2266, %v2440
      %v2529 = vsub.f32 %v2268, %v2440
      %v2530 = vsub.f32 %v2272, %v2443
      %v2531 = vsub.f32 %v2274, %v2443
      %v2532 = vsub.f32 %v2278, %v2446
      %v2533 = vsub.f32 %v2280, %v2446
      %v2534 = vsub.f32 %v2284, %v2449
      %v2535 = vsub.f32 %v2286, %v2449
      %v2536 = vsub.f32 %v2290, %v2452
      %v2537 = vsub.f32 %v2292, %v2452
      %v2538 = vsub.f32 %v2296, %v2455
      %v2539 = vsub.f32 %v2298, %v2455
      %v2540 = vsub.f32 %v2302, %v2458
      %v2541 = vsub.f32 %v2304, %v2458
      %v2542 = vsub.f32 %v2308, %v2461
      %v2543 = vsub.f32 %v2310, %v2461
      %v2544 = vsub.f32 %v2314, %v2464
      %v2545 = vsub.f32 %v2316, %v2464
      %v2546 = vsub.f32 %v2320, %v2467
      %v2547 = vsub.f32 %v2322, %v2467
      %v2548 = vsub.f32 %v2326, %v2470
      %v2549 = vsub.f32 %v2328, %v2470
      %v2550 = vsub.f32 %v2332, %v2473
      %v2551 = vsub.f32 %v2334, %v2473
      %v2552 = vsub.f32 %v2338, %v2476
      %v2553 = vsub.f32 %v2340, %v2476
      %v2554 = vsub.f32 %v2344, %v2479
      %v2555 = vsub.f32 %v2346, %v2479
      %v2556 = vsub.f32 %v2350, %v2482
      %v2557 = vsub.f32 %v2352, %v2482
      %v2558 = vsub.f32 %v2356, %v2485
      %v2559 = vsub.f32 %v2358, %v2485
      %v2560 = vsub.f32 %v2362, %v2488
      %v2561 = vsub.f32 %v2364, %v2488
      %v2562 = vsub.f32 %v2368, %v2491
      %v2563 = vsub.f32 %v2370, %v2491
      %v2564 = vsub.f32 %v2374, %v2494
      %v2565 = vsub.f32 %v2376, %v2494
      %v2566 = vsub.f32 %v2380, %v2497
      %v2567 = vsub.f32 %v2382, %v2497
      %v2568 = vsub.f32 %v2386, %v2500
      %v2569 = vsub.f32 %v2388, %v2500
      %v2570 = vsub.f32 %v2392, %v2503
      %v2571 = vsub.f32 %v2394, %v2503
      %v2572 = vsub.f32 %v2398, %v2506
      %v2573 = vsub.f32 %v2400, %v2506
      %v2574 = vsub.f32 %v2404, %v2509
      %v2575 = vsub.f32 %v2406, %v2509
      %v2576 = vsub.f32 %v2410, %v2512
      %v2577 = vsub.f32 %v2412, %v2512
      %v2578 = vsub.f32 %v2416, %v2515
      %v2579 = vsub.f32 %v2418, %v2515
      %v2580 = vmul.f32 %v2516, 1.442695
      %v2581 = vpow.pop %v2580
      %v2582 = vmul.f32 %v2517, 1.442695
      %v2583 = vpow.pop %v2582
      %v2584 = vmul.f32 %v2518, 1.442695
      %v2585 = vpow.pop %v2584
      %v2586 = vmul.f32 %v2519, 1.442695
      %v2587 = vpow.pop %v2586
      %v2588 = vmul.f32 %v2520, 1.442695
      %v2589 = vpow.pop %v2588
      %v2590 = vmul.f32 %v2521, 1.442695
      %v2591 = vpow.pop %v2590
      %v2592 = vmul.f32 %v2522, 1.442695
      %v2593 = vpow.pop %v2592
      %v2594 = vmul.f32 %v2523, 1.442695
      %v2595 = vpow.pop %v2594
      %v2596 = vmul.f32 %v2524, 1.442695
      %v2597 = vpow.pop %v2596
      %v2598 = vmul.f32 %v2525, 1.442695
      %v2599 = vpow.pop %v2598
      %v2600 = vmul.f32 %v2526, 1.442695
      %v2601 = vpow.pop %v2600
      %v2602 = vmul.f32 %v2527, 1.442695
      %v2603 = vpow.pop %v2602
      %v2604 = vmul.f32 %v2528, 1.442695
      %v2605 = vpow.pop %v2604
      %v2606 = vmul.f32 %v2529, 1.442695
      %v2607 = vpow.pop %v2606
      %v2608 = vmul.f32 %v2530, 1.442695
      %v2609 = vpow.pop %v2608
      %v2610 = vmul.f32 %v2531, 1.442695
      %v2611 = vpow.pop %v2610
      %v2612 = vmul.f32 %v2532, 1.442695
      %v2613 = vpow.pop %v2612
      %v2614 = vmul.f32 %v2533, 1.442695
      %v2615 = vpow.pop %v2614
      %v2616 = vmul.f32 %v2534, 1.442695
      %v2617 = vpow.pop %v2616
      %v2618 = vmul.f32 %v2535, 1.442695
      %v2619 = vpow.pop %v2618
      %v2620 = vmul.f32 %v2536, 1.442695
      %v2621 = vpow.pop %v2620
      %v2622 = vmul.f32 %v2537, 1.442695
      %v2623 = vpow.pop %v2622
      %v2624 = vmul.f32 %v2538, 1.442695
      %v2625 = vpow.pop %v2624
      %v2626 = vmul.f32 %v2539, 1.442695
      %v2627 = vpow.pop %v2626
      %v2628 = vmul.f32 %v2540, 1.442695
      %v2629 = vpow.pop %v2628
      %v2630 = vmul.f32 %v2541, 1.442695
      %v2631 = vpow.pop %v2630
      %v2632 = vmul.f32 %v2542, 1.442695
      %v2633 = vpow.pop %v2632
      %v2634 = vmul.f32 %v2543, 1.442695
      %v2635 = vpow.pop %v2634
      %v2636 = vmul.f32 %v2544, 1.442695
      %v2637 = vpow.pop %v2636
      %v2638 = vmul.f32 %v2545, 1.442695
      %v2639 = vpow.pop %v2638
      %v2640 = vmul.f32 %v2546, 1.442695
      %v2641 = vpow.pop %v2640
      %v2642 = vmul.f32 %v2547, 1.442695
      %v2643 = vpow.pop %v2642
      %v2644 = vmul.f32 %v2548, 1.442695
      %v2645 = vpow.pop %v2644
      %v2646 = vmul.f32 %v2549, 1.442695
      %v2647 = vpow.pop %v2646
      %v2648 = vmul.f32 %v2550, 1.442695
      %v2649 = vpow.pop %v2648
      %v2650 = vmul.f32 %v2551, 1.442695
      %v2651 = vpow.pop %v2650
      %v2652 = vmul.f32 %v2552, 1.442695
      %v2653 = vpow.pop %v2652
      %v2654 = vmul.f32 %v2553, 1.442695
      %v2655 = vpow.pop %v2654
      %v2656 = vmul.f32 %v2554, 1.442695
      %v2657 = vpow.pop %v2656
      %v2658 = vmul.f32 %v2555, 1.442695
      %v2659 = vpow.pop %v2658
      %v2660 = vmul.f32 %v2556, 1.442695
      %v2661 = vpow.pop %v2660
      %v2662 = vmul.f32 %v2557, 1.442695
      %v2663 = vpow.pop %v2662
      %v2664 = vmul.f32 %v2558, 1.442695
      %v2665 = vpow.pop %v2664
      %v2666 = vmul.f32 %v2559, 1.442695
      %v2667 = vpow.pop %v2666
      %v2668 = vmul.f32 %v2560, 1.442695
      %v2669 = vpow.pop %v2668
      %v2670 = vmul.f32 %v2561, 1.442695
      %v2671 = vpow.pop %v2670
      %v2672 = vmul.f32 %v2562, 1.442695
      %v2673 = vpow.pop %v2672
      %v2674 = vmul.f32 %v2563, 1.442695
      %v2675 = vpow.pop %v2674
      %v2676 = vmul.f32 %v2564, 1.442695
      %v2677 = vpow.pop %v2676
      %v2678 = vmul.f32 %v2565, 1.442695
      %v2679 = vpow.pop %v2678
      %v2680 = vmul.f32 %v2566, 1.442695
      %v2681 = vpow.pop %v2680
      %v2682 = vmul.f32 %v2567, 1.442695
      %v2683 = vpow.pop %v2682
      %v2684 = vmul.f32 %v2568, 1.442695
      %v2685 = vpow.pop %v2684
      %v2686 = vmul.f32 %v2569, 1.442695
      %v2687 = vpow.pop %v2686
      %v2688 = vmul.f32 %v2570, 1.442695
      %v2689 = vpow.pop %v2688
      %v2690 = vmul.f32 %v2571, 1.442695
      %v2691 = vpow.pop %v2690
      %v2692 = vmul.f32 %v2572, 1.442695
      %v2693 = vpow.pop %v2692
      %v2694 = vmul.f32 %v2573, 1.442695
      %v2695 = vpow.pop %v2694
      %v2696 = vmul.f32 %v2574, 1.442695
      %v2697 = vpow.pop %v2696
      %v2698 = vmul.f32 %v2575, 1.442695
      %v2699 = vpow.pop %v2698
      %v2700 = vmul.f32 %v2576, 1.442695
      %v2701 = vpow.pop %v2700
      %v2702 = vmul.f32 %v2577, 1.442695
      %v2703 = vpow.pop %v2702
      %v2704 = vmul.f32 %v2578, 1.442695
      %v2705 = vpow.pop %v2704
      %v2706 = vmul.f32 %v2579, 1.442695
      %v2707 = vpow.pop %v2706
      %v2708 = vadd.f32 %v2581, %v2583
      %2709 = vadd.xlane.f32.xlu0 %v2708
      %v2710 = vpop.xlane.xlu0 %2709
      %v2711 = vadd.f32 %v2585, %v2587
      %2712 = vadd.xlane.f32.xlu0 %v2711
      %v2713 = vpop.xlane.xlu0 %2712
      %v2714 = vadd.f32 %v2589, %v2591
      %2715 = vadd.xlane.f32.xlu0 %v2714
      %v2716 = vpop.xlane.xlu0 %2715
      %v2717 = vadd.f32 %v2593, %v2595
      %2718 = vadd.xlane.f32.xlu0 %v2717
      %v2719 = vpop.xlane.xlu0 %2718
      %v2720 = vadd.f32 %v2597, %v2599
      %2721 = vadd.xlane.f32.xlu0 %v2720
      %v2722 = vpop.xlane.xlu0 %2721
      %v2723 = vadd.f32 %v2601, %v2603
      %2724 = vadd.xlane.f32.xlu0 %v2723
      %v2725 = vpop.xlane.xlu0 %2724
      %v2726 = vadd.f32 %v2605, %v2607
      %2727 = vadd.xlane.f32.xlu0 %v2726
      %v2728 = vpop.xlane.xlu0 %2727
      %v2729 = vadd.f32 %v2609, %v2611
      %2730 = vadd.xlane.f32.xlu0 %v2729
      %v2731 = vpop.xlane.xlu0 %2730
      %v2732 = vadd.f32 %v2613, %v2615
      %2733 = vadd.xlane.f32.xlu0 %v2732
      %v2734 = vpop.xlane.xlu0 %2733
      %v2735 = vadd.f32 %v2617, %v2619
      %2736 = vadd.xlane.f32.xlu0 %v2735
      %v2737 = vpop.xlane.xlu0 %2736
      %v2738 = vadd.f32 %v2621, %v2623
      %2739 = vadd.xlane.f32.xlu0 %v2738
      %v2740 = vpop.xlane.xlu0 %2739
      %v2741 = vadd.f32 %v2625, %v2627
      %2742 = vadd.xlane.f32.xlu0 %v2741
      %v2743 = vpop.xlane.xlu0 %2742
      %v2744 = vadd.f32 %v2629, %v2631
      %2745 = vadd.xlane.f32.xlu0 %v2744
      %v2746 = vpop.xlane.xlu0 %2745
      %v2747 = vadd.f32 %v2633, %v2635
      %2748 = vadd.xlane.f32.xlu0 %v2747
      %v2749 = vpop.xlane.xlu0 %2748
      %v2750 = vadd.f32 %v2637, %v2639
      %2751 = vadd.xlane.f32.xlu0 %v2750
      %v2752 = vpop.xlane.xlu0 %2751
      %v2753 = vadd.f32 %v2641, %v2643
      %2754 = vadd.xlane.f32.xlu0 %v2753
      %v2755 = vpop.xlane.xlu0 %2754
      %v2756 = vadd.f32 %v2645, %v2647
      %2757 = vadd.xlane.f32.xlu0 %v2756
      %v2758 = vpop.xlane.xlu0 %2757
      %v2759 = vadd.f32 %v2649, %v2651
      %2760 = vadd.xlane.f32.xlu0 %v2759
      %v2761 = vpop.xlane.xlu0 %2760
      %v2762 = vadd.f32 %v2653, %v2655
      %2763 = vadd.xlane.f32.xlu0 %v2762
      %v2764 = vpop.xlane.xlu0 %2763
      %v2765 = vadd.f32 %v2657, %v2659
      %2766 = vadd.xlane.f32.xlu0 %v2765
      %v2767 = vpop.xlane.xlu0 %2766
      %v2768 = vadd.f32 %v2661, %v2663
      %2769 = vadd.xlane.f32.xlu0 %v2768
      %v2770 = vpop.xlane.xlu0 %2769
      %v2771 = vadd.f32 %v2665, %v2667
      %2772 = vadd.xlane.f32.xlu0 %v2771
      %v2773 = vpop.xlane.xlu0 %2772
      %v2774 = vadd.f32 %v2669, %v2671
      %2775 = vadd.xlane.f32.xlu0 %v2774
      %v2776 = vpop.xlane.xlu0 %2775
      %v2777 = vadd.f32 %v2673, %v2675
      %2778 = vadd.xlane.f32.xlu0 %v2777
      %v2779 = vpop.xlane.xlu0 %2778
      %v2780 = vadd.f32 %v2677, %v2679
      %2781 = vadd.xlane.f32.xlu0 %v2780
      %v2782 = vpop.xlane.xlu0 %2781
      %v2783 = vadd.f32 %v2681, %v2683
      %2784 = vadd.xlane.f32.xlu0 %v2783
      %v2785 = vpop.xlane.xlu0 %2784
      %v2786 = vadd.f32 %v2685, %v2687
      %2787 = vadd.xlane.f32.xlu0 %v2786
      %v2788 = vpop.xlane.xlu0 %2787
      %v2789 = vadd.f32 %v2689, %v2691
      %2790 = vadd.xlane.f32.xlu0 %v2789
      %v2791 = vpop.xlane.xlu0 %2790
      %v2792 = vadd.f32 %v2693, %v2695
      %2793 = vadd.xlane.f32.xlu0 %v2792
      %v2794 = vpop.xlane.xlu0 %2793
      %v2795 = vadd.f32 %v2697, %v2699
      %2796 = vadd.xlane.f32.xlu0 %v2795
      %v2797 = vpop.xlane.xlu0 %2796
      %v2798 = vadd.f32 %v2701, %v2703
      %2799 = vadd.xlane.f32.xlu0 %v2798
      %v2800 = vpop.xlane.xlu0 %2799
      %v2801 = vadd.f32 %v2705, %v2707
      %2802 = vadd.xlane.f32.xlu0 %v2801
      %v2803 = vpop.xlane.xlu0 %2802
      %v2804 = vrcp.pop %v2710
      %v2805 = vrcp.pop %v2713
      %v2806 = vrcp.pop %v2716
      %v2807 = vrcp.pop %v2719
      %v2808 = vrcp.pop %v2722
      %v2809 = vrcp.pop %v2725
      %v2810 = vrcp.pop %v2728
      %v2811 = vrcp.pop %v2731
      %v2812 = vrcp.pop %v2734
      %v2813 = vrcp.pop %v2737
      %v2814 = vrcp.pop %v2740
      %v2815 = vrcp.pop %v2743
      %v2816 = vrcp.pop %v2746
      %v2817 = vrcp.pop %v2749
      %v2818 = vrcp.pop %v2752
      %v2819 = vrcp.pop %v2755
      %v2820 = vrcp.pop %v2758
      %v2821 = vrcp.pop %v2761
      %v2822 = vrcp.pop %v2764
      %v2823 = vrcp.pop %v2767
      %v2824 = vrcp.pop %v2770
      %v2825 = vrcp.pop %v2773
      %v2826 = vrcp.pop %v2776
      %v2827 = vrcp.pop %v2779
      %v2828 = vrcp.pop %v2782
      %v2829 = vrcp.pop %v2785
      %v2830 = vrcp.pop %v2788
      %v2831 = vrcp.pop %v2791
      %v2832 = vrcp.pop %v2794
      %v2833 = vrcp.pop %v2797
      %v2834 = vrcp.pop %v2800
      %v2835 = vrcp.pop %v2803
      %v2836 = vmul.f32 %v2581, %v2804
      %v2837 = vmul.f32 %v2583, %v2804
      %v2838 = vmul.f32 %v2585, %v2805
      %v2839 = vmul.f32 %v2587, %v2805
      %v2840 = vmul.f32 %v2589, %v2806
      %v2841 = vmul.f32 %v2591, %v2806
      %v2842 = vmul.f32 %v2593, %v2807
      %v2843 = vmul.f32 %v2595, %v2807
      %v2844 = vmul.f32 %v2597, %v2808
      %v2845 = vmul.f32 %v2599, %v2808
      %v2846 = vmul.f32 %v2601, %v2809
      %v2847 = vmul.f32 %v2603, %v2809
      %v2848 = vmul.f32 %v2605, %v2810
      %v2849 = vmul.f32 %v2607, %v2810
      %v2850 = vmul.f32 %v2609, %v2811
      %v2851 = vmul.f32 %v2611, %v2811
      %v2852 = vmul.f32 %v2613, %v2812
      %v2853 = vmul.f32 %v2615, %v2812
      %v2854 = vmul.f32 %v2617, %v2813
      %v2855 = vmul.f32 %v2619, %v2813
      %v2856 = vmul.f32 %v2621, %v2814
      %v2857 = vmul.f32 %v2623, %v2814
      %v2858 = vmul.f32 %v2625, %v2815
      %v2859 = vmul.f32 %v2627, %v2815
      %v2860 = vmul.f32 %v2629, %v2816
      %v2861 = vmul.f32 %v2631, %v2816
      %v2862 = vmul.f32 %v2633, %v2817
      %v2863 = vmul.f32 %v2635, %v2817
      %v2864 = vmul.f32 %v2637, %v2818
      %v2865 = vmul.f32 %v2639, %v2818
      %v2866 = vmul.f32 %v2641, %v2819
      %v2867 = vmul.f32 %v2643, %v2819
      %v2868 = vmul.f32 %v2645, %v2820
      %v2869 = vmul.f32 %v2647, %v2820
      %v2870 = vmul.f32 %v2649, %v2821
      %v2871 = vmul.f32 %v2651, %v2821
      %v2872 = vmul.f32 %v2653, %v2822
      %v2873 = vmul.f32 %v2655, %v2822
      %v2874 = vmul.f32 %v2657, %v2823
      %v2875 = vmul.f32 %v2659, %v2823
      %v2876 = vmul.f32 %v2661, %v2824
      %v2877 = vmul.f32 %v2663, %v2824
      %v2878 = vmul.f32 %v2665, %v2825
      %v2879 = vmul.f32 %v2667, %v2825
      %v2880 = vmul.f32 %v2669, %v2826
      %v2881 = vmul.f32 %v2671, %v2826
      %v2882 = vmul.f32 %v2673, %v2827
      %v2883 = vmul.f32 %v2675, %v2827
      %v2884 = vmul.f32 %v2677, %v2828
      %v2885 = vmul.f32 %v2679, %v2828
      %v2886 = vmul.f32 %v2681, %v2829
      %v2887 = vmul.f32 %v2683, %v2829
      %v2888 = vmul.f32 %v2685, %v2830
      %v2889 = vmul.f32 %v2687, %v2830
      %v2890 = vmul.f32 %v2689, %v2831
      %v2891 = vmul.f32 %v2691, %v2831
      %v2892 = vmul.f32 %v2693, %v2832
      %v2893 = vmul.f32 %v2695, %v2832
      %v2894 = vmul.f32 %v2697, %v2833
      %v2895 = vmul.f32 %v2699, %v2833
      %v2896 = vmul.f32 %v2701, %v2834
      %v2897 = vmul.f32 %v2703, %v2834
      %v2898 = vmul.f32 %v2705, %v2835
      %v2899 = vmul.f32 %v2707, %v2835
      %v2900 = vrot.slane %v458, 6
      %v2901 = vrot.slane %v460, 6
      %2904 = vmatprep.subr.mxu0 0.0
      %2905 = vmatpush1.xpose.msra.mxu0 0.0
      %2906 = vmatprep.subr.mxu0 0.0
      %2907 = vmatpush1.xpose.msra.mxu0 0.0
      %2908 = vmatprep.subr.mxu0 0.0
      %2909 = vmatpush1.xpose.msra.mxu0 0.0
      %2910 = vmatprep.subr.mxu0 0.0
      %2911 = vmatpush1.xpose.msra.mxu0 0.0
      %2912 = vmatprep.subr.mxu0 0.0
      %2913 = vmatpush1.xpose.msra.mxu0 0.0
      %2914 = vmatprep.subr.mxu0 0.0
      %2915 = vmatpush1.xpose.msra.mxu0 0.0
      %2916 = vmatprep.subr.mxu0 0.0
      %2917 = vmatpush1.xpose.msra.mxu0 0.0
      %2918 = vmatprep.subr.mxu0 0.0
      %2919 = vmatpush1.xpose.msra.mxu0 0.0
      %2920 = vmatprep.subr.mxu0 0.0
      %2921 = vmatpush1.xpose.msra.mxu0 0.0
      %2922 = vmatprep.subr.mxu0 0.0
      %2923 = vmatpush1.xpose.msra.mxu0 0.0
      %2924 = vmatprep.subr.mxu0 0.0
      %2925 = vmatpush1.xpose.msra.mxu0 0.0
      %2926 = vmatprep.subr.mxu0 0.0
      %2927 = vmatpush1.xpose.msra.mxu0 0.0
      %2928 = vmatprep.subr.mxu0 0.0
      %2929 = vmatpush1.xpose.msra.mxu0 0.0
      %2930 = vmatprep.subr.mxu0 0.0
      %2931 = vmatpush1.xpose.msra.mxu0 0.0
      %2932 = vmatprep.subr.mxu0 0.0
      %2933 = vmatpush1.xpose.msra.mxu0 0.0
      %2934 = vmatprep.subr.mxu0 %v2901
      %2935 = vmatpush1.xpose.msra.mxu0 %v2900
      %2936 = vmatprep.subr.mxu0 0.0
      %2937 = vmatpush2.xpose.msra.mxu0 0.0
      %2938 = vmatprep.subr.mxu0 0.0
      %2939 = vmatpush2.xpose.msra.mxu0 0.0
      %2940 = vmatprep.subr.mxu0 0.0
      %2941 = vmatpush2.xpose.msra.mxu0 0.0
      %2942 = vmatprep.subr.mxu0 0.0
      %2943 = vmatpush2.xpose.msra.mxu0 0.0
      %2944 = vmatprep.subr.mxu0 0.0
      %2945 = vmatpush2.xpose.msra.mxu0 0.0
      %2946 = vmatprep.subr.mxu0 0.0
      %2947 = vmatpush2.xpose.msra.mxu0 0.0
      %2948 = vmatprep.subr.mxu0 0.0
      %2949 = vmatpush2.xpose.msra.mxu0 0.0
      %2950 = vmatprep.subr.mxu0 0.0
      %2951 = vmatpush2.xpose.msra.mxu0 0.0
      %2952 = vmatprep.subr.mxu0 0.0
      %2953 = vmatpush2.xpose.msra.mxu0 0.0
      %2954 = vmatprep.subr.mxu0 0.0
      %2955 = vmatpush2.xpose.msra.mxu0 0.0
      %2956 = vmatprep.subr.mxu0 0.0
      %2957 = vmatpush2.xpose.msra.mxu0 0.0
      %2958 = vmatprep.subr.mxu0 0.0
      %2959 = vmatpush2.xpose.msra.mxu0 0.0
      %2960 = vmatprep.subr.mxu0 0.0
      %2961 = vmatpush2.xpose.msra.mxu0 0.0
      %2962 = vmatprep.subr.mxu0 0.0
      %2963 = vmatpush2.xpose.msra.mxu0 0.0
      %2964 = vmatprep.subr.mxu0 0.0
      %2965 = vmatpush2.xpose.msra.mxu0 0.0
      %2966 = vmatprep.subr.mxu0 0.0
      %2967 = vmatpush2.xpose.msra.mxu0 0.0
      %2968 = vmatprep.mubr.f32.mxu0 %v2837
      %2969 = vmatmul.mubr.f32.gmra.mxu0 %v2836
      %v2970 = vpop.f32.mrf.mxu0
      %v2971 = vadd.f32 0.0, %v2970
      %v2972 = vpop.f32.mrf.mxu0
      %2973 = vmatprep.mubr.f32.mxu0 %v2839
      %2974 = vmatmul.mubr.f32.gmra.mxu0 %v2838
      %v2975 = vpop.f32.mrf.mxu0
      %v2976 = vadd.f32 0.0, %v2975
      %v2977 = vpop.f32.mrf.mxu0
      %2978 = vmatprep.mubr.f32.mxu0 %v2841
      %2979 = vmatmul.mubr.f32.gmra.mxu0 %v2840
      %v2980 = vpop.f32.mrf.mxu0
      %v2981 = vadd.f32 0.0, %v2980
      %v2982 = vpop.f32.mrf.mxu0
      %2983 = vmatprep.mubr.f32.mxu0 %v2843
      %2984 = vmatmul.mubr.f32.gmra.mxu0 %v2842
      %v2985 = vpop.f32.mrf.mxu0
      %v2986 = vadd.f32 0.0, %v2985
      %v2987 = vpop.f32.mrf.mxu0
      %2988 = vmatprep.mubr.f32.mxu0 %v2845
      %2989 = vmatmul.mubr.f32.gmra.mxu0 %v2844
      %v2990 = vpop.f32.mrf.mxu0
      %v2991 = vadd.f32 0.0, %v2990
      %v2992 = vpop.f32.mrf.mxu0
      %2993 = vmatprep.mubr.f32.mxu0 %v2847
      %2994 = vmatmul.mubr.f32.gmra.mxu0 %v2846
      %v2995 = vpop.f32.mrf.mxu0
      %v2996 = vadd.f32 0.0, %v2995
      %v2997 = vpop.f32.mrf.mxu0
      %2998 = vmatprep.mubr.f32.mxu0 %v2849
      %2999 = vmatmul.mubr.f32.gmra.mxu0 %v2848
      %v3000 = vpop.f32.mrf.mxu0
      %v3001 = vadd.f32 0.0, %v3000
      %v3002 = vpop.f32.mrf.mxu0
      %3003 = vmatprep.mubr.f32.mxu0 %v2851
      %3004 = vmatmul.mubr.f32.gmra.mxu0 %v2850
      %v3005 = vpop.f32.mrf.mxu0
      %v3006 = vadd.f32 0.0, %v3005
      %v3007 = vpop.f32.mrf.mxu0
      %3008 = vmatprep.mubr.f32.mxu0 %v2853
      %3009 = vmatmul.mubr.f32.gmra.mxu0 %v2852
      %v3010 = vpop.f32.mrf.mxu0
      %v3011 = vadd.f32 0.0, %v3010
      %v3012 = vpop.f32.mrf.mxu0
      %3013 = vmatprep.mubr.f32.mxu0 %v2855
      %3014 = vmatmul.mubr.f32.gmra.mxu0 %v2854
      %v3015 = vpop.f32.mrf.mxu0
      %v3016 = vadd.f32 0.0, %v3015
      %v3017 = vpop.f32.mrf.mxu0
      %3018 = vmatprep.mubr.f32.mxu0 %v2857
      %3019 = vmatmul.mubr.f32.gmra.mxu0 %v2856
      %v3020 = vpop.f32.mrf.mxu0
      %v3021 = vadd.f32 0.0, %v3020
      %v3022 = vpop.f32.mrf.mxu0
      %3023 = vmatprep.mubr.f32.mxu0 %v2859
      %3024 = vmatmul.mubr.f32.gmra.mxu0 %v2858
      %v3025 = vpop.f32.mrf.mxu0
      %v3026 = vadd.f32 0.0, %v3025
      %v3027 = vpop.f32.mrf.mxu0
      %3028 = vmatprep.mubr.f32.mxu0 %v2861
      %3029 = vmatmul.mubr.f32.gmra.mxu0 %v2860
      %v3030 = vpop.f32.mrf.mxu0
      %v3031 = vadd.f32 0.0, %v3030
      %v3032 = vpop.f32.mrf.mxu0
      %3033 = vmatprep.mubr.f32.mxu0 %v2863
      %3034 = vmatmul.mubr.f32.gmra.mxu0 %v2862
      %v3035 = vpop.f32.mrf.mxu0
      %v3036 = vadd.f32 0.0, %v3035
      %v3037 = vpop.f32.mrf.mxu0
      %3038 = vmatprep.mubr.f32.mxu0 %v2865
      %3039 = vmatmul.mubr.f32.gmra.mxu0 %v2864
      %v3040 = vpop.f32.mrf.mxu0
      %v3041 = vadd.f32 0.0, %v3040
      %v3042 = vpop.f32.mrf.mxu0
      %3043 = vmatprep.mubr.f32.mxu0 %v2867
      %3044 = vmatmul.mubr.f32.gmra.mxu0 %v2866
      %v3045 = vpop.f32.mrf.mxu0
      %v3046 = vadd.f32 0.0, %v3045
      %v3047 = vpop.f32.mrf.mxu0
      %3048 = vmatprep.mubr.f32.mxu0 %v2869
      %3049 = vmatmul.mubr.f32.gmra.mxu0 %v2868
      %v3050 = vpop.f32.mrf.mxu0
      %v3051 = vadd.f32 0.0, %v3050
      %v3052 = vpop.f32.mrf.mxu0
      %3053 = vmatprep.mubr.f32.mxu0 %v2871
      %3054 = vmatmul.mubr.f32.gmra.mxu0 %v2870
      %v3055 = vpop.f32.mrf.mxu0
      %v3056 = vadd.f32 0.0, %v3055
      %v3057 = vpop.f32.mrf.mxu0
      %3058 = vmatprep.mubr.f32.mxu0 %v2873
      %3059 = vmatmul.mubr.f32.gmra.mxu0 %v2872
      %v3060 = vpop.f32.mrf.mxu0
      %v3061 = vadd.f32 0.0, %v3060
      %v3062 = vpop.f32.mrf.mxu0
      %3063 = vmatprep.mubr.f32.mxu0 %v2875
      %3064 = vmatmul.mubr.f32.gmra.mxu0 %v2874
      %v3065 = vpop.f32.mrf.mxu0
      %v3066 = vadd.f32 0.0, %v3065
      %v3067 = vpop.f32.mrf.mxu0
      %3068 = vmatprep.mubr.f32.mxu0 %v2877
      %3069 = vmatmul.mubr.f32.gmra.mxu0 %v2876
      %v3070 = vpop.f32.mrf.mxu0
      %v3071 = vadd.f32 0.0, %v3070
      %v3072 = vpop.f32.mrf.mxu0
      %3073 = vmatprep.mubr.f32.mxu0 %v2879
      %3074 = vmatmul.mubr.f32.gmra.mxu0 %v2878
      %v3075 = vpop.f32.mrf.mxu0
      %v3076 = vadd.f32 0.0, %v3075
      %v3077 = vpop.f32.mrf.mxu0
      %3078 = vmatprep.mubr.f32.mxu0 %v2881
      %3079 = vmatmul.mubr.f32.gmra.mxu0 %v2880
      %v3080 = vpop.f32.mrf.mxu0
      %v3081 = vadd.f32 0.0, %v3080
      %v3082 = vpop.f32.mrf.mxu0
      %3083 = vmatprep.mubr.f32.mxu0 %v2883
      %3084 = vmatmul.mubr.f32.gmra.mxu0 %v2882
      %v3085 = vpop.f32.mrf.mxu0
      %v3086 = vadd.f32 0.0, %v3085
      %v3087 = vpop.f32.mrf.mxu0
      %3088 = vmatprep.mubr.f32.mxu0 %v2885
      %3089 = vmatmul.mubr.f32.gmra.mxu0 %v2884
      %v3090 = vpop.f32.mrf.mxu0
      %v3091 = vadd.f32 0.0, %v3090
      %v3092 = vpop.f32.mrf.mxu0
      %3093 = vmatprep.mubr.f32.mxu0 %v2887
      %3094 = vmatmul.mubr.f32.gmra.mxu0 %v2886
      %v3095 = vpop.f32.mrf.mxu0
      %v3096 = vadd.f32 0.0, %v3095
      %v3097 = vpop.f32.mrf.mxu0
      %3098 = vmatprep.mubr.f32.mxu0 %v2889
      %3099 = vmatmul.mubr.f32.gmra.mxu0 %v2888
      %v3100 = vpop.f32.mrf.mxu0
      %v3101 = vadd.f32 0.0, %v3100
      %v3102 = vpop.f32.mrf.mxu0
      %3103 = vmatprep.mubr.f32.mxu0 %v2891
      %3104 = vmatmul.mubr.f32.gmra.mxu0 %v2890
      %v3105 = vpop.f32.mrf.mxu0
      %v3106 = vadd.f32 0.0, %v3105
      %v3107 = vpop.f32.mrf.mxu0
      %3108 = vmatprep.mubr.f32.mxu0 %v2893
      %3109 = vmatmul.mubr.f32.gmra.mxu0 %v2892
      %v3110 = vpop.f32.mrf.mxu0
      %v3111 = vadd.f32 0.0, %v3110
      %v3112 = vpop.f32.mrf.mxu0
      %3113 = vmatprep.mubr.f32.mxu0 %v2895
      %3114 = vmatmul.mubr.f32.gmra.mxu0 %v2894
      %v3115 = vpop.f32.mrf.mxu0
      %v3116 = vadd.f32 0.0, %v3115
      %v3117 = vpop.f32.mrf.mxu0
      %3118 = vmatprep.mubr.f32.mxu0 %v2897
      %3119 = vmatmul.mubr.f32.gmra.mxu0 %v2896
      %v3120 = vpop.f32.mrf.mxu0
      %v3121 = vadd.f32 0.0, %v3120
      %v3122 = vpop.f32.mrf.mxu0
      %3123 = vmatprep.mubr.f32.mxu0 %v2899
      %3124 = vmatmul.mubr.f32.gmra.mxu0 %v2898
      %v3125 = vpop.f32.mrf.mxu0
      %v3126 = vadd.f32 0.0, %v3125
      %v3127 = vpop.f32.mrf.mxu0
      %3128 = vdwg.mxu0
      %v3133 = vlaneseq
      %v3134 = vshrl.u32 %v3133, 7
      %v3135 = vsub.s32 0, %v3134
      %v3136 = vrot.slane %v469, %v3135
      %v3137 = vlaneseq
      %v3138 = vshrl.u32 %v3137, 7
      %v3139 = vsub.s32 0, %v3138
      %v3140 = vrot.slane %v473, %v3139
      %v3141 = vlaneseq
      %v3142 = vshrl.u32 %v3141, 7
      %v3143 = vsub.s32 0, %v3142
      %v3144 = vrot.slane %v477, %v3143
      %v3145 = vlaneseq
      %v3146 = vshrl.u32 %v3145, 7
      %v3147 = vsub.s32 0, %v3146
      %v3148 = vrot.slane %v481, %v3147
      %3149 = vset.pattern.permute.xlu0 0
      %3150 = vperm.xlu0 %3149, %v3136
      %v3151 = vpop.permute.xlu0 %3150
      %3153 = vset.pattern.permute.xlu0 0
      %3154 = vperm.xlu0 %3153, %v3140
      %v3155 = vpop.permute.xlu0 %3154
      %3157 = vset.pattern.permute.xlu0 0
      %3158 = vperm.xlu0 %3157, %v3144
      %v3159 = vpop.permute.xlu0 %3158
      %3161 = vset.pattern.permute.xlu0 0
      %3162 = vperm.xlu0 %3161, %v3148
      %v3163 = vpop.permute.xlu0 %3162
      %v3165 = vmul.f32 %v3151, %v2971
      %v3166 = vmul.f32 %v3151, %v2976
      %v3167 = vmul.f32 %v3151, %v2981
      %v3168 = vmul.f32 %v3151, %v2986
      %v3169 = vmul.f32 %v3151, %v2991
      %v3170 = vmul.f32 %v3151, %v2996
      %v3171 = vmul.f32 %v3151, %v3001
      %v3172 = vmul.f32 %v3151, %v3006
      %v3173 = vmul.f32 %v3151, %v3011
      %v3174 = vmul.f32 %v3151, %v3016
      %v3175 = vmul.f32 %v3151, %v3021
      %v3176 = vmul.f32 %v3151, %v3026
      %v3177 = vmul.f32 %v3151, %v3031
      %v3178 = vmul.f32 %v3151, %v3036
      %v3179 = vmul.f32 %v3151, %v3041
      %v3180 = vmul.f32 %v3151, %v3046
      %v3181 = vmul.f32 %v3155, %v2971
      %v3182 = vmul.f32 %v3155, %v2976
      %v3183 = vmul.f32 %v3155, %v2981
      %v3184 = vmul.f32 %v3155, %v2986
      %v3185 = vmul.f32 %v3155, %v2991
      %v3186 = vmul.f32 %v3155, %v2996
      %v3187 = vmul.f32 %v3155, %v3001
      %v3188 = vmul.f32 %v3155, %v3006
      %v3189 = vmul.f32 %v3155, %v3011
      %v3190 = vmul.f32 %v3155, %v3016
      %v3191 = vmul.f32 %v3155, %v3021
      %v3192 = vmul.f32 %v3155, %v3026
      %v3193 = vmul.f32 %v3155, %v3031
      %v3194 = vmul.f32 %v3155, %v3036
      %v3195 = vmul.f32 %v3155, %v3041
      %v3196 = vmul.f32 %v3155, %v3046
      %v3197 = vmul.f32 %v3159, %v2971
      %v3198 = vmul.f32 %v3159, %v2976
      %v3199 = vmul.f32 %v3159, %v2981
      %v3200 = vmul.f32 %v3159, %v2986
      %v3201 = vmul.f32 %v3159, %v2991
      %v3202 = vmul.f32 %v3159, %v2996
      %v3203 = vmul.f32 %v3159, %v3001
      %v3204 = vmul.f32 %v3159, %v3006
      %v3205 = vmul.f32 %v3159, %v3011
      %v3206 = vmul.f32 %v3159, %v3016
      %v3207 = vmul.f32 %v3159, %v3021
      %v3208 = vmul.f32 %v3159, %v3026
      %v3209 = vmul.f32 %v3159, %v3031
      %v3210 = vmul.f32 %v3159, %v3036
      %v3211 = vmul.f32 %v3159, %v3041
      %v3212 = vmul.f32 %v3159, %v3046
      %v3213 = vmul.f32 %v3163, %v2971
      %v3214 = vmul.f32 %v3163, %v2976
      %v3215 = vmul.f32 %v3163, %v2981
      %v3216 = vmul.f32 %v3163, %v2986
      %v3217 = vmul.f32 %v3163, %v2991
      %v3218 = vmul.f32 %v3163, %v2996
      %v3219 = vmul.f32 %v3163, %v3001
      %v3220 = vmul.f32 %v3163, %v3006
      %v3221 = vmul.f32 %v3163, %v3011
      %v3222 = vmul.f32 %v3163, %v3016
      %v3223 = vmul.f32 %v3163, %v3021
      %v3224 = vmul.f32 %v3163, %v3026
      %v3225 = vmul.f32 %v3163, %v3031
      %v3226 = vmul.f32 %v3163, %v3036
      %v3227 = vmul.f32 %v3163, %v3041
      %v3228 = vmul.f32 %v3163, %v3046
      %v3229 = vadd.f32 %v1929, %v3165
      %v3230 = vadd.f32 %v1930, %v3166
      %v3231 = vadd.f32 %v1931, %v3167
      %v3232 = vadd.f32 %v1932, %v3168
      %v3233 = vadd.f32 %v1933, %v3169
      %v3234 = vadd.f32 %v1934, %v3170
      %v3235 = vadd.f32 %v1935, %v3171
      %v3236 = vadd.f32 %v1936, %v3172
      %v3237 = vadd.f32 %v1937, %v3173
      %v3238 = vadd.f32 %v1938, %v3174
      %v3239 = vadd.f32 %v1939, %v3175
      %v3240 = vadd.f32 %v1940, %v3176
      %v3241 = vadd.f32 %v1941, %v3177
      %v3242 = vadd.f32 %v1942, %v3178
      %v3243 = vadd.f32 %v1943, %v3179
      %v3244 = vadd.f32 %v1944, %v3180
      %v3245 = vadd.f32 %v1945, %v3181
      %v3246 = vadd.f32 %v1946, %v3182
      %v3247 = vadd.f32 %v1947, %v3183
      %v3248 = vadd.f32 %v1948, %v3184
      %v3249 = vadd.f32 %v1949, %v3185
      %v3250 = vadd.f32 %v1950, %v3186
      %v3251 = vadd.f32 %v1951, %v3187
      %v3252 = vadd.f32 %v1952, %v3188
      %v3253 = vadd.f32 %v1953, %v3189
      %v3254 = vadd.f32 %v1954, %v3190
      %v3255 = vadd.f32 %v1955, %v3191
      %v3256 = vadd.f32 %v1956, %v3192
      %v3257 = vadd.f32 %v1957, %v3193
      %v3258 = vadd.f32 %v1958, %v3194
      %v3259 = vadd.f32 %v1959, %v3195
      %v3260 = vadd.f32 %v1960, %v3196
      %v3261 = vadd.f32 %v1961, %v3197
      %v3262 = vadd.f32 %v1962, %v3198
      %v3263 = vadd.f32 %v1963, %v3199
      %v3264 = vadd.f32 %v1964, %v3200
      %v3265 = vadd.f32 %v1965, %v3201
      %v3266 = vadd.f32 %v1966, %v3202
      %v3267 = vadd.f32 %v1967, %v3203
      %v3268 = vadd.f32 %v1968, %v3204
      %v3269 = vadd.f32 %v1969, %v3205
      %v3270 = vadd.f32 %v1970, %v3206
      %v3271 = vadd.f32 %v1971, %v3207
      %v3272 = vadd.f32 %v1972, %v3208
      %v3273 = vadd.f32 %v1973, %v3209
      %v3274 = vadd.f32 %v1974, %v3210
      %v3275 = vadd.f32 %v1975, %v3211
      %v3276 = vadd.f32 %v1976, %v3212
      %v3277 = vadd.f32 %v1977, %v3213
      %v3278 = vadd.f32 %v1978, %v3214
      %v3279 = vadd.f32 %v1979, %v3215
      %v3280 = vadd.f32 %v1980, %v3216
      %v3281 = vadd.f32 %v1981, %v3217
      %v3282 = vadd.f32 %v1982, %v3218
      %v3283 = vadd.f32 %v1983, %v3219
      %v3284 = vadd.f32 %v1984, %v3220
      %v3285 = vadd.f32 %v1985, %v3221
      %v3286 = vadd.f32 %v1986, %v3222
      %v3287 = vadd.f32 %v1987, %v3223
      %v3288 = vadd.f32 %v1988, %v3224
      %v3289 = vadd.f32 %v1989, %v3225
      %v3290 = vadd.f32 %v1990, %v3226
      %v3291 = vadd.f32 %v1991, %v3227
      %v3292 = vadd.f32 %v1992, %v3228
      %v3297 = vlaneseq
      %v3298 = vshrl.u32 %v3297, 7
      %v3299 = vsub.s32 0, %v3298
      %v3300 = vrot.slane %v470, %v3299
      %v3301 = vlaneseq
      %v3302 = vshrl.u32 %v3301, 7
      %v3303 = vsub.s32 0, %v3302
      %v3304 = vrot.slane %v474, %v3303
      %v3305 = vlaneseq
      %v3306 = vshrl.u32 %v3305, 7
      %v3307 = vsub.s32 0, %v3306
      %v3308 = vrot.slane %v478, %v3307
      %v3309 = vlaneseq
      %v3310 = vshrl.u32 %v3309, 7
      %v3311 = vsub.s32 0, %v3310
      %v3312 = vrot.slane %v482, %v3311
      %3313 = vset.pattern.permute.xlu0 0
      %3314 = vperm.xlu0 %3313, %v3300
      %v3315 = vpop.permute.xlu0 %3314
      %3317 = vset.pattern.permute.xlu0 0
      %3318 = vperm.xlu0 %3317, %v3304
      %v3319 = vpop.permute.xlu0 %3318
      %3321 = vset.pattern.permute.xlu0 0
      %3322 = vperm.xlu0 %3321, %v3308
      %v3323 = vpop.permute.xlu0 %3322
      %3325 = vset.pattern.permute.xlu0 0
      %3326 = vperm.xlu0 %3325, %v3312
      %v3327 = vpop.permute.xlu0 %3326
      %v3329 = vmul.f32 %v3315, %v3051
      %v3330 = vmul.f32 %v3315, %v3056
      %v3331 = vmul.f32 %v3315, %v3061
      %v3332 = vmul.f32 %v3315, %v3066
      %v3333 = vmul.f32 %v3315, %v3071
      %v3334 = vmul.f32 %v3315, %v3076
      %v3335 = vmul.f32 %v3315, %v3081
      %v3336 = vmul.f32 %v3315, %v3086
      %v3337 = vmul.f32 %v3315, %v3091
      %v3338 = vmul.f32 %v3315, %v3096
      %v3339 = vmul.f32 %v3315, %v3101
      %v3340 = vmul.f32 %v3315, %v3106
      %v3341 = vmul.f32 %v3315, %v3111
      %v3342 = vmul.f32 %v3315, %v3116
      %v3343 = vmul.f32 %v3315, %v3121
      %v3344 = vmul.f32 %v3315, %v3126
      %v3345 = vmul.f32 %v3319, %v3051
      %v3346 = vmul.f32 %v3319, %v3056
      %v3347 = vmul.f32 %v3319, %v3061
      %v3348 = vmul.f32 %v3319, %v3066
      %v3349 = vmul.f32 %v3319, %v3071
      %v3350 = vmul.f32 %v3319, %v3076
      %v3351 = vmul.f32 %v3319, %v3081
      %v3352 = vmul.f32 %v3319, %v3086
      %v3353 = vmul.f32 %v3319, %v3091
      %v3354 = vmul.f32 %v3319, %v3096
      %v3355 = vmul.f32 %v3319, %v3101
      %v3356 = vmul.f32 %v3319, %v3106
      %v3357 = vmul.f32 %v3319, %v3111
      %v3358 = vmul.f32 %v3319, %v3116
      %v3359 = vmul.f32 %v3319, %v3121
      %v3360 = vmul.f32 %v3319, %v3126
      %v3361 = vmul.f32 %v3323, %v3051
      %v3362 = vmul.f32 %v3323, %v3056
      %v3363 = vmul.f32 %v3323, %v3061
      %v3364 = vmul.f32 %v3323, %v3066
      %v3365 = vmul.f32 %v3323, %v3071
      %v3366 = vmul.f32 %v3323, %v3076
      %v3367 = vmul.f32 %v3323, %v3081
      %v3368 = vmul.f32 %v3323, %v3086
      %v3369 = vmul.f32 %v3323, %v3091
      %v3370 = vmul.f32 %v3323, %v3096
      %v3371 = vmul.f32 %v3323, %v3101
      %v3372 = vmul.f32 %v3323, %v3106
      %v3373 = vmul.f32 %v3323, %v3111
      %v3374 = vmul.f32 %v3323, %v3116
      %v3375 = vmul.f32 %v3323, %v3121
      %v3376 = vmul.f32 %v3323, %v3126
      %v3377 = vmul.f32 %v3327, %v3051
      %v3378 = vmul.f32 %v3327, %v3056
      %v3379 = vmul.f32 %v3327, %v3061
      %v3380 = vmul.f32 %v3327, %v3066
      %v3381 = vmul.f32 %v3327, %v3071
      %v3382 = vmul.f32 %v3327, %v3076
      %v3383 = vmul.f32 %v3327, %v3081
      %v3384 = vmul.f32 %v3327, %v3086
      %v3385 = vmul.f32 %v3327, %v3091
      %v3386 = vmul.f32 %v3327, %v3096
      %v3387 = vmul.f32 %v3327, %v3101
      %v3388 = vmul.f32 %v3327, %v3106
      %v3389 = vmul.f32 %v3327, %v3111
      %v3390 = vmul.f32 %v3327, %v3116
      %v3391 = vmul.f32 %v3327, %v3121
      %v3392 = vmul.f32 %v3327, %v3126
      %v3393 = vadd.f32 %v3229, %v3329
      %v3394 = vadd.f32 %v3230, %v3330
      %v3395 = vadd.f32 %v3231, %v3331
      %v3396 = vadd.f32 %v3232, %v3332
      %v3397 = vadd.f32 %v3233, %v3333
      %v3398 = vadd.f32 %v3234, %v3334
      %v3399 = vadd.f32 %v3235, %v3335
      %v3400 = vadd.f32 %v3236, %v3336
      %v3401 = vadd.f32 %v3237, %v3337
      %v3402 = vadd.f32 %v3238, %v3338
      %v3403 = vadd.f32 %v3239, %v3339
      %v3404 = vadd.f32 %v3240, %v3340
      %v3405 = vadd.f32 %v3241, %v3341
      %v3406 = vadd.f32 %v3242, %v3342
      %v3407 = vadd.f32 %v3243, %v3343
      %v3408 = vadd.f32 %v3244, %v3344
      %v3409 = vadd.f32 %v3245, %v3345
      %v3410 = vadd.f32 %v3246, %v3346
      %v3411 = vadd.f32 %v3247, %v3347
      %v3412 = vadd.f32 %v3248, %v3348
      %v3413 = vadd.f32 %v3249, %v3349
      %v3414 = vadd.f32 %v3250, %v3350
      %v3415 = vadd.f32 %v3251, %v3351
      %v3416 = vadd.f32 %v3252, %v3352
      %v3417 = vadd.f32 %v3253, %v3353
      %v3418 = vadd.f32 %v3254, %v3354
      %v3419 = vadd.f32 %v3255, %v3355
      %v3420 = vadd.f32 %v3256, %v3356
      %v3421 = vadd.f32 %v3257, %v3357
      %v3422 = vadd.f32 %v3258, %v3358
      %v3423 = vadd.f32 %v3259, %v3359
      %v3424 = vadd.f32 %v3260, %v3360
      %v3425 = vadd.f32 %v3261, %v3361
      %v3426 = vadd.f32 %v3262, %v3362
      %v3427 = vadd.f32 %v3263, %v3363
      %v3428 = vadd.f32 %v3264, %v3364
      %v3429 = vadd.f32 %v3265, %v3365
      %v3430 = vadd.f32 %v3266, %v3366
      %v3431 = vadd.f32 %v3267, %v3367
      %v3432 = vadd.f32 %v3268, %v3368
      %v3433 = vadd.f32 %v3269, %v3369
      %v3434 = vadd.f32 %v3270, %v3370
      %v3435 = vadd.f32 %v3271, %v3371
      %v3436 = vadd.f32 %v3272, %v3372
      %v3437 = vadd.f32 %v3273, %v3373
      %v3438 = vadd.f32 %v3274, %v3374
      %v3439 = vadd.f32 %v3275, %v3375
      %v3440 = vadd.f32 %v3276, %v3376
      %v3441 = vadd.f32 %v3277, %v3377
      %v3442 = vadd.f32 %v3278, %v3378
      %v3443 = vadd.f32 %v3279, %v3379
      %v3444 = vadd.f32 %v3280, %v3380
      %v3445 = vadd.f32 %v3281, %v3381
      %v3446 = vadd.f32 %v3282, %v3382
      %v3447 = vadd.f32 %v3283, %v3383
      %v3448 = vadd.f32 %v3284, %v3384
      %v3449 = vadd.f32 %v3285, %v3385
      %v3450 = vadd.f32 %v3286, %v3386
      %v3451 = vadd.f32 %v3287, %v3387
      %v3452 = vadd.f32 %v3288, %v3388
      %v3453 = vadd.f32 %v3289, %v3389
      %v3454 = vadd.f32 %v3290, %v3390
      %v3455 = vadd.f32 %v3291, %v3391
      %v3456 = vadd.f32 %v3292, %v3392
      %3457 = vst.msk [vmem:[%s264] sm:$0xff] %vm595, %v3393
      %3458 = vst.msk [vmem:[%s264 + $0x8] sm:$0xff] %vm595, %v3394
      %3459 = vst.msk [vmem:[%s264 + $0x10] sm:$0xff] %vm595, %v3395
      %3460 = vst.msk [vmem:[%s264 + $0x18] sm:$0xff] %vm595, %v3396
      %3461 = vst.msk [vmem:[%s264 + $0x20] sm:$0xff] %vm595, %v3397
      %3462 = vst.msk [vmem:[%s264 + $0x28] sm:$0xff] %vm595, %v3398
      %3463 = vst.msk [vmem:[%s264 + $0x30] sm:$0xff] %vm595, %v3399
      %3464 = vst.msk [vmem:[%s264 + $0x38] sm:$0xff] %vm595, %v3400
      %3465 = vst.msk [vmem:[%s264 + $0x40] sm:$0xff] %vm595, %v3401
      %3466 = vst.msk [vmem:[%s264 + $0x48] sm:$0xff] %vm595, %v3402
      %3467 = vst.msk [vmem:[%s264 + $0x50] sm:$0xff] %vm595, %v3403
      %3468 = vst.msk [vmem:[%s264 + $0x58] sm:$0xff] %vm595, %v3404
      %3469 = vst.msk [vmem:[%s264 + $0x60] sm:$0xff] %vm595, %v3405
      %3470 = vst.msk [vmem:[%s264 + $0x68] sm:$0xff] %vm595, %v3406
      %3471 = vst.msk [vmem:[%s264 + $0x70] sm:$0xff] %vm595, %v3407
      %3472 = vst.msk [vmem:[%s264 + $0x78] sm:$0xff] %vm595, %v3408
      %3473 = vst.msk [vmem:[%s264 + $0x80] sm:$0xff] %vm595, %v3409
      %3474 = vst.msk [vmem:[%s264 + $0x88] sm:$0xff] %vm595, %v3410
      %3475 = vst.msk [vmem:[%s264 + $0x90] sm:$0xff] %vm595, %v3411
      %3476 = vst.msk [vmem:[%s264 + $0x98] sm:$0xff] %vm595, %v3412
      %3477 = vst.msk [vmem:[%s264 + $0xa0] sm:$0xff] %vm595, %v3413
      %3478 = vst.msk [vmem:[%s264 + $0xa8] sm:$0xff] %vm595, %v3414
      %3479 = vst.msk [vmem:[%s264 + $0xb0] sm:$0xff] %vm595, %v3415
      %3480 = vst.msk [vmem:[%s264 + $0xb8] sm:$0xff] %vm595, %v3416
      %3481 = vst.msk [vmem:[%s264 + $0xc0] sm:$0xff] %vm595, %v3417
      %3482 = vst.msk [vmem:[%s264 + $0xc8] sm:$0xff] %vm595, %v3418
      %3483 = vst.msk [vmem:[%s264 + $0xd0] sm:$0xff] %vm595, %v3419
      %3484 = vst.msk [vmem:[%s264 + $0xd8] sm:$0xff] %vm595, %v3420
      %3485 = vst.msk [vmem:[%s264 + $0xe0] sm:$0xff] %vm595, %v3421
      %3486 = vst.msk [vmem:[%s264 + $0xe8] sm:$0xff] %vm595, %v3422
      %3487 = vst.msk [vmem:[%s264 + $0xf0] sm:$0xff] %vm595, %v3423
      %3488 = vst.msk [vmem:[%s264 + $0xf8] sm:$0xff] %vm595, %v3424
      %3489 = vst.msk [vmem:[%s264 + $0x100] sm:$0xff] %vm595, %v3425
      %3490 = vst.msk [vmem:[%s264 + $0x108] sm:$0xff] %vm595, %v3426
      %3491 = vst.msk [vmem:[%s264 + $0x110] sm:$0xff] %vm595, %v3427
      %3492 = vst.msk [vmem:[%s264 + $0x118] sm:$0xff] %vm595, %v3428
      %3493 = vst.msk [vmem:[%s264 + $0x120] sm:$0xff] %vm595, %v3429
      %3494 = vst.msk [vmem:[%s264 + $0x128] sm:$0xff] %vm595, %v3430
      %3495 = vst.msk [vmem:[%s264 + $0x130] sm:$0xff] %vm595, %v3431
      %3496 = vst.msk [vmem:[%s264 + $0x138] sm:$0xff] %vm595, %v3432
      %3497 = vst.msk [vmem:[%s264 + $0x140] sm:$0xff] %vm595, %v3433
      %3498 = vst.msk [vmem:[%s264 + $0x148] sm:$0xff] %vm595, %v3434
      %3499 = vst.msk [vmem:[%s264 + $0x150] sm:$0xff] %vm595, %v3435
      %3500 = vst.msk [vmem:[%s264 + $0x158] sm:$0xff] %vm595, %v3436
      %3501 = vst.msk [vmem:[%s264 + $0x160] sm:$0xff] %vm595, %v3437
      %3502 = vst.msk [vmem:[%s264 + $0x168] sm:$0xff] %vm595, %v3438
      %3503 = vst.msk [vmem:[%s264 + $0x170] sm:$0xff] %vm595, %v3439
      %3504 = vst.msk [vmem:[%s264 + $0x178] sm:$0xff] %vm595, %v3440
      %3505 = vst.msk [vmem:[%s264 + $0x180] sm:$0xff] %vm595, %v3441
      %3506 = vst.msk [vmem:[%s264 + $0x188] sm:$0xff] %vm595, %v3442
      %3507 = vst.msk [vmem:[%s264 + $0x190] sm:$0xff] %vm595, %v3443
      %3508 = vst.msk [vmem:[%s264 + $0x198] sm:$0xff] %vm595, %v3444
      %3509 = vst.msk [vmem:[%s264 + $0x1a0] sm:$0xff] %vm595, %v3445
      %3510 = vst.msk [vmem:[%s264 + $0x1a8] sm:$0xff] %vm595, %v3446
      %3511 = vst.msk [vmem:[%s264 + $0x1b0] sm:$0xff] %vm595, %v3447
      %3512 = vst.msk [vmem:[%s264 + $0x1b8] sm:$0xff] %vm595, %v3448
      %3513 = vst.msk [vmem:[%s264 + $0x1c0] sm:$0xff] %vm595, %v3449
      %3514 = vst.msk [vmem:[%s264 + $0x1c8] sm:$0xff] %vm595, %v3450
      %3515 = vst.msk [vmem:[%s264 + $0x1d0] sm:$0xff] %vm595, %v3451
      %3516 = vst.msk [vmem:[%s264 + $0x1d8] sm:$0xff] %vm595, %v3452
      %3517 = vst.msk [vmem:[%s264 + $0x1e0] sm:$0xff] %vm595, %v3453
      %3518 = vst.msk [vmem:[%s264 + $0x1e8] sm:$0xff] %vm595, %v3454
      %3519 = vst.msk [vmem:[%s264 + $0x1f0] sm:$0xff] %vm595, %v3455
      %3520 = vst.msk [vmem:[%s264 + $0x1f8] sm:$0xff] %vm595, %v3456
      %p3521 = scmp.lt.s32.totalorder %s18, 1
      %s3522 = scalar_select %p3521, %s18, 1
      %s3523 = smul.addr %s3522, 2
      %s3524 = smul.addr %s3523, 4
      %s3525 = scalar_lea.vmem %s5, %s3524
      %p3526 = scmp.lt.s32.totalorder %s18, 1
      %s3527 = scalar_select %p3526, %s18, 1
      %s3528 = smul.addr %s3527, 64
      %s3529 = smul.addr %s3528, 8
      %s3530 = scalar_lea.vmem %s6, %s3529
      // Predicated region
      $region41: #{augmented_conv_forward.1} parent=39 // pred_check
        %p3531 = pneg %p146
      $region42: #{augmented_conv_forward.1} parent=39 // pred_check_branch
        %3533 = sbr.rel (%p3531) target = $region44
      $region43: #{augmented_conv_forward.1} parent=39 // pred_region
        _
      $region44: #{augmented_conv_forward.1} parent=39 // pred_fallthru
        _
      // Predicated region
      $region45: #{augmented_conv_forward.1} parent=39 // pred_check
        %p3534 = pneg %p172
      $region46: #{augmented_conv_forward.1} parent=39 // pred_check_branch
        %3536 = sbr.rel (%p3534) target = $region48
      $region47: #{augmented_conv_forward.1} parent=39 // pred_region
        _
      $region48: #{augmented_conv_forward.1} parent=39 // pred_fallthru
        _
    $region40: #{augmented_conv_forward.1} parent=5 // pred_fallthru
      _
    %p3537 = scmp.le.s32.totalorder 2, %s13
    // Predicated region
    $region49: #{augmented_conv_forward.1} parent=5 // pred_check
      %p3538 = pneg %p3537
    $region50: #{augmented_conv_forward.1} parent=5 // pred_check_branch
      %3540 = sbr.rel (%p3538) target = $region52
    $region51: #{augmented_conv_forward.1} parent=5 // pred_region
      %s3541 = ssub.s32 %s13, 2
      // Predicated region
      $region53: #{augmented_conv_forward.1} parent=51 // pred_check
        %p3542 = pneg %p152
      $region54: #{augmented_conv_forward.1} parent=51 // pred_check_branch
        %3544 = sbr.rel (%p3542) target = $region56
      $region55: #{augmented_conv_forward.1} parent=51 // pred_region
        %p3545 = scmp.lt.s32.totalorder %s19, 1
        %s3546 = scalar_select %p3545, %s19, 1
        %s3547 = smul.addr %s3546, 2
        %s3548 = smul.addr %s3547, 4
        %s3549 = scalar_lea.vmem %s5, %s3548
      $region56: #{augmented_conv_forward.1} parent=51 // pred_fallthru
        _
      // Predicated region
      $region57: #{augmented_conv_forward.1} parent=51 // pred_check
        %p3550 = pneg %p178
      $region58: #{augmented_conv_forward.1} parent=51 // pred_check_branch
        %3552 = sbr.rel (%p3550) target = $region60
      $region59: #{augmented_conv_forward.1} parent=51 // pred_region
        %p3553 = scmp.lt.s32.totalorder %s19, 1
        %s3554 = scalar_select %p3553, %s19, 1
        %s3555 = smul.addr %s3554, 64
        %s3556 = smul.addr %s3555, 8
        %s3557 = scalar_lea.vmem %s6, %s3556
      $region60: #{augmented_conv_forward.1} parent=51 // pred_fallthru
        _
    $region52: #{augmented_conv_forward.1} parent=5 // pred_fallthru
      _
  $region6: #{augmented_conv_forward.1} parent=0 // loop_footer
    %s17 = sadd.s32 1, %s13
  $region7: #{augmented_conv_forward.1} parent=0 // loop_footer_branch
    %12 = sbr.rel target = $region3
  $region8: #{augmented_conv_forward.1} parent=0 // loop_exit
    _

</llo_original>
